<compile_context>
chip_gen: v7x
topology: tpu7x:2x2x1
jax: 0.10.0
libtpu: 0.0.40
codegen_flags: <defaults>
</compile_context>

<pallas_src>
import jax
import jax.numpy as jnp
from jax import lax
from jax.experimental import pallas as pl
from jax.experimental.pallas import tpu as pltpu

CONFIG = {'vocab_size': 1000, 'hidden_size': 128,
          'num_attention_heads': 4, 'num_hidden_layers': 2}
NUM_LABELS = 10
FFN_DIM = 2048          # nn.TransformerDecoderLayer default dim_feedforward
LN_EPS = 1e-5           # nn.LayerNorm default eps
NEG_INF = -1e30         # stands in for the -inf entries of the causal mask
LANE = 128              # classifier output padded to a full lane width

# per-layer parameters, stacked along a leading num_layers axis (kernel arg order)
STACKED_PARAMS = [
    'sa_wqkv', 'sa_bqkv', 'sa_wo', 'sa_bo',
    'ca_wq', 'ca_bq', 'ca_wkv', 'ca_bkv', 'ca_wo', 'ca_bo',
    'w1', 'b1', 'w2', 'b2',
    'ln1w', 'ln1b', 'ln2w', 'ln2b', 'ln3w', 'ln3b',
]


# ----------------------------------------------------------------------------
# In-kernel helpers (traced inside the fused Pallas kernel body)
# ----------------------------------------------------------------------------
def _softmax(s, approx=True):
    m = jnp.max(s, axis=-1, keepdims=True)
    p = jnp.exp(s - m)
    d = jnp.sum(p, axis=-1, keepdims=True)
    if approx:
        return p * pl.reciprocal(d, approx=True)   # EUP slot, otherwise idle
    return p / d


def _layer_norm(x, w, b):
    mu = jnp.mean(x, axis=-1, keepdims=True)
    xc = x - mu
    var = jnp.mean(xc * xc, axis=-1, keepdims=True)
    return xc * lax.rsqrt(var + LN_EPS) * w + b


# ----------------------------------------------------------------------------
# Fused Pallas kernel: grid=(num_layers,); one decoder layer per step,
# classifier on the last step.  Activation x carried in VMEM scratch.
# ----------------------------------------------------------------------------
def fused_decoder_kernel(mem_ref,
                         sa_wqkv, sa_bqkv, sa_wo, sa_bo,
                         ca_wq, ca_bq, ca_wkv, ca_bkv, ca_wo, ca_bo,
                         w1, b1, w2, b2,
                         ln1w, ln1b, ln2w, ln2b, ln3w, ln3b,
                         cls_w, cls_b,
                         out_ref,
                         x_scr, attn_scr):
    layer = pl.program_id(0)
    seq, emb = mem_ref.shape
    heads = CONFIG['num_attention_heads']
    dh = emb // heads

    # Step 0: seed the carried activation with the (resident) embedding output.
    @pl.when(layer == 0)
    def _():
        x_scr[...] = mem_ref[...]

    x = x_scr[...]                      # (S, E) f32, carried across grid steps
    mem = mem_ref[...]                  # memory = embedding output (resident)

    # Causal mask built in-kernel from iota (no DMA): key > query -> -1e30.
    rows = lax.broadcasted_iota(jnp.int32, (seq, seq), 0)
    cols = lax.broadcasted_iota(jnp.int32, (seq, seq), 1)
    causal = jnp.where(cols > rows, jnp.float32(NEG_INF), jnp.float32(0.0))

    def attention(q, k, v, mask):
        # q/k/v: (S, E) f32.  Per-head score/softmax/PV on tiny (8,32)/(8,8)
        # tiles (bf16 in, f32 accumulate); each head's PV is written into its
        # lane slice of attn_scr so the merged result feeds ONE (E, E) output
        # projection instead of 4 K=32 matmuls + f32 accumulation adds.
        for h in range(heads):
            sl = slice(h * dh, (h + 1) * dh)
            qh = q[:, sl].astype(jnp.bfloat16)
            kh = k[:, sl].astype(jnp.bfloat16)
            vh = v[:, sl].astype(jnp.bfloat16)
            s = lax.dot_general(qh, kh, (((1,), (1,)), ((), ())),
                                preferred_element_type=jnp.float32)   # q @ k.T
            if mask is not None:
                s = s + mask
            p = _softmax(s, approx=True)
            attn_scr[:, sl] = jnp.dot(p.astype(jnp.bfloat16), vh,
                                      preferred_element_type=jnp.float32)
        return attn_scr[...]            # (S, E) f32

    # ---- self-attention (causal); fused (E, 3E) QKV projection,
    #      1/sqrt(dh) already folded into the Q columns/bias at init.
    qkv = jnp.dot(x.astype(jnp.bfloat16), sa_wqkv[...],
                  preferred_element_type=jnp.float32) + sa_bqkv[...]
    a = attention(qkv[:, :emb], qkv[:, emb:2 * emb], qkv[:, 2 * emb:], causal)
    sa = jnp.dot(a.astype(jnp.bfloat16), sa_wo[...],
                 preferred_element_type=jnp.float32) + sa_bo[...]
    x = _layer_norm(x + sa, ln1w[...], ln1b[...])

    # ---- cross-attention on the embedding memory (no mask); fused (E, 2E) K/V.
    q = jnp.dot(x.astype(jnp.bfloat16), ca_wq[...],
                preferred_element_type=jnp.float32) + ca_bq[...]
    kv = jnp.dot(mem.astype(jnp.bfloat16), ca_wkv[...],
                 preferred_element_type=jnp.float32) + ca_bkv[...]
    a = attention(q, kv[:, :emb], kv[:, emb:], None)
    ca = jnp.dot(a.astype(jnp.bfloat16), ca_wo[...],
                 preferred_element_type=jnp.float32) + ca_bo[...]
    x = _layer_norm(x + ca, ln2w[...], ln2b[...])

    # ---- feed-forward (relu)
    h = jnp.dot(x.astype(jnp.bfloat16), w1[...],
                preferred_element_type=jnp.float32) + b1[...]
    h = jnp.maximum(h, 0.0)
    ff = jnp.dot(h.astype(jnp.bfloat16), w2[...],
                 preferred_element_type=jnp.float32) + b2[...]
    x = _layer_norm(x + ff, ln3w[...], ln3b[...])

    x_scr[...] = x                      # carry to the next layer / classifier

    # ---- classifier + exact softmax, only on the final grid step.
    # Lane-dense (S, 128) padded output; padded columns carry a -1e30 bias so the
    # softmax over 128 lanes is exact (padded probs underflow to exactly 0).
    @pl.when(layer == pl.num_programs(0) - 1)
    def _():
        logits = jnp.dot(x, cls_w[...],
                         preferred_element_type=jnp.float32) + cls_b[...]
        out_ref[...] = _softmax(logits, approx=False)


# ----------------------------------------------------------------------------
# Wrapper
# ----------------------------------------------------------------------------
def transformer_classifier_forward(input_ids, params):
    """Mirrors TransformerClassifier.forward.  input_ids: (S, B) int32, seq-first.

    PyTorch's `x[:, -1, :]` on the seq-first (S, B, E) output selects the LAST
    BATCH ELEMENT; since attention never mixes batch elements and dropout is
    omitted (eval semantics), only column B-1 of input_ids needs to be computed.
    """
    seq, batch = input_ids.shape
    emb = CONFIG['hidden_size']
    n_layers = CONFIG['num_hidden_layers']
    assert seq == batch, "module builds a mask of size input_ids.size(1); needs square input"

    # TODO(synk): embedding gather (data-dependent) stays in plain JAX glue.
    mem = params['embedding'][input_ids[:, -1]]                # (S, E) f32

    stacked = [params['stacked'][k] for k in STACKED_PARAMS]
    cls_w = params['cls_w_pad']
    cls_b = params['cls_b_pad']

    # Per-layer weights: squeeze the leading layer dim, index by the grid step.
    layer_specs = [pl.BlockSpec((None,) + p.shape[1:], lambda l: (l, 0, 0))
                   for p in stacked]
    # Grid-invariant tensors: constant index map -> DMA'd once, stay resident.
    mem_spec = pl.BlockSpec(mem.shape, lambda l: (0, 0))
    cls_w_spec = pl.BlockSpec(cls_w.shape, lambda l: (0, 0))
    cls_b_spec = pl.BlockSpec(cls_b.shape, lambda l: (0, 0))
    out_spec = pl.BlockSpec((seq, LANE), lambda l: (0, 0))

    probs_pad = pl.pallas_call(
        fused_decoder_kernel,
        out_shape=jax.ShapeDtypeStruct((seq, LANE), jnp.float32),
        grid_spec=pltpu.PrefetchScalarGridSpec(
            num_scalar_prefetch=0,
            grid=(n_layers,),
            in_specs=[mem_spec] + layer_specs + [cls_w_spec, cls_b_spec],
            out_specs=out_spec,
            scratch_shapes=[pltpu.VMEM((seq, emb), jnp.float32),   # carried x
                            pltpu.VMEM((seq, emb), jnp.float32)],  # head merge
        ),
        compiler_params=pltpu.CompilerParams(
            dimension_semantics=("arbitrary",)),
    )(mem, *stacked, cls_w, cls_b)

    return probs_pad[:, :NUM_LABELS]


# ----------------------------------------------------------------------------
# Parameter init (deterministic; pre-transposed / pre-scaled / fused / bf16)
# ----------------------------------------------------------------------------
def init_params(key, config, num_labels):
    emb = config['hidden_size']
    vocab = config['vocab_size']
    heads = config['num_attention_heads']
    dh = emb // heads
    n_layers = config['num_hidden_layers']
    keys = iter(jax.random.split(key, 256))

    def nrm(shape, scale=0.02):
        return scale * jax.random.normal(next(keys), shape, dtype=jnp.float32)

    params = {'embedding': nrm((vocab, emb), scale=1.0)}
    q_scale = 1.0 / (dh ** 0.5)

    per_layer = []
    for _ in range(n_layers):
        lp = {}
        # --- self-attention: fused (E, 3E) QKV weight, scale folded into Q cols
        wq, wk, wv = nrm((emb, emb)).T, nrm((emb, emb)).T, nrm((emb, emb)).T
        bq, bk, bv = nrm((1, emb)), nrm((1, emb)), nrm((1, emb))
        lp['sa_wqkv'] = jnp.concatenate([wq * q_scale, wk, wv], axis=1).astype(jnp.bfloat16)
        lp['sa_bqkv'] = jnp.concatenate([bq * q_scale, bk, bv], axis=1)
        lp['sa_wo'] = nrm((emb, emb)).T.astype(jnp.bfloat16)
        lp['sa_bo'] = nrm((1, emb))
        # --- cross-attention: separate Q (from x), fused (E, 2E) K/V (from memory)
        cwq, cwk, cwv = nrm((emb, emb)).T, nrm((emb, emb)).T, nrm((emb, emb)).T
        cbq, cbk, cbv = nrm((1, emb)), nrm((1, emb)), nrm((1, emb))
        lp['ca_wq'] = (cwq * q_scale).astype(jnp.bfloat16)
        lp['ca_bq'] = cbq * q_scale
        lp['ca_wkv'] = jnp.concatenate([cwk, cwv], axis=1).astype(jnp.bfloat16)
        lp['ca_bkv'] = jnp.concatenate([cbk, cbv], axis=1)
        lp['ca_wo'] = nrm((emb, emb)).T.astype(jnp.bfloat16)
        lp['ca_bo'] = nrm((1, emb))
        # --- feed-forward
        lp['w1'] = nrm((FFN_DIM, emb)).T.astype(jnp.bfloat16)   # (E, FFN)
        lp['b1'] = nrm((1, FFN_DIM))
        lp['w2'] = nrm((emb, FFN_DIM)).T.astype(jnp.bfloat16)   # (FFN, E)
        lp['b2'] = nrm((1, emb))
        # --- LayerNorms (PyTorch default init)
        for i in (1, 2, 3):
            lp[f'ln{i}w'] = jnp.ones((1, emb), jnp.float32)
            lp[f'ln{i}b'] = jnp.zeros((1, emb), jnp.float32)
        per_layer.append(lp)

    params['stacked'] = {k: jnp.stack([lp[k] for lp in per_layer], axis=0)
                         for k in STACKED_PARAMS}

    # classifier, lane-dense padded: zero weight cols / -1e30 bias beyond num_labels
    cls_w = nrm((num_labels, emb)).T                            # (E, num_labels)
    cls_b = nrm((1, num_labels))
    params['cls_w_pad'] = jnp.zeros((emb, LANE), jnp.float32).at[:, :num_labels].set(cls_w)
    params['cls_b_pad'] = jnp.full((1, LANE), NEG_INF, jnp.float32).at[:, :num_labels].set(cls_b)
    return params


# ----------------------------------------------------------------------------
# Pure-JAX reference of the same math over the FULL batch (correctness check:
# also validates that only the last batch column matters for the output).
# ----------------------------------------------------------------------------
def reference_forward(input_ids, params):
    seq, batch = input_ids.shape
    emb = CONFIG['hidden_size']
    heads = CONFIG['num_attention_heads']
    dh = emb // heads
    n_layers = CONFIG['num_hidden_layers']
    st = params['stacked']

    x = jnp.transpose(params['embedding'][input_ids], (1, 0, 2))   # (B, S, E)
    mem = x
    idx = jnp.arange(seq)
    mask = jnp.where(idx[None, :] > idx[:, None],
                     jnp.float32(NEG_INF), jnp.float32(0.0))

    def proj(t, w, b):
        return jnp.einsum('bse,ef->bsf', t.astype(jnp.bfloat16), w,
                          preferred_element_type=jnp.float32) + b

    def softmax(s):
        s = s - jnp.max(s, axis=-1, keepdims=True)
        p = jnp.exp(s)
        return p / jnp.sum(p, axis=-1, keepdims=True)

    def ln(t, w, b):
        mu = jnp.mean(t, axis=-1, keepdims=True)
        tc = t - mu
        var = jnp.mean(tc * tc, axis=-1, keepdims=True)
        return tc * jax.lax.rsqrt(var + LN_EPS) * w + b

    def attention(q, k, v, wo, bo, msk):
        outs = []
        for h in range(heads):
            sl = slice(h * dh, (h + 1) * dh)
            s = jnp.einsum('bqd,bkd->bqk',
                           q[..., sl].astype(jnp.bfloat16),
                           k[..., sl].astype(jnp.bfloat16),
                           preferred_element_type=jnp.float32)
            if msk is not None:
                s = s + msk
            p = softmax(s)
            outs.append(jnp.einsum('bqk,bkd->bqd', p.astype(jnp.bfloat16),
                                   v[..., sl].astype(jnp.bfloat16),
                                   preferred_element_type=jnp.float32))
        return proj(jnp.concatenate(outs, axis=-1), wo, bo)

    for l in range(n_layers):
        qkv = proj(x, st['sa_wqkv'][l], st['sa_bqkv'][l])
        sa = attention(qkv[..., :emb], qkv[..., emb:2 * emb], qkv[..., 2 * emb:],
                       st['sa_wo'][l], st['sa_bo'][l], mask)
        x = ln(x + sa, st['ln1w'][l], st['ln1b'][l])
        q = proj(x, st['ca_wq'][l], st['ca_bq'][l])
        kv = proj(mem, st['ca_wkv'][l], st['ca_bkv'][l])
        ca = attention(q, kv[..., :emb], kv[..., emb:],
                       st['ca_wo'][l], st['ca_bo'][l], None)
        x = ln(x + ca, st['ln2w'][l], st['ln2b'][l])
        h1 = jnp.maximum(proj(x, st['w1'][l], st['b1'][l]), 0.0)
        ff = proj(h1, st['w2'][l], st['b2'][l])
        x = ln(x + ff, st['ln3w'][l], st['ln3b'][l])

    x_last = x[-1]                              # PyTorch x[:, -1, :]: (S, E)
    logits = (x_last @ params['cls_w_pad'][:, :NUM_LABELS]
              + params['cls_b_pad'][:, :NUM_LABELS])
    return softmax(logits)


if __name__ == "__main__":
    key = jax.random.PRNGKey(0)
    pkey, dkey = jax.random.split(key)
    params = init_params(pkey, CONFIG, NUM_LABELS)

    S, B = 8, 8     # module requires S == B (square mask); small shapes
    input_ids = jax.random.randint(dkey, (S, B), 0, CONFIG['vocab_size'],
                                   dtype=jnp.int32)

    fwd = jax.jit(transformer_classifier_forward)
    probs = jax.block_until_ready(fwd(input_ids, params))

    assert probs.shape == (S, NUM_LABELS), probs.shape
    assert bool(jnp.all(jnp.isfinite(probs)))
    assert bool(jnp.allclose(jnp.sum(probs, axis=-1), 1.0, atol=1e-5))

    # Cross-check against a pure-JAX mirror of the same math (same bf16 weights,
    # f32 accumulation, same cast points).  Loose tol covers the approx softmax
    # reciprocal and op-ordering differences.
    ref = reference_forward(input_ids, params)
    err = float(jnp.max(jnp.abs(probs - ref)))
    assert err < 2e-2, err

    print("KERNEL_OK")
</pallas_src>

<mosaic_0001>
module attributes {stable_mosaic.version = 11 : i64} {
  func.func @fused_decoder_kernel(%arg0: i32, %arg1: memref<8x128xf32, #tpu.memory_space<vmem>>, %arg2: memref<1x128x384xbf16, #tpu.memory_space<vmem>>, %arg3: memref<1x1x384xf32, #tpu.memory_space<vmem>>, %arg4: memref<1x128x128xbf16, #tpu.memory_space<vmem>>, %arg5: memref<1x1x128xf32, #tpu.memory_space<vmem>>, %arg6: memref<1x128x128xbf16, #tpu.memory_space<vmem>>, %arg7: memref<1x1x128xf32, #tpu.memory_space<vmem>>, %arg8: memref<1x128x256xbf16, #tpu.memory_space<vmem>>, %arg9: memref<1x1x256xf32, #tpu.memory_space<vmem>>, %arg10: memref<1x128x128xbf16, #tpu.memory_space<vmem>>, %arg11: memref<1x1x128xf32, #tpu.memory_space<vmem>>, %arg12: memref<1x128x2048xbf16, #tpu.memory_space<vmem>>, %arg13: memref<1x1x2048xf32, #tpu.memory_space<vmem>>, %arg14: memref<1x2048x128xbf16, #tpu.memory_space<vmem>>, %arg15: memref<1x1x128xf32, #tpu.memory_space<vmem>>, %arg16: memref<1x1x128xf32, #tpu.memory_space<vmem>>, %arg17: memref<1x1x128xf32, #tpu.memory_space<vmem>>, %arg18: memref<1x1x128xf32, #tpu.memory_space<vmem>>, %arg19: memref<1x1x128xf32, #tpu.memory_space<vmem>>, %arg20: memref<1x1x128xf32, #tpu.memory_space<vmem>>, %arg21: memref<1x1x128xf32, #tpu.memory_space<vmem>>, %arg22: memref<128x128xf32, #tpu.memory_space<vmem>>, %arg23: memref<1x128xf32, #tpu.memory_space<vmem>>, %arg24: memref<8x128xf32, #tpu.memory_space<vmem>>, %arg25: memref<8x128xf32, #tpu.memory_space<vmem>>, %arg26: memref<8x128xf32, #tpu.memory_space<vmem>>) attributes {dimension_semantics = [#tpu.dimension_semantics<arbitrary>], iteration_bounds = array<i64: 2>, scalar_prefetch = 0 : i64, scratch_operands = 2 : i64, tpu.core_type = #tpu.core_type<tc>, window_params = [{pipeline_mode = #tpu.pipeline_mode<synchronous>, transform_indices = @transform_0, window_bounds = array<i64: 8, 128>}, {transform_indices = @transform_1, window_bounds = array<i64: 1, 128, 384>}, {transform_indices = @transform_2, window_bounds = array<i64: 1, 1, 384>}, {transform_indices = @transform_3, window_bounds = array<i64: 1, 128, 128>}, {transform_indices = @transform_4, window_bounds = array<i64: 1, 1, 128>}, {transform_indices = @transform_5, window_bounds = array<i64: 1, 128, 128>}, {transform_indices = @transform_6, window_bounds = array<i64: 1, 1, 128>}, {transform_indices = @transform_7, window_bounds = array<i64: 1, 128, 256>}, {transform_indices = @transform_8, window_bounds = array<i64: 1, 1, 256>}, {transform_indices = @transform_9, window_bounds = array<i64: 1, 128, 128>}, {transform_indices = @transform_10, window_bounds = array<i64: 1, 1, 128>}, {transform_indices = @transform_11, window_bounds = array<i64: 1, 128, 2048>}, {transform_indices = @transform_12, window_bounds = array<i64: 1, 1, 2048>}, {transform_indices = @transform_13, window_bounds = array<i64: 1, 2048, 128>}, {transform_indices = @transform_14, window_bounds = array<i64: 1, 1, 128>}, {transform_indices = @transform_15, window_bounds = array<i64: 1, 1, 128>}, {transform_indices = @transform_16, window_bounds = array<i64: 1, 1, 128>}, {transform_indices = @transform_17, window_bounds = array<i64: 1, 1, 128>}, {transform_indices = @transform_18, window_bounds = array<i64: 1, 1, 128>}, {transform_indices = @transform_19, window_bounds = array<i64: 1, 1, 128>}, {transform_indices = @transform_20, window_bounds = array<i64: 1, 1, 128>}, {pipeline_mode = #tpu.pipeline_mode<synchronous>, transform_indices = @transform_21, window_bounds = array<i64: 128, 128>}, {pipeline_mode = #tpu.pipeline_mode<synchronous>, transform_indices = @transform_22, window_bounds = array<i64: 1, 128>}, {pipeline_mode = #tpu.pipeline_mode<synchronous>, transform_indices = @transform_23, window_bounds = array<i64: 8, 128>}]} {
    %c0_i32 = arith.constant 0 : i32
    %0 = arith.cmpi eq, %arg0, %c0_i32 : i32
    %1 = arith.extui %0 : i1 to i32
    %c0_i32_0 = arith.constant 0 : i32
    %2 = arith.cmpi ne, %1, %c0_i32_0 : i32
    scf.if %2 {
      %c0_140 = arith.constant 0 : index
      %c0_141 = arith.constant 0 : index
      %319 = vector.load %arg1[%c0_140, %c0_141] : memref<8x128xf32, #tpu.memory_space<vmem>>, vector<8x128xf32>
      %c0_142 = arith.constant 0 : index
      %c0_143 = arith.constant 0 : index
      %320 = vector.load %arg25[%c0_142, %c0_143] : memref<8x128xf32, #tpu.memory_space<vmem>>, vector<8x128xf32>
      tpu.vector_store %arg25[%c0_142, %c0_143], %319 {strides = array<i32>} : memref<8x128xf32, #tpu.memory_space<vmem>>, vector<8x128xf32>,
    } else {
    }
    %c0 = arith.constant 0 : index
    %c0_1 = arith.constant 0 : index
    %3 = vector.load %arg25[%c0, %c0_1] : memref<8x128xf32, #tpu.memory_space<vmem>>, vector<8x128xf32>
    %c0_2 = arith.constant 0 : index
    %c0_3 = arith.constant 0 : index
    %4 = vector.load %arg1[%c0_2, %c0_3] : memref<8x128xf32, #tpu.memory_space<vmem>>, vector<8x128xf32>
    %5 = tpu.iota {dimensions = array<i32: 0>} : vector<8x8xi32>
    %6 = tpu.iota {dimensions = array<i32: 1>} : vector<8x8xi32>
    %7 = arith.cmpi sgt, %6, %5 : vector<8x8xi32>
    %cst = arith.constant -1.000000e+30 : f32
    %cst_4 = arith.constant 0.000000e+00 : f32
    %8 = vector.broadcast %cst : f32 to vector<8x8xf32>
    %9 = vector.broadcast %cst_4 : f32 to vector<8x8xf32>
    %10 = arith.select %7, %8, %9 : vector<8x8xi1>, vector<8x8xf32>
    %11 = arith.truncf %3 : vector<8x128xf32> to vector<8x128xbf16>
    %c0_5 = arith.constant 0 : index
    %c0_6 = arith.constant 0 : index
    %c0_7 = arith.constant 0 : index
    %12 = vector.load %arg2[%c0_5, %c0_6, %c0_7] : memref<1x128x384xbf16, #tpu.memory_space<vmem>>, vector<1x128x384xbf16>
    %13 = vector.shape_cast %12 : vector<1x128x384xbf16> to vector<128x384xbf16>
    %cst_8 = arith.constant dense<0.000000e+00> : vector<8x384xf32>
    %14 = tpu.matmul %11, %13, %cst_8 {dimension_numbers = #tpu.dot_dimension_numbers<[1], [0], [0], [1], [0, 0, 1, 1], [], []>} : vector<8x128xbf16>, vector<128x384xbf16>, vector<8x384xf32> -> vector<8x384xf32>
    %c0_9 = arith.constant 0 : index
    %c0_10 = arith.constant 0 : index
    %c0_11 = arith.constant 0 : index
    %15 = vector.load %arg3[%c0_9, %c0_10, %c0_11] : memref<1x1x384xf32, #tpu.memory_space<vmem>>, vector<1x1x384xf32>
    %16 = vector.shape_cast %15 : vector<1x1x384xf32> to vector<1x384xf32>
    %17 = vector.broadcast %16 : vector<1x384xf32> to vector<8x384xf32>
    %18 = arith.addf %14, %17 : vector<8x384xf32>
    %19 = vector.extract_strided_slice %18 {offsets = [0, 0], sizes = [8, 128], strides = [1, 1]} : vector<8x384xf32> to vector<8x128xf32>
    %20 = vector.extract_strided_slice %18 {offsets = [0, 128], sizes = [8, 128], strides = [1, 1]} : vector<8x384xf32> to vector<8x128xf32>
    %21 = vector.extract_strided_slice %18 {offsets = [0, 256], sizes = [8, 128], strides = [1, 1]} : vector<8x384xf32> to vector<8x128xf32>
    %22 = vector.extract_strided_slice %19 {offsets = [0, 0], sizes = [8, 32], strides = [1, 1]} : vector<8x128xf32> to vector<8x32xf32>
    %23 = arith.truncf %22 : vector<8x32xf32> to vector<8x32xbf16>
    %24 = vector.extract_strided_slice %20 {offsets = [0, 0], sizes = [8, 32], strides = [1, 1]} : vector<8x128xf32> to vector<8x32xf32>
    %25 = arith.truncf %24 : vector<8x32xf32> to vector<8x32xbf16>
    %26 = vector.extract_strided_slice %21 {offsets = [0, 0], sizes = [8, 32], strides = [1, 1]} : vector<8x128xf32> to vector<8x32xf32>
    %27 = arith.truncf %26 : vector<8x32xf32> to vector<8x32xbf16>
    %cst_12 = arith.constant dense<0.000000e+00> : vector<8x8xf32>
    %28 = tpu.matmul %23, %25, %cst_12 {dimension_numbers = #tpu.dot_dimension_numbers<[1], [1], [0], [0], [0, 0, 1, 0], [], []>} : vector<8x32xbf16>, vector<8x32xbf16>, vector<8x8xf32> -> vector<8x8xf32>
    %29 = arith.addf %28, %10 : vector<8x8xf32>
    %cst_13 = arith.constant dense<0xFF800000> : vector<8xf32>
    %30 = vector.multi_reduction <maximumf>, %29, %cst_13 [1] : vector<8x8xf32> to vector<8xf32>
    %31 = vector.shape_cast %30 : vector<8xf32> to vector<8x1xf32>
    %32 = vector.broadcast %31 : vector<8x1xf32> to vector<8x8xf32>
    %33 = arith.subf %29, %32 : vector<8x8xf32>
    %34 = math.exp %33 : vector<8x8xf32>
    %cst_14 = arith.constant dense<0.000000e+00> : vector<8xf32>
    %35 = vector.multi_reduction <add>, %34, %cst_14 [1] : vector<8x8xf32> to vector<8xf32>
    %36 = vector.shape_cast %35 : vector<8xf32> to vector<8x1xf32>
    %37 = tpu.reciprocal %36 {approx = true} : vector<8x1xf32> -> vector<8x1xf32>
    %38 = vector.broadcast %37 : vector<8x1xf32> to vector<8x8xf32>
    %39 = arith.mulf %34, %38 : vector<8x8xf32>
    %40 = arith.truncf %39 : vector<8x8xf32> to vector<8x8xbf16>
    %cst_15 = arith.constant dense<0.000000e+00> : vector<8x32xf32>
    %41 = tpu.matmul %40, %27, %cst_15 {dimension_numbers = #tpu.dot_dimension_numbers<[1], [0], [0], [1], [0, 0, 1, 1], [], []>} : vector<8x8xbf16>, vector<8x32xbf16>, vector<8x32xf32> -> vector<8x32xf32>
    %c0_16 = arith.constant 0 : index
    %c0_17 = arith.constant 0 : index
    %42 = vector.load %arg26[%c0_16, %c0_17] : memref<8x128xf32, #tpu.memory_space<vmem>>, vector<8x32xf32>
    tpu.vector_store %arg26[%c0_16, %c0_17], %41 {strides = array<i32>} : memref<8x128xf32, #tpu.memory_space<vmem>>, vector<8x32xf32>,
    %43 = vector.extract_strided_slice %19 {offsets = [0, 32], sizes = [8, 32], strides = [1, 1]} : vector<8x128xf32> to vector<8x32xf32>
    %44 = arith.truncf %43 : vector<8x32xf32> to vector<8x32xbf16>
    %45 = vector.extract_strided_slice %20 {offsets = [0, 32], sizes = [8, 32], strides = [1, 1]} : vector<8x128xf32> to vector<8x32xf32>
    %46 = arith.truncf %45 : vector<8x32xf32> to vector<8x32xbf16>
    %47 = vector.extract_strided_slice %21 {offsets = [0, 32], sizes = [8, 32], strides = [1, 1]} : vector<8x128xf32> to vector<8x32xf32>
    %48 = arith.truncf %47 : vector<8x32xf32> to vector<8x32xbf16>
    %cst_18 = arith.constant dense<0.000000e+00> : vector<8x8xf32>
    %49 = tpu.matmul %44, %46, %cst_18 {dimension_numbers = #tpu.dot_dimension_numbers<[1], [1], [0], [0], [0, 0, 1, 0], [], []>} : vector<8x32xbf16>, vector<8x32xbf16>, vector<8x8xf32> -> vector<8x8xf32>
    %50 = arith.addf %49, %10 : vector<8x8xf32>
    %cst_19 = arith.constant dense<0xFF800000> : vector<8xf32>
    %51 = vector.multi_reduction <maximumf>, %50, %cst_19 [1] : vector<8x8xf32> to vector<8xf32>
    %52 = vector.shape_cast %51 : vector<8xf32> to vector<8x1xf32>
    %53 = vector.broadcast %52 : vector<8x1xf32> to vector<8x8xf32>
    %54 = arith.subf %50, %53 : vector<8x8xf32>
    %55 = math.exp %54 : vector<8x8xf32>
    %cst_20 = arith.constant dense<0.000000e+00> : vector<8xf32>
    %56 = vector.multi_reduction <add>, %55, %cst_20 [1] : vector<8x8xf32> to vector<8xf32>
    %57 = vector.shape_cast %56 : vector<8xf32> to vector<8x1xf32>
    %58 = tpu.reciprocal %57 {approx = true} : vector<8x1xf32> -> vector<8x1xf32>
    %59 = vector.broadcast %58 : vector<8x1xf32> to vector<8x8xf32>
    %60 = arith.mulf %55, %59 : vector<8x8xf32>
    %61 = arith.truncf %60 : vector<8x8xf32> to vector<8x8xbf16>
    %cst_21 = arith.constant dense<0.000000e+00> : vector<8x32xf32>
    %62 = tpu.matmul %61, %48, %cst_21 {dimension_numbers = #tpu.dot_dimension_numbers<[1], [0], [0], [1], [0, 0, 1, 1], [], []>} : vector<8x8xbf16>, vector<8x32xbf16>, vector<8x32xf32> -> vector<8x32xf32>
    %c0_22 = arith.constant 0 : index
    %c32 = arith.constant 32 : index
    %63 = vector.load %arg26[%c0_22, %c32] : memref<8x128xf32, #tpu.memory_space<vmem>>, vector<8x32xf32>
    tpu.vector_store %arg26[%c0_22, %c32], %62 {strides = array<i32>} : memref<8x128xf32, #tpu.memory_space<vmem>>, vector<8x32xf32>,
    %64 = vector.extract_strided_slice %19 {offsets = [0, 64], sizes = [8, 32], strides = [1, 1]} : vector<8x128xf32> to vector<8x32xf32>
    %65 = arith.truncf %64 : vector<8x32xf32> to vector<8x32xbf16>
    %66 = vector.extract_strided_slice %20 {offsets = [0, 64], sizes = [8, 32], strides = [1, 1]} : vector<8x128xf32> to vector<8x32xf32>
    %67 = arith.truncf %66 : vector<8x32xf32> to vector<8x32xbf16>
    %68 = vector.extract_strided_slice %21 {offsets = [0, 64], sizes = [8, 32], strides = [1, 1]} : vector<8x128xf32> to vector<8x32xf32>
    %69 = arith.truncf %68 : vector<8x32xf32> to vector<8x32xbf16>
    %cst_23 = arith.constant dense<0.000000e+00> : vector<8x8xf32>
    %70 = tpu.matmul %65, %67, %cst_23 {dimension_numbers = #tpu.dot_dimension_numbers<[1], [1], [0], [0], [0, 0, 1, 0], [], []>} : vector<8x32xbf16>, vector<8x32xbf16>, vector<8x8xf32> -> vector<8x8xf32>
    %71 = arith.addf %70, %10 : vector<8x8xf32>
    %cst_24 = arith.constant dense<0xFF800000> : vector<8xf32>
    %72 = vector.multi_reduction <maximumf>, %71, %cst_24 [1] : vector<8x8xf32> to vector<8xf32>
    %73 = vector.shape_cast %72 : vector<8xf32> to vector<8x1xf32>
    %74 = vector.broadcast %73 : vector<8x1xf32> to vector<8x8xf32>
    %75 = arith.subf %71, %74 : vector<8x8xf32>
    %76 = math.exp %75 : vector<8x8xf32>
    %cst_25 = arith.constant dense<0.000000e+00> : vector<8xf32>
    %77 = vector.multi_reduction <add>, %76, %cst_25 [1] : vector<8x8xf32> to vector<8xf32>
    %78 = vector.shape_cast %77 : vector<8xf32> to vector<8x1xf32>
    %79 = tpu.reciprocal %78 {approx = true} : vector<8x1xf32> -> vector<8x1xf32>
    %80 = vector.broadcast %79 : vector<8x1xf32> to vector<8x8xf32>
    %81 = arith.mulf %76, %80 : vector<8x8xf32>
    %82 = arith.truncf %81 : vector<8x8xf32> to vector<8x8xbf16>
    %cst_26 = arith.constant dense<0.000000e+00> : vector<8x32xf32>
    %83 = tpu.matmul %82, %69, %cst_26 {dimension_numbers = #tpu.dot_dimension_numbers<[1], [0], [0], [1], [0, 0, 1, 1], [], []>} : vector<8x8xbf16>, vector<8x32xbf16>, vector<8x32xf32> -> vector<8x32xf32>
    %c0_27 = arith.constant 0 : index
    %c64 = arith.constant 64 : index
    %84 = vector.load %arg26[%c0_27, %c64] : memref<8x128xf32, #tpu.memory_space<vmem>>, vector<8x32xf32>
    tpu.vector_store %arg26[%c0_27, %c64], %83 {strides = array<i32>} : memref<8x128xf32, #tpu.memory_space<vmem>>, vector<8x32xf32>,
    %85 = vector.extract_strided_slice %19 {offsets = [0, 96], sizes = [8, 32], strides = [1, 1]} : vector<8x128xf32> to vector<8x32xf32>
    %86 = arith.truncf %85 : vector<8x32xf32> to vector<8x32xbf16>
    %87 = vector.extract_strided_slice %20 {offsets = [0, 96], sizes = [8, 32], strides = [1, 1]} : vector<8x128xf32> to vector<8x32xf32>
    %88 = arith.truncf %87 : vector<8x32xf32> to vector<8x32xbf16>
    %89 = vector.extract_strided_slice %21 {offsets = [0, 96], sizes = [8, 32], strides = [1, 1]} : vector<8x128xf32> to vector<8x32xf32>
    %90 = arith.truncf %89 : vector<8x32xf32> to vector<8x32xbf16>
    %cst_28 = arith.constant dense<0.000000e+00> : vector<8x8xf32>
    %91 = tpu.matmul %86, %88, %cst_28 {dimension_numbers = #tpu.dot_dimension_numbers<[1], [1], [0], [0], [0, 0, 1, 0], [], []>} : vector<8x32xbf16>, vector<8x32xbf16>, vector<8x8xf32> -> vector<8x8xf32>
    %92 = arith.addf %91, %10 : vector<8x8xf32>
    %cst_29 = arith.constant dense<0xFF800000> : vector<8xf32>
    %93 = vector.multi_reduction <maximumf>, %92, %cst_29 [1] : vector<8x8xf32> to vector<8xf32>
    %94 = vector.shape_cast %93 : vector<8xf32> to vector<8x1xf32>
    %95 = vector.broadcast %94 : vector<8x1xf32> to vector<8x8xf32>
    %96 = arith.subf %92, %95 : vector<8x8xf32>
    %97 = math.exp %96 : vector<8x8xf32>
    %cst_30 = arith.constant dense<0.000000e+00> : vector<8xf32>
    %98 = vector.multi_reduction <add>, %97, %cst_30 [1] : vector<8x8xf32> to vector<8xf32>
    %99 = vector.shape_cast %98 : vector<8xf32> to vector<8x1xf32>
    %100 = tpu.reciprocal %99 {approx = true} : vector<8x1xf32> -> vector<8x1xf32>
    %101 = vector.broadcast %100 : vector<8x1xf32> to vector<8x8xf32>
    %102 = arith.mulf %97, %101 : vector<8x8xf32>
    %103 = arith.truncf %102 : vector<8x8xf32> to vector<8x8xbf16>
    %cst_31 = arith.constant dense<0.000000e+00> : vector<8x32xf32>
    %104 = tpu.matmul %103, %90, %cst_31 {dimension_numbers = #tpu.dot_dimension_numbers<[1], [0], [0], [1], [0, 0, 1, 1], [], []>} : vector<8x8xbf16>, vector<8x32xbf16>, vector<8x32xf32> -> vector<8x32xf32>
    %c0_32 = arith.constant 0 : index
    %c96 = arith.constant 96 : index
    %105 = vector.load %arg26[%c0_32, %c96] : memref<8x128xf32, #tpu.memory_space<vmem>>, vector<8x32xf32>
    tpu.vector_store %arg26[%c0_32, %c96], %104 {strides = array<i32>} : memref<8x128xf32, #tpu.memory_space<vmem>>, vector<8x32xf32>,
    %c0_33 = arith.constant 0 : index
    %c0_34 = arith.constant 0 : index
    %106 = vector.load %arg26[%c0_33, %c0_34] : memref<8x128xf32, #tpu.memory_space<vmem>>, vector<8x128xf32>
    %107 = arith.truncf %106 : vector<8x128xf32> to vector<8x128xbf16>
    %c0_35 = arith.constant 0 : index
    %c0_36 = arith.constant 0 : index
    %c0_37 = arith.constant 0 : index
    %108 = vector.load %arg4[%c0_35, %c0_36, %c0_37] : memref<1x128x128xbf16, #tpu.memory_space<vmem>>, vector<1x128x128xbf16>
    %109 = vector.shape_cast %108 : vector<1x128x128xbf16> to vector<128x128xbf16>
    %cst_38 = arith.constant dense<0.000000e+00> : vector<8x128xf32>
    %110 = tpu.matmul %107, %109, %cst_38 {dimension_numbers = #tpu.dot_dimension_numbers<[1], [0], [0], [1], [0, 0, 1, 1], [], []>} : vector<8x128xbf16>, vector<128x128xbf16>, vector<8x128xf32> -> vector<8x128xf32>
    %c0_39 = arith.constant 0 : index
    %c0_40 = arith.constant 0 : index
    %c0_41 = arith.constant 0 : index
    %111 = vector.load %arg5[%c0_39, %c0_40, %c0_41] : memref<1x1x128xf32, #tpu.memory_space<vmem>>, vector<1x1x128xf32>
    %112 = vector.shape_cast %111 : vector<1x1x128xf32> to vector<1x128xf32>
    %113 = vector.broadcast %112 : vector<1x128xf32> to vector<8x128xf32>
    %114 = arith.addf %110, %113 : vector<8x128xf32>
    %115 = arith.addf %3, %114 : vector<8x128xf32>
    %c0_42 = arith.constant 0 : index
    %c0_43 = arith.constant 0 : index
    %c0_44 = arith.constant 0 : index
    %116 = vector.load %arg16[%c0_42, %c0_43, %c0_44] : memref<1x1x128xf32, #tpu.memory_space<vmem>>, vector<1x1x128xf32>
    %117 = vector.shape_cast %116 : vector<1x1x128xf32> to vector<1x128xf32>
    %c0_45 = arith.constant 0 : index
    %c0_46 = arith.constant 0 : index
    %c0_47 = arith.constant 0 : index
    %118 = vector.load %arg17[%c0_45, %c0_46, %c0_47] : memref<1x1x128xf32, #tpu.memory_space<vmem>>, vector<1x1x128xf32>
    %119 = vector.shape_cast %118 : vector<1x1x128xf32> to vector<1x128xf32>
    %cst_48 = arith.constant dense<0.000000e+00> : vector<8xf32>
    %120 = vector.multi_reduction <add>, %115, %cst_48 [1] : vector<8x128xf32> to vector<8xf32>
    %121 = vector.shape_cast %120 : vector<8xf32> to vector<8x1xf32>
    %cst_49 = arith.constant 1.280000e+02 : f32
    %122 = vector.broadcast %cst_49 : f32 to vector<8x1xf32>
    %123 = arith.divf %121, %122 : vector<8x1xf32>
    %124 = vector.broadcast %123 : vector<8x1xf32> to vector<8x128xf32>
    %125 = arith.subf %115, %124 : vector<8x128xf32>
    %126 = arith.mulf %125, %125 : vector<8x128xf32>
    %cst_50 = arith.constant dense<0.000000e+00> : vector<8xf32>
    %127 = vector.multi_reduction <add>, %126, %cst_50 [1] : vector<8x128xf32> to vector<8xf32>
    %128 = vector.shape_cast %127 : vector<8xf32> to vector<8x1xf32>
    %cst_51 = arith.constant 1.280000e+02 : f32
    %129 = vector.broadcast %cst_51 : f32 to vector<8x1xf32>
    %130 = arith.divf %128, %129 : vector<8x1xf32>
    %cst_52 = arith.constant 9.99999974E-6 : f32
    %131 = vector.broadcast %cst_52 : f32 to vector<8x1xf32>
    %132 = arith.addf %130, %131 : vector<8x1xf32>
    %133 = math.rsqrt %132 : vector<8x1xf32>
    %134 = vector.broadcast %133 : vector<8x1xf32> to vector<8x128xf32>
    %135 = arith.mulf %125, %134 : vector<8x128xf32>
    %136 = vector.broadcast %117 : vector<1x128xf32> to vector<8x128xf32>
    %137 = arith.mulf %135, %136 : vector<8x128xf32>
    %138 = vector.broadcast %119 : vector<1x128xf32> to vector<8x128xf32>
    %139 = arith.addf %137, %138 : vector<8x128xf32>
    %140 = arith.truncf %139 : vector<8x128xf32> to vector<8x128xbf16>
    %c0_53 = arith.constant 0 : index
    %c0_54 = arith.constant 0 : index
    %c0_55 = arith.constant 0 : index
    %141 = vector.load %arg6[%c0_53, %c0_54, %c0_55] : memref<1x128x128xbf16, #tpu.memory_space<vmem>>, vector<1x128x128xbf16>
    %142 = vector.shape_cast %141 : vector<1x128x128xbf16> to vector<128x128xbf16>
    %cst_56 = arith.constant dense<0.000000e+00> : vector<8x128xf32>
    %143 = tpu.matmul %140, %142, %cst_56 {dimension_numbers = #tpu.dot_dimension_numbers<[1], [0], [0], [1], [0, 0, 1, 1], [], []>} : vector<8x128xbf16>, vector<128x128xbf16>, vector<8x128xf32> -> vector<8x128xf32>
    %c0_57 = arith.constant 0 : index
    %c0_58 = arith.constant 0 : index
    %c0_59 = arith.constant 0 : index
    %144 = vector.load %arg7[%c0_57, %c0_58, %c0_59] : memref<1x1x128xf32, #tpu.memory_space<vmem>>, vector<1x1x128xf32>
    %145 = vector.shape_cast %144 : vector<1x1x128xf32> to vector<1x128xf32>
    %146 = vector.broadcast %145 : vector<1x128xf32> to vector<8x128xf32>
    %147 = arith.addf %143, %146 : vector<8x128xf32>
    %148 = arith.truncf %4 : vector<8x128xf32> to vector<8x128xbf16>
    %c0_60 = arith.constant 0 : index
    %c0_61 = arith.constant 0 : index
    %c0_62 = arith.constant 0 : index
    %149 = vector.load %arg8[%c0_60, %c0_61, %c0_62] : memref<1x128x256xbf16, #tpu.memory_space<vmem>>, vector<1x128x256xbf16>
    %150 = vector.shape_cast %149 : vector<1x128x256xbf16> to vector<128x256xbf16>
    %cst_63 = arith.constant dense<0.000000e+00> : vector<8x256xf32>
    %151 = tpu.matmul %148, %150, %cst_63 {dimension_numbers = #tpu.dot_dimension_numbers<[1], [0], [0], [1], [0, 0, 1, 1], [], []>} : vector<8x128xbf16>, vector<128x256xbf16>, vector<8x256xf32> -> vector<8x256xf32>
    %c0_64 = arith.constant 0 : index
    %c0_65 = arith.constant 0 : index
    %c0_66 = arith.constant 0 : index
    %152 = vector.load %arg9[%c0_64, %c0_65, %c0_66] : memref<1x1x256xf32, #tpu.memory_space<vmem>>, vector<1x1x256xf32>
    %153 = vector.shape_cast %152 : vector<1x1x256xf32> to vector<1x256xf32>
    %154 = vector.broadcast %153 : vector<1x256xf32> to vector<8x256xf32>
    %155 = arith.addf %151, %154 : vector<8x256xf32>
    %156 = vector.extract_strided_slice %155 {offsets = [0, 0], sizes = [8, 128], strides = [1, 1]} : vector<8x256xf32> to vector<8x128xf32>
    %157 = vector.extract_strided_slice %155 {offsets = [0, 128], sizes = [8, 128], strides = [1, 1]} : vector<8x256xf32> to vector<8x128xf32>
    %158 = vector.extract_strided_slice %147 {offsets = [0, 0], sizes = [8, 32], strides = [1, 1]} : vector<8x128xf32> to vector<8x32xf32>
    %159 = arith.truncf %158 : vector<8x32xf32> to vector<8x32xbf16>
    %160 = vector.extract_strided_slice %156 {offsets = [0, 0], sizes = [8, 32], strides = [1, 1]} : vector<8x128xf32> to vector<8x32xf32>
    %161 = arith.truncf %160 : vector<8x32xf32> to vector<8x32xbf16>
    %162 = vector.extract_strided_slice %157 {offsets = [0, 0], sizes = [8, 32], strides = [1, 1]} : vector<8x128xf32> to vector<8x32xf32>
    %163 = arith.truncf %162 : vector<8x32xf32> to vector<8x32xbf16>
    %cst_67 = arith.constant dense<0.000000e+00> : vector<8x8xf32>
    %164 = tpu.matmul %159, %161, %cst_67 {dimension_numbers = #tpu.dot_dimension_numbers<[1], [1], [0], [0], [0, 0, 1, 0], [], []>} : vector<8x32xbf16>, vector<8x32xbf16>, vector<8x8xf32> -> vector<8x8xf32>
    %cst_68 = arith.constant dense<0xFF800000> : vector<8xf32>
    %165 = vector.multi_reduction <maximumf>, %164, %cst_68 [1] : vector<8x8xf32> to vector<8xf32>
    %166 = vector.shape_cast %165 : vector<8xf32> to vector<8x1xf32>
    %167 = vector.broadcast %166 : vector<8x1xf32> to vector<8x8xf32>
    %168 = arith.subf %164, %167 : vector<8x8xf32>
    %169 = math.exp %168 : vector<8x8xf32>
    %cst_69 = arith.constant dense<0.000000e+00> : vector<8xf32>
    %170 = vector.multi_reduction <add>, %169, %cst_69 [1] : vector<8x8xf32> to vector<8xf32>
    %171 = vector.shape_cast %170 : vector<8xf32> to vector<8x1xf32>
    %172 = tpu.reciprocal %171 {approx = true} : vector<8x1xf32> -> vector<8x1xf32>
    %173 = vector.broadcast %172 : vector<8x1xf32> to vector<8x8xf32>
    %174 = arith.mulf %169, %173 : vector<8x8xf32>
    %175 = arith.truncf %174 : vector<8x8xf32> to vector<8x8xbf16>
    %cst_70 = arith.constant dense<0.000000e+00> : vector<8x32xf32>
    %176 = tpu.matmul %175, %163, %cst_70 {dimension_numbers = #tpu.dot_dimension_numbers<[1], [0], [0], [1], [0, 0, 1, 1], [], []>} : vector<8x8xbf16>, vector<8x32xbf16>, vector<8x32xf32> -> vector<8x32xf32>
    %c0_71 = arith.constant 0 : index
    %c0_72 = arith.constant 0 : index
    %177 = vector.load %arg26[%c0_71, %c0_72] : memref<8x128xf32, #tpu.memory_space<vmem>>, vector<8x32xf32>
    tpu.vector_store %arg26[%c0_71, %c0_72], %176 {strides = array<i32>} : memref<8x128xf32, #tpu.memory_space<vmem>>, vector<8x32xf32>,
    %178 = vector.extract_strided_slice %147 {offsets = [0, 32], sizes = [8, 32], strides = [1, 1]} : vector<8x128xf32> to vector<8x32xf32>
    %179 = arith.truncf %178 : vector<8x32xf32> to vector<8x32xbf16>
    %180 = vector.extract_strided_slice %156 {offsets = [0, 32], sizes = [8, 32], strides = [1, 1]} : vector<8x128xf32> to vector<8x32xf32>
    %181 = arith.truncf %180 : vector<8x32xf32> to vector<8x32xbf16>
    %182 = vector.extract_strided_slice %157 {offsets = [0, 32], sizes = [8, 32], strides = [1, 1]} : vector<8x128xf32> to vector<8x32xf32>
    %183 = arith.truncf %182 : vector<8x32xf32> to vector<8x32xbf16>
    %cst_73 = arith.constant dense<0.000000e+00> : vector<8x8xf32>
    %184 = tpu.matmul %179, %181, %cst_73 {dimension_numbers = #tpu.dot_dimension_numbers<[1], [1], [0], [0], [0, 0, 1, 0], [], []>} : vector<8x32xbf16>, vector<8x32xbf16>, vector<8x8xf32> -> vector<8x8xf32>
    %cst_74 = arith.constant dense<0xFF800000> : vector<8xf32>
    %185 = vector.multi_reduction <maximumf>, %184, %cst_74 [1] : vector<8x8xf32> to vector<8xf32>
    %186 = vector.shape_cast %185 : vector<8xf32> to vector<8x1xf32>
    %187 = vector.broadcast %186 : vector<8x1xf32> to vector<8x8xf32>
    %188 = arith.subf %184, %187 : vector<8x8xf32>
    %189 = math.exp %188 : vector<8x8xf32>
    %cst_75 = arith.constant dense<0.000000e+00> : vector<8xf32>
    %190 = vector.multi_reduction <add>, %189, %cst_75 [1] : vector<8x8xf32> to vector<8xf32>
    %191 = vector.shape_cast %190 : vector<8xf32> to vector<8x1xf32>
    %192 = tpu.reciprocal %191 {approx = true} : vector<8x1xf32> -> vector<8x1xf32>
    %193 = vector.broadcast %192 : vector<8x1xf32> to vector<8x8xf32>
    %194 = arith.mulf %189, %193 : vector<8x8xf32>
    %195 = arith.truncf %194 : vector<8x8xf32> to vector<8x8xbf16>
    %cst_76 = arith.constant dense<0.000000e+00> : vector<8x32xf32>
    %196 = tpu.matmul %195, %183, %cst_76 {dimension_numbers = #tpu.dot_dimension_numbers<[1], [0], [0], [1], [0, 0, 1, 1], [], []>} : vector<8x8xbf16>, vector<8x32xbf16>, vector<8x32xf32> -> vector<8x32xf32>
    %c0_77 = arith.constant 0 : index
    %c32_78 = arith.constant 32 : index
    %197 = vector.load %arg26[%c0_77, %c32_78] : memref<8x128xf32, #tpu.memory_space<vmem>>, vector<8x32xf32>
    tpu.vector_store %arg26[%c0_77, %c32_78], %196 {strides = array<i32>} : memref<8x128xf32, #tpu.memory_space<vmem>>, vector<8x32xf32>,
    %198 = vector.extract_strided_slice %147 {offsets = [0, 64], sizes = [8, 32], strides = [1, 1]} : vector<8x128xf32> to vector<8x32xf32>
    %199 = arith.truncf %198 : vector<8x32xf32> to vector<8x32xbf16>
    %200 = vector.extract_strided_slice %156 {offsets = [0, 64], sizes = [8, 32], strides = [1, 1]} : vector<8x128xf32> to vector<8x32xf32>
    %201 = arith.truncf %200 : vector<8x32xf32> to vector<8x32xbf16>
    %202 = vector.extract_strided_slice %157 {offsets = [0, 64], sizes = [8, 32], strides = [1, 1]} : vector<8x128xf32> to vector<8x32xf32>
    %203 = arith.truncf %202 : vector<8x32xf32> to vector<8x32xbf16>
    %cst_79 = arith.constant dense<0.000000e+00> : vector<8x8xf32>
    %204 = tpu.matmul %199, %201, %cst_79 {dimension_numbers = #tpu.dot_dimension_numbers<[1], [1], [0], [0], [0, 0, 1, 0], [], []>} : vector<8x32xbf16>, vector<8x32xbf16>, vector<8x8xf32> -> vector<8x8xf32>
    %cst_80 = arith.constant dense<0xFF800000> : vector<8xf32>
    %205 = vector.multi_reduction <maximumf>, %204, %cst_80 [1] : vector<8x8xf32> to vector<8xf32>
    %206 = vector.shape_cast %205 : vector<8xf32> to vector<8x1xf32>
    %207 = vector.broadcast %206 : vector<8x1xf32> to vector<8x8xf32>
    %208 = arith.subf %204, %207 : vector<8x8xf32>
    %209 = math.exp %208 : vector<8x8xf32>
    %cst_81 = arith.constant dense<0.000000e+00> : vector<8xf32>
    %210 = vector.multi_reduction <add>, %209, %cst_81 [1] : vector<8x8xf32> to vector<8xf32>
    %211 = vector.shape_cast %210 : vector<8xf32> to vector<8x1xf32>
    %212 = tpu.reciprocal %211 {approx = true} : vector<8x1xf32> -> vector<8x1xf32>
    %213 = vector.broadcast %212 : vector<8x1xf32> to vector<8x8xf32>
    %214 = arith.mulf %209, %213 : vector<8x8xf32>
    %215 = arith.truncf %214 : vector<8x8xf32> to vector<8x8xbf16>
    %cst_82 = arith.constant dense<0.000000e+00> : vector<8x32xf32>
    %216 = tpu.matmul %215, %203, %cst_82 {dimension_numbers = #tpu.dot_dimension_numbers<[1], [0], [0], [1], [0, 0, 1, 1], [], []>} : vector<8x8xbf16>, vector<8x32xbf16>, vector<8x32xf32> -> vector<8x32xf32>
    %c0_83 = arith.constant 0 : index
    %c64_84 = arith.constant 64 : index
    %217 = vector.load %arg26[%c0_83, %c64_84] : memref<8x128xf32, #tpu.memory_space<vmem>>, vector<8x32xf32>
    tpu.vector_store %arg26[%c0_83, %c64_84], %216 {strides = array<i32>} : memref<8x128xf32, #tpu.memory_space<vmem>>, vector<8x32xf32>,
    %218 = vector.extract_strided_slice %147 {offsets = [0, 96], sizes = [8, 32], strides = [1, 1]} : vector<8x128xf32> to vector<8x32xf32>
    %219 = arith.truncf %218 : vector<8x32xf32> to vector<8x32xbf16>
    %220 = vector.extract_strided_slice %156 {offsets = [0, 96], sizes = [8, 32], strides = [1, 1]} : vector<8x128xf32> to vector<8x32xf32>
    %221 = arith.truncf %220 : vector<8x32xf32> to vector<8x32xbf16>
    %222 = vector.extract_strided_slice %157 {offsets = [0, 96], sizes = [8, 32], strides = [1, 1]} : vector<8x128xf32> to vector<8x32xf32>
    %223 = arith.truncf %222 : vector<8x32xf32> to vector<8x32xbf16>
    %cst_85 = arith.constant dense<0.000000e+00> : vector<8x8xf32>
    %224 = tpu.matmul %219, %221, %cst_85 {dimension_numbers = #tpu.dot_dimension_numbers<[1], [1], [0], [0], [0, 0, 1, 0], [], []>} : vector<8x32xbf16>, vector<8x32xbf16>, vector<8x8xf32> -> vector<8x8xf32>
    %cst_86 = arith.constant dense<0xFF800000> : vector<8xf32>
    %225 = vector.multi_reduction <maximumf>, %224, %cst_86 [1] : vector<8x8xf32> to vector<8xf32>
    %226 = vector.shape_cast %225 : vector<8xf32> to vector<8x1xf32>
    %227 = vector.broadcast %226 : vector<8x1xf32> to vector<8x8xf32>
    %228 = arith.subf %224, %227 : vector<8x8xf32>
    %229 = math.exp %228 : vector<8x8xf32>
    %cst_87 = arith.constant dense<0.000000e+00> : vector<8xf32>
    %230 = vector.multi_reduction <add>, %229, %cst_87 [1] : vector<8x8xf32> to vector<8xf32>
    %231 = vector.shape_cast %230 : vector<8xf32> to vector<8x1xf32>
    %232 = tpu.reciprocal %231 {approx = true} : vector<8x1xf32> -> vector<8x1xf32>
    %233 = vector.broadcast %232 : vector<8x1xf32> to vector<8x8xf32>
    %234 = arith.mulf %229, %233 : vector<8x8xf32>
    %235 = arith.truncf %234 : vector<8x8xf32> to vector<8x8xbf16>
    %cst_88 = arith.constant dense<0.000000e+00> : vector<8x32xf32>
    %236 = tpu.matmul %235, %223, %cst_88 {dimension_numbers = #tpu.dot_dimension_numbers<[1], [0], [0], [1], [0, 0, 1, 1], [], []>} : vector<8x8xbf16>, vector<8x32xbf16>, vector<8x32xf32> -> vector<8x32xf32>
    %c0_89 = arith.constant 0 : index
    %c96_90 = arith.constant 96 : index
    %237 = vector.load %arg26[%c0_89, %c96_90] : memref<8x128xf32, #tpu.memory_space<vmem>>, vector<8x32xf32>
    tpu.vector_store %arg26[%c0_89, %c96_90], %236 {strides = array<i32>} : memref<8x128xf32, #tpu.memory_space<vmem>>, vector<8x32xf32>,
    %c0_91 = arith.constant 0 : index
    %c0_92 = arith.constant 0 : index
    %238 = vector.load %arg26[%c0_91, %c0_92] : memref<8x128xf32, #tpu.memory_space<vmem>>, vector<8x128xf32>
    %239 = arith.truncf %238 : vector<8x128xf32> to vector<8x128xbf16>
    %c0_93 = arith.constant 0 : index
    %c0_94 = arith.constant 0 : index
    %c0_95 = arith.constant 0 : index
    %240 = vector.load %arg10[%c0_93, %c0_94, %c0_95] : memref<1x128x128xbf16, #tpu.memory_space<vmem>>, vector<1x128x128xbf16>
    %241 = vector.shape_cast %240 : vector<1x128x128xbf16> to vector<128x128xbf16>
    %cst_96 = arith.constant dense<0.000000e+00> : vector<8x128xf32>
    %242 = tpu.matmul %239, %241, %cst_96 {dimension_numbers = #tpu.dot_dimension_numbers<[1], [0], [0], [1], [0, 0, 1, 1], [], []>} : vector<8x128xbf16>, vector<128x128xbf16>, vector<8x128xf32> -> vector<8x128xf32>
    %c0_97 = arith.constant 0 : index
    %c0_98 = arith.constant 0 : index
    %c0_99 = arith.constant 0 : index
    %243 = vector.load %arg11[%c0_97, %c0_98, %c0_99] : memref<1x1x128xf32, #tpu.memory_space<vmem>>, vector<1x1x128xf32>
    %244 = vector.shape_cast %243 : vector<1x1x128xf32> to vector<1x128xf32>
    %245 = vector.broadcast %244 : vector<1x128xf32> to vector<8x128xf32>
    %246 = arith.addf %242, %245 : vector<8x128xf32>
    %247 = arith.addf %139, %246 : vector<8x128xf32>
    %c0_100 = arith.constant 0 : index
    %c0_101 = arith.constant 0 : index
    %c0_102 = arith.constant 0 : index
    %248 = vector.load %arg18[%c0_100, %c0_101, %c0_102] : memref<1x1x128xf32, #tpu.memory_space<vmem>>, vector<1x1x128xf32>
    %249 = vector.shape_cast %248 : vector<1x1x128xf32> to vector<1x128xf32>
    %c0_103 = arith.constant 0 : index
    %c0_104 = arith.constant 0 : index
    %c0_105 = arith.constant 0 : index
    %250 = vector.load %arg19[%c0_103, %c0_104, %c0_105] : memref<1x1x128xf32, #tpu.memory_space<vmem>>, vector<1x1x128xf32>
    %251 = vector.shape_cast %250 : vector<1x1x128xf32> to vector<1x128xf32>
    %cst_106 = arith.constant dense<0.000000e+00> : vector<8xf32>
    %252 = vector.multi_reduction <add>, %247, %cst_106 [1] : vector<8x128xf32> to vector<8xf32>
    %253 = vector.shape_cast %252 : vector<8xf32> to vector<8x1xf32>
    %cst_107 = arith.constant 1.280000e+02 : f32
    %254 = vector.broadcast %cst_107 : f32 to vector<8x1xf32>
    %255 = arith.divf %253, %254 : vector<8x1xf32>
    %256 = vector.broadcast %255 : vector<8x1xf32> to vector<8x128xf32>
    %257 = arith.subf %247, %256 : vector<8x128xf32>
    %258 = arith.mulf %257, %257 : vector<8x128xf32>
    %cst_108 = arith.constant dense<0.000000e+00> : vector<8xf32>
    %259 = vector.multi_reduction <add>, %258, %cst_108 [1] : vector<8x128xf32> to vector<8xf32>
    %260 = vector.shape_cast %259 : vector<8xf32> to vector<8x1xf32>
    %cst_109 = arith.constant 1.280000e+02 : f32
    %261 = vector.broadcast %cst_109 : f32 to vector<8x1xf32>
    %262 = arith.divf %260, %261 : vector<8x1xf32>
    %cst_110 = arith.constant 9.99999974E-6 : f32
    %263 = vector.broadcast %cst_110 : f32 to vector<8x1xf32>
    %264 = arith.addf %262, %263 : vector<8x1xf32>
    %265 = math.rsqrt %264 : vector<8x1xf32>
    %266 = vector.broadcast %265 : vector<8x1xf32> to vector<8x128xf32>
    %267 = arith.mulf %257, %266 : vector<8x128xf32>
    %268 = vector.broadcast %249 : vector<1x128xf32> to vector<8x128xf32>
    %269 = arith.mulf %267, %268 : vector<8x128xf32>
    %270 = vector.broadcast %251 : vector<1x128xf32> to vector<8x128xf32>
    %271 = arith.addf %269, %270 : vector<8x128xf32>
    %272 = arith.truncf %271 : vector<8x128xf32> to vector<8x128xbf16>
    %c0_111 = arith.constant 0 : index
    %c0_112 = arith.constant 0 : index
    %c0_113 = arith.constant 0 : index
    %273 = vector.load %arg12[%c0_111, %c0_112, %c0_113] : memref<1x128x2048xbf16, #tpu.memory_space<vmem>>, vector<1x128x2048xbf16>
    %274 = vector.shape_cast %273 : vector<1x128x2048xbf16> to vector<128x2048xbf16>
    %cst_114 = arith.constant dense<0.000000e+00> : vector<8x2048xf32>
    %275 = tpu.matmul %272, %274, %cst_114 {dimension_numbers = #tpu.dot_dimension_numbers<[1], [0], [0], [1], [0, 0, 1, 1], [], []>} : vector<8x128xbf16>, vector<128x2048xbf16>, vector<8x2048xf32> -> vector<8x2048xf32>
    %c0_115 = arith.constant 0 : index
    %c0_116 = arith.constant 0 : index
    %c0_117 = arith.constant 0 : index
    %276 = vector.load %arg13[%c0_115, %c0_116, %c0_117] : memref<1x1x2048xf32, #tpu.memory_space<vmem>>, vector<1x1x2048xf32>
    %277 = vector.shape_cast %276 : vector<1x1x2048xf32> to vector<1x2048xf32>
    %278 = vector.broadcast %277 : vector<1x2048xf32> to vector<8x2048xf32>
    %279 = arith.addf %275, %278 : vector<8x2048xf32>
    %cst_118 = arith.constant 0.000000e+00 : f32
    %280 = vector.broadcast %cst_118 : f32 to vector<8x2048xf32>
    %281 = arith.maximumf %279, %280 : vector<8x2048xf32>
    %282 = arith.truncf %281 : vector<8x2048xf32> to vector<8x2048xbf16>
    %c0_119 = arith.constant 0 : index
    %c0_120 = arith.constant 0 : index
    %c0_121 = arith.constant 0 : index
    %283 = vector.load %arg14[%c0_119, %c0_120, %c0_121] : memref<1x2048x128xbf16, #tpu.memory_space<vmem>>, vector<1x2048x128xbf16>
    %284 = vector.shape_cast %283 : vector<1x2048x128xbf16> to vector<2048x128xbf16>
    %cst_122 = arith.constant dense<0.000000e+00> : vector<8x128xf32>
    %285 = tpu.matmul %282, %284, %cst_122 {dimension_numbers = #tpu.dot_dimension_numbers<[1], [0], [0], [1], [0, 0, 1, 1], [], []>} : vector<8x2048xbf16>, vector<2048x128xbf16>, vector<8x128xf32> -> vector<8x128xf32>
    %c0_123 = arith.constant 0 : index
    %c0_124 = arith.constant 0 : index
    %c0_125 = arith.constant 0 : index
    %286 = vector.load %arg15[%c0_123, %c0_124, %c0_125] : memref<1x1x128xf32, #tpu.memory_space<vmem>>, vector<1x1x128xf32>
    %287 = vector.shape_cast %286 : vector<1x1x128xf32> to vector<1x128xf32>
    %288 = vector.broadcast %287 : vector<1x128xf32> to vector<8x128xf32>
    %289 = arith.addf %285, %288 : vector<8x128xf32>
    %290 = arith.addf %271, %289 : vector<8x128xf32>
    %c0_126 = arith.constant 0 : index
    %c0_127 = arith.constant 0 : index
    %c0_128 = arith.constant 0 : index
    %291 = vector.load %arg20[%c0_126, %c0_127, %c0_128] : memref<1x1x128xf32, #tpu.memory_space<vmem>>, vector<1x1x128xf32>
    %292 = vector.shape_cast %291 : vector<1x1x128xf32> to vector<1x128xf32>
    %c0_129 = arith.constant 0 : index
    %c0_130 = arith.constant 0 : index
    %c0_131 = arith.constant 0 : index
    %293 = vector.load %arg21[%c0_129, %c0_130, %c0_131] : memref<1x1x128xf32, #tpu.memory_space<vmem>>, vector<1x1x128xf32>
    %294 = vector.shape_cast %293 : vector<1x1x128xf32> to vector<1x128xf32>
    %cst_132 = arith.constant dense<0.000000e+00> : vector<8xf32>
    %295 = vector.multi_reduction <add>, %290, %cst_132 [1] : vector<8x128xf32> to vector<8xf32>
    %296 = vector.shape_cast %295 : vector<8xf32> to vector<8x1xf32>
    %cst_133 = arith.constant 1.280000e+02 : f32
    %297 = vector.broadcast %cst_133 : f32 to vector<8x1xf32>
    %298 = arith.divf %296, %297 : vector<8x1xf32>
    %299 = vector.broadcast %298 : vector<8x1xf32> to vector<8x128xf32>
    %300 = arith.subf %290, %299 : vector<8x128xf32>
    %301 = arith.mulf %300, %300 : vector<8x128xf32>
    %cst_134 = arith.constant dense<0.000000e+00> : vector<8xf32>
    %302 = vector.multi_reduction <add>, %301, %cst_134 [1] : vector<8x128xf32> to vector<8xf32>
    %303 = vector.shape_cast %302 : vector<8xf32> to vector<8x1xf32>
    %cst_135 = arith.constant 1.280000e+02 : f32
    %304 = vector.broadcast %cst_135 : f32 to vector<8x1xf32>
    %305 = arith.divf %303, %304 : vector<8x1xf32>
    %cst_136 = arith.constant 9.99999974E-6 : f32
    %306 = vector.broadcast %cst_136 : f32 to vector<8x1xf32>
    %307 = arith.addf %305, %306 : vector<8x1xf32>
    %308 = math.rsqrt %307 : vector<8x1xf32>
    %309 = vector.broadcast %308 : vector<8x1xf32> to vector<8x128xf32>
    %310 = arith.mulf %300, %309 : vector<8x128xf32>
    %311 = vector.broadcast %292 : vector<1x128xf32> to vector<8x128xf32>
    %312 = arith.mulf %310, %311 : vector<8x128xf32>
    %313 = vector.broadcast %294 : vector<1x128xf32> to vector<8x128xf32>
    %314 = arith.addf %312, %313 : vector<8x128xf32>
    %c0_137 = arith.constant 0 : index
    %c0_138 = arith.constant 0 : index
    %315 = vector.load %arg25[%c0_137, %c0_138] : memref<8x128xf32, #tpu.memory_space<vmem>>, vector<8x128xf32>
    tpu.vector_store %arg25[%c0_137, %c0_138], %314 {strides = array<i32>} : memref<8x128xf32, #tpu.memory_space<vmem>>, vector<8x128xf32>,
    %c1_i32 = arith.constant 1 : i32
    %316 = arith.cmpi eq, %arg0, %c1_i32 : i32
    %317 = arith.extui %316 : i1 to i32
    %c0_i32_139 = arith.constant 0 : i32
    %318 = arith.cmpi ne, %317, %c0_i32_139 : i32
    scf.if %318 {
      %c0_140 = arith.constant 0 : index
      %c0_141 = arith.constant 0 : index
      %319 = vector.load %arg22[%c0_140, %c0_141] : memref<128x128xf32, #tpu.memory_space<vmem>>, vector<128x128xf32>
      %cst_142 = arith.constant dense<0.000000e+00> : vector<8x128xf32>
      %320 = tpu.matmul %314, %319, %cst_142 {dimension_numbers = #tpu.dot_dimension_numbers<[1], [0], [0], [1], [0, 0, 1, 1], [], []>} : vector<8x128xf32>, vector<128x128xf32>, vector<8x128xf32> -> vector<8x128xf32>
      %c0_143 = arith.constant 0 : index
      %c0_144 = arith.constant 0 : index
      %321 = vector.load %arg23[%c0_143, %c0_144] : memref<1x128xf32, #tpu.memory_space<vmem>>, vector<1x128xf32>
      %322 = vector.broadcast %321 : vector<1x128xf32> to vector<8x128xf32>
      %323 = arith.addf %320, %322 : vector<8x128xf32>
      %cst_145 = arith.constant dense<0xFF800000> : vector<8xf32>
      %324 = vector.multi_reduction <maximumf>, %323, %cst_145 [1] : vector<8x128xf32> to vector<8xf32>
      %325 = vector.shape_cast %324 : vector<8xf32> to vector<8x1xf32>
      %326 = vector.broadcast %325 : vector<8x1xf32> to vector<8x128xf32>
      %327 = arith.subf %323, %326 : vector<8x128xf32>
      %328 = math.exp %327 : vector<8x128xf32>
      %cst_146 = arith.constant dense<0.000000e+00> : vector<8xf32>
      %329 = vector.multi_reduction <add>, %328, %cst_146 [1] : vector<8x128xf32> to vector<8xf32>
      %330 = vector.shape_cast %329 : vector<8xf32> to vector<8x1xf32>
      %331 = vector.broadcast %330 : vector<8x1xf32> to vector<8x128xf32>
      %332 = arith.divf %328, %331 : vector<8x128xf32>
      %c0_147 = arith.constant 0 : index
      %c0_148 = arith.constant 0 : index
      %333 = vector.load %arg24[%c0_147, %c0_148] : memref<8x128xf32, #tpu.memory_space<vmem>>, vector<8x128xf32>
      tpu.vector_store %arg24[%c0_147, %c0_148], %332 {strides = array<i32>} : memref<8x128xf32, #tpu.memory_space<vmem>>, vector<8x128xf32>,
    } else {
    }
    return
  }
  func.func @transform_0(%arg0: i32) -> (i32, i32) {
    %c0_i32 = arith.constant 0 : i32
    %c0_i32_0 = arith.constant 0 : i32
    %c0_i32_1 = arith.constant 0 : i32
    return %c0_i32, %c0_i32_0 : i32, i32
  }
  func.func @transform_1(%arg0: i32) -> (i32, i32, i32) {
    %c0_i32 = arith.constant 0 : i32
    %c0_i32_0 = arith.constant 0 : i32
    %c0_i32_1 = arith.constant 0 : i32
    return %arg0, %c0_i32, %c0_i32_0 : i32, i32, i32
  }
  func.func @transform_2(%arg0: i32) -> (i32, i32, i32) {
    %c0_i32 = arith.constant 0 : i32
    %c0_i32_0 = arith.constant 0 : i32
    %c0_i32_1 = arith.constant 0 : i32
    return %arg0, %c0_i32, %c0_i32_0 : i32, i32, i32
  }
  func.func @transform_3(%arg0: i32) -> (i32, i32, i32) {
    %c0_i32 = arith.constant 0 : i32
    %c0_i32_0 = arith.constant 0 : i32
    %c0_i32_1 = arith.constant 0 : i32
    return %arg0, %c0_i32, %c0_i32_0 : i32, i32, i32
  }
  func.func @transform_4(%arg0: i32) -> (i32, i32, i32) {
    %c0_i32 = arith.constant 0 : i32
    %c0_i32_0 = arith.constant 0 : i32
    %c0_i32_1 = arith.constant 0 : i32
    return %arg0, %c0_i32, %c0_i32_0 : i32, i32, i32
  }
  func.func @transform_5(%arg0: i32) -> (i32, i32, i32) {
    %c0_i32 = arith.constant 0 : i32
    %c0_i32_0 = arith.constant 0 : i32
    %c0_i32_1 = arith.constant 0 : i32
    return %arg0, %c0_i32, %c0_i32_0 : i32, i32, i32
  }
  func.func @transform_6(%arg0: i32) -> (i32, i32, i32) {
    %c0_i32 = arith.constant 0 : i32
    %c0_i32_0 = arith.constant 0 : i32
    %c0_i32_1 = arith.constant 0 : i32
    return %arg0, %c0_i32, %c0_i32_0 : i32, i32, i32
  }
  func.func @transform_7(%arg0: i32) -> (i32, i32, i32) {
    %c0_i32 = arith.constant 0 : i32
    %c0_i32_0 = arith.constant 0 : i32
    %c0_i32_1 = arith.constant 0 : i32
    return %arg0, %c0_i32, %c0_i32_0 : i32, i32, i32
  }
  func.func @transform_8(%arg0: i32) -> (i32, i32, i32) {
    %c0_i32 = arith.constant 0 : i32
    %c0_i32_0 = arith.constant 0 : i32
    %c0_i32_1 = arith.constant 0 : i32
    return %arg0, %c0_i32, %c0_i32_0 : i32, i32, i32
  }
  func.func @transform_9(%arg0: i32) -> (i32, i32, i32) {
    %c0_i32 = arith.constant 0 : i32
    %c0_i32_0 = arith.constant 0 : i32
    %c0_i32_1 = arith.constant 0 : i32
    return %arg0, %c0_i32, %c0_i32_0 : i32, i32, i32
  }
  func.func @transform_10(%arg0: i32) -> (i32, i32, i32) {
    %c0_i32 = arith.constant 0 : i32
    %c0_i32_0 = arith.constant 0 : i32
    %c0_i32_1 = arith.constant 0 : i32
    return %arg0, %c0_i32, %c0_i32_0 : i32, i32, i32
  }
  func.func @transform_11(%arg0: i32) -> (i32, i32, i32) {
    %c0_i32 = arith.constant 0 : i32
    %c0_i32_0 = arith.constant 0 : i32
    %c0_i32_1 = arith.constant 0 : i32
    return %arg0, %c0_i32, %c0_i32_0 : i32, i32, i32
  }
  func.func @transform_12(%arg0: i32) -> (i32, i32, i32) {
    %c0_i32 = arith.constant 0 : i32
    %c0_i32_0 = arith.constant 0 : i32
    %c0_i32_1 = arith.constant 0 : i32
    return %arg0, %c0_i32, %c0_i32_0 : i32, i32, i32
  }
  func.func @transform_13(%arg0: i32) -> (i32, i32, i32) {
    %c0_i32 = arith.constant 0 : i32
    %c0_i32_0 = arith.constant 0 : i32
    %c0_i32_1 = arith.constant 0 : i32
    return %arg0, %c0_i32, %c0_i32_0 : i32, i32, i32
  }
  func.func @transform_14(%arg0: i32) -> (i32, i32, i32) {
    %c0_i32 = arith.constant 0 : i32
    %c0_i32_0 = arith.constant 0 : i32
    %c0_i32_1 = arith.constant 0 : i32
    return %arg0, %c0_i32, %c0_i32_0 : i32, i32, i32
  }
  func.func @transform_15(%arg0: i32) -> (i32, i32, i32) {
    %c0_i32 = arith.constant 0 : i32
    %c0_i32_0 = arith.constant 0 : i32
    %c0_i32_1 = arith.constant 0 : i32
    return %arg0, %c0_i32, %c0_i32_0 : i32, i32, i32
  }
  func.func @transform_16(%arg0: i32) -> (i32, i32, i32) {
    %c0_i32 = arith.constant 0 : i32
    %c0_i32_0 = arith.constant 0 : i32
    %c0_i32_1 = arith.constant 0 : i32
    return %arg0, %c0_i32, %c0_i32_0 : i32, i32, i32
  }
  func.func @transform_17(%arg0: i32) -> (i32, i32, i32) {
    %c0_i32 = arith.constant 0 : i32
    %c0_i32_0 = arith.constant 0 : i32
    %c0_i32_1 = arith.constant 0 : i32
    return %arg0, %c0_i32, %c0_i32_0 : i32, i32, i32
  }
  func.func @transform_18(%arg0: i32) -> (i32, i32, i32) {
    %c0_i32 = arith.constant 0 : i32
    %c0_i32_0 = arith.constant 0 : i32
    %c0_i32_1 = arith.constant 0 : i32
    return %arg0, %c0_i32, %c0_i32_0 : i32, i32, i32
  }
  func.func @transform_19(%arg0: i32) -> (i32, i32, i32) {
    %c0_i32 = arith.constant 0 : i32
    %c0_i32_0 = arith.constant 0 : i32
    %c0_i32_1 = arith.constant 0 : i32
    return %arg0, %c0_i32, %c0_i32_0 : i32, i32, i32
  }
  func.func @transform_20(%arg0: i32) -> (i32, i32, i32) {
    %c0_i32 = arith.constant 0 : i32
    %c0_i32_0 = arith.constant 0 : i32
    %c0_i32_1 = arith.constant 0 : i32
    return %arg0, %c0_i32, %c0_i32_0 : i32, i32, i32
  }
  func.func @transform_21(%arg0: i32) -> (i32, i32) {
    %c0_i32 = arith.constant 0 : i32
    %c0_i32_0 = arith.constant 0 : i32
    %c0_i32_1 = arith.constant 0 : i32
    return %c0_i32, %c0_i32_0 : i32, i32
  }
  func.func @transform_22(%arg0: i32) -> (i32, i32) {
    %c0_i32 = arith.constant 0 : i32
    %c0_i32_0 = arith.constant 0 : i32
    %c0_i32_1 = arith.constant 0 : i32
    return %c0_i32, %c0_i32_0 : i32, i32
  }
  func.func @transform_23(%arg0: i32) -> (i32, i32) {
    %c0_i32 = arith.constant 0 : i32
    %c0_i32_0 = arith.constant 0 : i32
    %c0_i32_1 = arith.constant 0 : i32
    return %c0_i32, %c0_i32_0 : i32, i32
  }
}

</mosaic_0001>

<llo_original>
// kernel: transformer_classifier_forward.1
$region0: #{transformer_classifier_forward.1}
  #allocation0 [shape = 'u32[]', space=smem, size = 0x4, offset = 0x4, fixed_abs, tag = 'smem constant byte address 0x4 - core index']
  #allocation1 [shape = 'u32[144,128]{1,0:T(1,128)}', space=vmem, size = 0x12000, scoped, tag = 'internal scratch']
  #allocation2 [shape = 'f32[8,128]{1,0:T(8,128)}', space=vmem, size = 0x1000, scoped, tag = 'scratch operand']
  #allocation3 [shape = 'f32[8,128]{1,0:T(8,128)}', space=vmem, size = 0x1000, scoped, tag = 'scratch operand']
  %s0 = inlined_call_operand.vmem [shape: f32[8,128], index: 0, kind: input, shape index: {}]
  %s1 = inlined_call_operand.hbm [shape: bf16[2,128,384], index: 1, kind: input, shape index: {}]
  %s2 = inlined_call_operand.vmem [shape: f32[2,1,384], index: 2, kind: input, shape index: {}]
  %s3 = inlined_call_operand.vmem [shape: bf16[2,128,128], index: 3, kind: input, shape index: {}]
  %s4 = inlined_call_operand.hbm [shape: f32[2,1,128], index: 4, kind: input, shape index: {}]
  %s5 = inlined_call_operand.hbm [shape: bf16[2,128,128], index: 5, kind: input, shape index: {}]
  %s6 = inlined_call_operand.hbm [shape: f32[2,1,128], index: 6, kind: input, shape index: {}]
  %s7 = inlined_call_operand.hbm [shape: bf16[2,128,256], index: 7, kind: input, shape index: {}]
  %s8 = inlined_call_operand.hbm [shape: f32[2,1,256], index: 8, kind: input, shape index: {}]
  %s9 = inlined_call_operand.hbm [shape: bf16[2,128,128], index: 9, kind: input, shape index: {}]
  %s10 = inlined_call_operand.hbm [shape: f32[2,1,128], index: 10, kind: input, shape index: {}]
  %s11 = inlined_call_operand.hbm [shape: bf16[2,128,2048], index: 11, kind: input, shape index: {}]
  %s12 = inlined_call_operand.vmem [shape: f32[2,1,2048], index: 12, kind: input, shape index: {}]
  %s13 = inlined_call_operand.hbm [shape: bf16[2,2048,128], index: 13, kind: input, shape index: {}]
  %s14 = inlined_call_operand.hbm [shape: f32[2,1,128], index: 14, kind: input, shape index: {}]
  %s15 = inlined_call_operand.hbm [shape: f32[2,1,128], index: 15, kind: input, shape index: {}]
  %s16 = inlined_call_operand.hbm [shape: f32[2,1,128], index: 16, kind: input, shape index: {}]
  %s17 = inlined_call_operand.hbm [shape: f32[2,1,128], index: 17, kind: input, shape index: {}]
  %s18 = inlined_call_operand.hbm [shape: f32[2,1,128], index: 18, kind: input, shape index: {}]
  %s19 = inlined_call_operand.hbm [shape: f32[2,1,128], index: 19, kind: input, shape index: {}]
  %s20 = inlined_call_operand.hbm [shape: f32[2,1,128], index: 20, kind: input, shape index: {}]
  %s21 = inlined_call_operand.hbm [shape: f32[128,128], index: 21, kind: input, shape index: {}]
  %s22 = inlined_call_operand.hbm [shape: f32[1,128], index: 22, kind: input, shape index: {}]
  %s23 = inlined_call_operand.hbm [shape: f32[8,128], index: 23, kind: output, shape index: {}]
  %s24 = sld [smem:[#allocation0]]
  $region209: #{transformer_classifier_forward.1} parent=0
    _
  %s26 = ssub.s32 1, %s24
  %s27 = scalar_select 0, %s26, %s24
  $region1: #{transformer_classifier_forward.1} parent=0
    #allocation4 [shape = 'u8[196608]{0}', space=vmem, size = 0x30000, scoped, tag = 'input window, operand 1']
    #allocation5 [shape = 's32[2]{0}', space=sflag, size = 0x8, scoped, tag = 'scoped memory for transformer_classifier_forward.1']
    #allocation6 [shape = 's32[2]{0}', space=sflag, size = 0x8, scoped, tag = 'scoped memory for transformer_classifier_forward.1']
    #allocation7 [shape = 'u8[1024]{0}', space=vmem, size = 0x400, scoped, tag = 'input window, operand 4']
    #allocation8 [shape = 's32[2]{0}', space=sflag, size = 0x8, scoped, tag = 'scoped memory for transformer_classifier_forward.1']
    #allocation9 [shape = 'u8[65536]{0}', space=vmem, size = 0x10000, scoped, tag = 'input window, operand 5']
    #allocation10 [shape = 'u8[1024]{0}', space=vmem, size = 0x400, scoped, tag = 'input window, operand 6']
    #allocation11 [shape = 's32[2]{0}', space=sflag, size = 0x8, scoped, tag = 'scoped memory for transformer_classifier_forward.1']
    #allocation12 [shape = 'u8[131072]{0}', space=vmem, size = 0x20000, scoped, tag = 'input window, operand 7']
    #allocation13 [shape = 'u8[2048]{0}', space=vmem, size = 0x800, scoped, tag = 'input window, operand 8']
    #allocation14 [shape = 's32[2]{0}', space=sflag, size = 0x8, scoped, tag = 'scoped memory for transformer_classifier_forward.1']
    #allocation15 [shape = 'u8[65536]{0}', space=vmem, size = 0x10000, scoped, tag = 'input window, operand 9']
    #allocation16 [shape = 'u8[1024]{0}', space=vmem, size = 0x400, scoped, tag = 'input window, operand 10']
    #allocation17 [shape = 's32[2]{0}', space=sflag, size = 0x8, scoped, tag = 'scoped memory for transformer_classifier_forward.1']
    #allocation18 [shape = 'u8[1048576]{0}', space=vmem, size = 0x100000, scoped, tag = 'input window, operand 11']
    #allocation19 [shape = 'u8[1048576]{0}', space=vmem, size = 0x100000, scoped, tag = 'input window, operand 13']
    #allocation20 [shape = 's32[2]{0}', space=sflag, size = 0x8, scoped, tag = 'scoped memory for transformer_classifier_forward.1']
    #allocation21 [shape = 'u8[1024]{0}', space=vmem, size = 0x400, scoped, tag = 'input window, operand 14']
    #allocation22 [shape = 'u8[1024]{0}', space=vmem, size = 0x400, scoped, tag = 'input window, operand 15']
    #allocation23 [shape = 's32[2]{0}', space=sflag, size = 0x8, scoped, tag = 'scoped memory for transformer_classifier_forward.1']
    #allocation24 [shape = 'u8[1024]{0}', space=vmem, size = 0x400, scoped, tag = 'input window, operand 16']
    #allocation25 [shape = 'u8[1024]{0}', space=vmem, size = 0x400, scoped, tag = 'input window, operand 17']
    #allocation26 [shape = 's32[2]{0}', space=sflag, size = 0x8, scoped, tag = 'scoped memory for transformer_classifier_forward.1']
    #allocation27 [shape = 'u8[1024]{0}', space=vmem, size = 0x400, scoped, tag = 'input window, operand 18']
    #allocation28 [shape = 'u8[1024]{0}', space=vmem, size = 0x400, scoped, tag = 'input window, operand 19']
    #allocation29 [shape = 's32[2]{0}', space=sflag, size = 0x8, scoped, tag = 'scoped memory for transformer_classifier_forward.1']
    #allocation30 [shape = 'u8[1024]{0}', space=vmem, size = 0x400, scoped, tag = 'input window, operand 20']
    #allocation31 [shape = 'u8[65536]{0}', space=vmem, size = 0x10000, scoped, tag = 'input window, operand 21, single buffered']
    #allocation32 [shape = 's32[1]{0}', space=sflag, size = 0x4, scoped, tag = 'scoped memory for transformer_classifier_forward.1']
    #allocation33 [shape = 'u8[512]{0}', space=vmem, size = 0x400, scoped, tag = 'input window, operand 22, single buffered']
    #allocation34 [shape = 'u8[4096]{0}', space=vmem, size = 0x1000, scoped, tag = 'output window, operand 0, single buffered']
    %28 = vsyncpa [#allocation5], 0
    %s29 = scalar_lea.sflag [#allocation5], 1
    %30 = vsyncpa %s29, 0
    %31 = vsyncpa [#allocation8], 0
    %s32 = scalar_lea.sflag [#allocation8], 1
    %33 = vsyncpa %s32, 0
    %34 = vsyncpa [#allocation11], 0
    %s35 = scalar_lea.sflag [#allocation11], 1
    %36 = vsyncpa %s35, 0
    %37 = vsyncpa [#allocation14], 0
    %s38 = scalar_lea.sflag [#allocation14], 1
    %39 = vsyncpa %s38, 0
    %40 = vsyncpa [#allocation17], 0
    %s41 = scalar_lea.sflag [#allocation17], 1
    %42 = vsyncpa %s41, 0
    %43 = vsyncpa [#allocation20], 0
    %s44 = scalar_lea.sflag [#allocation20], 1
    %45 = vsyncpa %s44, 0
    %46 = vsyncpa [#allocation23], 0
    %s47 = scalar_lea.sflag [#allocation23], 1
    %48 = vsyncpa %s47, 0
    %49 = vsyncpa [#allocation26], 0
    %s50 = scalar_lea.sflag [#allocation26], 1
    %51 = vsyncpa %s50, 0
    %52 = vsyncpa [#allocation29], 0
    %s53 = scalar_lea.sflag [#allocation29], 1
    %54 = vsyncpa %s53, 0
    %55 = vsyncpa [#allocation32], 0
    %56 = vsyncpa [#allocation6], 0
    loop: start=0, step=1, limit=4
    $region2: #{transformer_classifier_forward.1} parent=1 // loop_pre_header
      _
    $region3: #{transformer_classifier_forward.1} parent=1 // loop_header
      %s58 = sphi 0, %s62
      %p59 = scmp.ge.s32.totalorder %s58, 4
      %s66 = sphi 0, %s66
      %s68 = sphi 0, %s66
      %s69 = sphi 0, %s68
      %s83 = sphi 0, %s69
      %s89 = sphi 0, %s91
      %s92 = sphi 0, %s89
      %s93 = sphi 0, %s92
      %s109 = sphi 0, %s93
      %s115 = sphi 0, %s117
      %s118 = sphi 0, %s115
      %s119 = sphi 0, %s118
      %s135 = sphi 0, %s119
      %s141 = sphi 0, %s143
      %s144 = sphi 0, %s141
      %s145 = sphi 0, %s144
      %s161 = sphi 0, %s145
      %s167 = sphi 0, %s169
      %s170 = sphi 0, %s167
      %s171 = sphi 0, %s170
      %s187 = sphi 0, %s171
      %s193 = sphi 0, %s195
      %s196 = sphi 0, %s193
      %s197 = sphi 0, %s196
      %s213 = sphi 0, %s197
      %s219 = sphi 0, %s221
      %s222 = sphi 0, %s219
      %s223 = sphi 0, %s222
      %s239 = sphi 0, %s223
      %s245 = sphi 0, %s247
      %s248 = sphi 0, %s245
      %s249 = sphi 0, %s248
      %s265 = sphi 0, %s249
      %s271 = sphi 0, %s273
      %s274 = sphi 0, %s271
      %s275 = sphi 0, %s274
      %s291 = sphi 0, %s275
      %s297 = sphi 0, %s299
      %s300 = sphi 0, %s297
      %s301 = sphi 0, %s300
      %s317 = sphi 0, %s301
      %s323 = sphi 0, %s325
      %s326 = sphi 0, %s323
      %s327 = sphi 0, %s326
      %s343 = sphi 0, %s327
      %s349 = sphi 0, %s351
      %s352 = sphi 0, %s349
      %s353 = sphi 0, %s352
      %s369 = sphi 0, %s353
      %s375 = sphi 0, %s377
      %s378 = sphi 0, %s375
      %s379 = sphi 0, %s378
      %s395 = sphi 0, %s379
      %s401 = sphi 0, %s403
      %s404 = sphi 0, %s401
      %s405 = sphi 0, %s404
      %s421 = sphi 0, %s405
      %s427 = sphi 0, %s429
      %s430 = sphi 0, %s427
      %s431 = sphi 0, %s430
      %s447 = sphi 0, %s431
      %s453 = sphi 0, %s455
      %s456 = sphi 0, %s453
      %s457 = sphi 0, %s456
      %s473 = sphi 0, %s457
      %s479 = sphi 0, %s481
      %s482 = sphi 0, %s479
      %s483 = sphi 0, %s482
      %s499 = sphi 0, %s483
      %s505 = sphi 0, %s507
      %s508 = sphi 0, %s505
      %s509 = sphi 0, %s508
      %s525 = sphi 0, %s509
      %s531 = sphi 0, %s533
      %s534 = sphi 0, %s531
      %s535 = sphi 0, %s534
      %s551 = sphi 0, %s535
      %s557 = sphi 0, %s559
      %s560 = sphi 0, %s557
      %s561 = sphi 0, %s560
      %s577 = sphi 0, %s561
      %s583 = sphi 0, %s585
      %s586 = sphi 0, %s583
      %s587 = sphi 0, %s586
      %s603 = sphi 0, %s587
      %s607 = sphi 0, %s607
      %s609 = sphi 0, %s607
      %s610 = sphi 0, %s609
      %s624 = sphi 0, %s610
      %s628 = sphi 0, %s628
      %s630 = sphi 0, %s628
      %s631 = sphi 0, %s630
      %s645 = sphi 0, %s631
      %s649 = sphi 0, %s649
      %s651 = sphi 0, %s649
      %s652 = sphi 0, %s651
      %s666 = sphi 0, %s652
    $region4: #{transformer_classifier_forward.1} parent=1 // loop_header_branch
      %61 = sbr.rel (%p59) target = $region8
    $region5: #{transformer_classifier_forward.1} parent=1 // loop_body
      %s63 = ssub.s32 %s58, 1
      %s64 = ssub.s32 %s58, 2
      %s65 = sadd.s32 %s58, 1
      %s67 = sadd.s32 %s66, 1
      %p70 = scmp.eq.s32.totalorder %s58, 1
      %p71 = scmp.ne.s32.totalorder %s66, %s68
      %p72 = scmp.eq.s32.totalorder %s58, 0
      %p73 = por %p71, %p72
      %p74 = scmp.ne.s32.totalorder %s66, %s68
      %p75 = scmp.eq.s32.totalorder %s63, 1
      %p76 = por %p74, %p75
      %p77 = scmp.ne.s32.totalorder %s68, %s69
      %p78 = scmp.eq.s32.totalorder %s63, 0
      %p79 = por %p77, %p78
      %p80 = scmp.ne.s32.totalorder %s68, %s69
      %p81 = scmp.eq.s32.totalorder %s64, 1
      %p82 = por %p80, %p81
      %p84 = scmp.ne.s32.totalorder %s69, %s83
      %p85 = scmp.eq.s32.totalorder %s64, 0
      %p86 = por %p84, %p85
      %s87 = ssub.s32 %s58, %s65
      %p88 = scmp.eq.s32.totalorder %s87, 0
      %s90 = sadd.s32 %s89, 1
      %s91 = scalar_select %p88, %s89, %s90
      %p94 = pneg %p88
      %p95 = scmp.eq.s32.totalorder %s58, 1
      %p96 = por %p94, %p95
      %p97 = scmp.ne.s32.totalorder %s89, %s92
      %p98 = scmp.eq.s32.totalorder %s58, 0
      %p99 = por %p97, %p98
      %p100 = scmp.ne.s32.totalorder %s89, %s92
      %p101 = scmp.eq.s32.totalorder %s63, 1
      %p102 = por %p100, %p101
      %p103 = scmp.ne.s32.totalorder %s92, %s93
      %p104 = scmp.eq.s32.totalorder %s63, 0
      %p105 = por %p103, %p104
      %p106 = scmp.ne.s32.totalorder %s92, %s93
      %p107 = scmp.eq.s32.totalorder %s64, 1
      %p108 = por %p106, %p107
      %p110 = scmp.ne.s32.totalorder %s93, %s109
      %p111 = scmp.eq.s32.totalorder %s64, 0
      %p112 = por %p110, %p111
      %s113 = ssub.s32 %s58, %s65
      %p114 = scmp.eq.s32.totalorder %s113, 0
      %s116 = sadd.s32 %s115, 1
      %s117 = scalar_select %p114, %s115, %s116
      %p120 = pneg %p114
      %p121 = scmp.eq.s32.totalorder %s58, 1
      %p122 = por %p120, %p121
      %p123 = scmp.ne.s32.totalorder %s115, %s118
      %p124 = scmp.eq.s32.totalorder %s58, 0
      %p125 = por %p123, %p124
      %p126 = scmp.ne.s32.totalorder %s115, %s118
      %p127 = scmp.eq.s32.totalorder %s63, 1
      %p128 = por %p126, %p127
      %p129 = scmp.ne.s32.totalorder %s118, %s119
      %p130 = scmp.eq.s32.totalorder %s63, 0
      %p131 = por %p129, %p130
      %p132 = scmp.ne.s32.totalorder %s118, %s119
      %p133 = scmp.eq.s32.totalorder %s64, 1
      %p134 = por %p132, %p133
      %p136 = scmp.ne.s32.totalorder %s119, %s135
      %p137 = scmp.eq.s32.totalorder %s64, 0
      %p138 = por %p136, %p137
      %s139 = ssub.s32 %s58, %s65
      %p140 = scmp.eq.s32.totalorder %s139, 0
      %s142 = sadd.s32 %s141, 1
      %s143 = scalar_select %p140, %s141, %s142
      %p146 = pneg %p140
      %p147 = scmp.eq.s32.totalorder %s58, 1
      %p148 = por %p146, %p147
      %p149 = scmp.ne.s32.totalorder %s141, %s144
      %p150 = scmp.eq.s32.totalorder %s58, 0
      %p151 = por %p149, %p150
      %p152 = scmp.ne.s32.totalorder %s141, %s144
      %p153 = scmp.eq.s32.totalorder %s63, 1
      %p154 = por %p152, %p153
      %p155 = scmp.ne.s32.totalorder %s144, %s145
      %p156 = scmp.eq.s32.totalorder %s63, 0
      %p157 = por %p155, %p156
      %p158 = scmp.ne.s32.totalorder %s144, %s145
      %p159 = scmp.eq.s32.totalorder %s64, 1
      %p160 = por %p158, %p159
      %p162 = scmp.ne.s32.totalorder %s145, %s161
      %p163 = scmp.eq.s32.totalorder %s64, 0
      %p164 = por %p162, %p163
      %s165 = ssub.s32 %s58, %s65
      %p166 = scmp.eq.s32.totalorder %s165, 0
      %s168 = sadd.s32 %s167, 1
      %s169 = scalar_select %p166, %s167, %s168
      %p172 = pneg %p166
      %p173 = scmp.eq.s32.totalorder %s58, 1
      %p174 = por %p172, %p173
      %p175 = scmp.ne.s32.totalorder %s167, %s170
      %p176 = scmp.eq.s32.totalorder %s58, 0
      %p177 = por %p175, %p176
      %p178 = scmp.ne.s32.totalorder %s167, %s170
      %p179 = scmp.eq.s32.totalorder %s63, 1
      %p180 = por %p178, %p179
      %p181 = scmp.ne.s32.totalorder %s170, %s171
      %p182 = scmp.eq.s32.totalorder %s63, 0
      %p183 = por %p181, %p182
      %p184 = scmp.ne.s32.totalorder %s170, %s171
      %p185 = scmp.eq.s32.totalorder %s64, 1
      %p186 = por %p184, %p185
      %p188 = scmp.ne.s32.totalorder %s171, %s187
      %p189 = scmp.eq.s32.totalorder %s64, 0
      %p190 = por %p188, %p189
      %s191 = ssub.s32 %s58, %s65
      %p192 = scmp.eq.s32.totalorder %s191, 0
      %s194 = sadd.s32 %s193, 1
      %s195 = scalar_select %p192, %s193, %s194
      %p198 = pneg %p192
      %p199 = scmp.eq.s32.totalorder %s58, 1
      %p200 = por %p198, %p199
      %p201 = scmp.ne.s32.totalorder %s193, %s196
      %p202 = scmp.eq.s32.totalorder %s58, 0
      %p203 = por %p201, %p202
      %p204 = scmp.ne.s32.totalorder %s193, %s196
      %p205 = scmp.eq.s32.totalorder %s63, 1
      %p206 = por %p204, %p205
      %p207 = scmp.ne.s32.totalorder %s196, %s197
      %p208 = scmp.eq.s32.totalorder %s63, 0
      %p209 = por %p207, %p208
      %p210 = scmp.ne.s32.totalorder %s196, %s197
      %p211 = scmp.eq.s32.totalorder %s64, 1
      %p212 = por %p210, %p211
      %p214 = scmp.ne.s32.totalorder %s197, %s213
      %p215 = scmp.eq.s32.totalorder %s64, 0
      %p216 = por %p214, %p215
      %s217 = ssub.s32 %s58, %s65
      %p218 = scmp.eq.s32.totalorder %s217, 0
      %s220 = sadd.s32 %s219, 1
      %s221 = scalar_select %p218, %s219, %s220
      %p224 = pneg %p218
      %p225 = scmp.eq.s32.totalorder %s58, 1
      %p226 = por %p224, %p225
      %p227 = scmp.ne.s32.totalorder %s219, %s222
      %p228 = scmp.eq.s32.totalorder %s58, 0
      %p229 = por %p227, %p228
      %p230 = scmp.ne.s32.totalorder %s219, %s222
      %p231 = scmp.eq.s32.totalorder %s63, 1
      %p232 = por %p230, %p231
      %p233 = scmp.ne.s32.totalorder %s222, %s223
      %p234 = scmp.eq.s32.totalorder %s63, 0
      %p235 = por %p233, %p234
      %p236 = scmp.ne.s32.totalorder %s222, %s223
      %p237 = scmp.eq.s32.totalorder %s64, 1
      %p238 = por %p236, %p237
      %p240 = scmp.ne.s32.totalorder %s223, %s239
      %p241 = scmp.eq.s32.totalorder %s64, 0
      %p242 = por %p240, %p241
      %s243 = ssub.s32 %s58, %s65
      %p244 = scmp.eq.s32.totalorder %s243, 0
      %s246 = sadd.s32 %s245, 1
      %s247 = scalar_select %p244, %s245, %s246
      %p250 = pneg %p244
      %p251 = scmp.eq.s32.totalorder %s58, 1
      %p252 = por %p250, %p251
      %p253 = scmp.ne.s32.totalorder %s245, %s248
      %p254 = scmp.eq.s32.totalorder %s58, 0
      %p255 = por %p253, %p254
      %p256 = scmp.ne.s32.totalorder %s245, %s248
      %p257 = scmp.eq.s32.totalorder %s63, 1
      %p258 = por %p256, %p257
      %p259 = scmp.ne.s32.totalorder %s248, %s249
      %p260 = scmp.eq.s32.totalorder %s63, 0
      %p261 = por %p259, %p260
      %p262 = scmp.ne.s32.totalorder %s248, %s249
      %p263 = scmp.eq.s32.totalorder %s64, 1
      %p264 = por %p262, %p263
      %p266 = scmp.ne.s32.totalorder %s249, %s265
      %p267 = scmp.eq.s32.totalorder %s64, 0
      %p268 = por %p266, %p267
      %s269 = ssub.s32 %s58, %s65
      %p270 = scmp.eq.s32.totalorder %s269, 0
      %s272 = sadd.s32 %s271, 1
      %s273 = scalar_select %p270, %s271, %s272
      %p276 = pneg %p270
      %p277 = scmp.eq.s32.totalorder %s58, 1
      %p278 = por %p276, %p277
      %p279 = scmp.ne.s32.totalorder %s271, %s274
      %p280 = scmp.eq.s32.totalorder %s58, 0
      %p281 = por %p279, %p280
      %p282 = scmp.ne.s32.totalorder %s271, %s274
      %p283 = scmp.eq.s32.totalorder %s63, 1
      %p284 = por %p282, %p283
      %p285 = scmp.ne.s32.totalorder %s274, %s275
      %p286 = scmp.eq.s32.totalorder %s63, 0
      %p287 = por %p285, %p286
      %p288 = scmp.ne.s32.totalorder %s274, %s275
      %p289 = scmp.eq.s32.totalorder %s64, 1
      %p290 = por %p288, %p289
      %p292 = scmp.ne.s32.totalorder %s275, %s291
      %p293 = scmp.eq.s32.totalorder %s64, 0
      %p294 = por %p292, %p293
      %s295 = ssub.s32 %s58, %s65
      %p296 = scmp.eq.s32.totalorder %s295, 0
      %s298 = sadd.s32 %s297, 1
      %s299 = scalar_select %p296, %s297, %s298
      %p302 = pneg %p296
      %p303 = scmp.eq.s32.totalorder %s58, 1
      %p304 = por %p302, %p303
      %p305 = scmp.ne.s32.totalorder %s297, %s300
      %p306 = scmp.eq.s32.totalorder %s58, 0
      %p307 = por %p305, %p306
      %p308 = scmp.ne.s32.totalorder %s297, %s300
      %p309 = scmp.eq.s32.totalorder %s63, 1
      %p310 = por %p308, %p309
      %p311 = scmp.ne.s32.totalorder %s300, %s301
      %p312 = scmp.eq.s32.totalorder %s63, 0
      %p313 = por %p311, %p312
      %p314 = scmp.ne.s32.totalorder %s300, %s301
      %p315 = scmp.eq.s32.totalorder %s64, 1
      %p316 = por %p314, %p315
      %p318 = scmp.ne.s32.totalorder %s301, %s317
      %p319 = scmp.eq.s32.totalorder %s64, 0
      %p320 = por %p318, %p319
      %s321 = ssub.s32 %s58, %s65
      %p322 = scmp.eq.s32.totalorder %s321, 0
      %s324 = sadd.s32 %s323, 1
      %s325 = scalar_select %p322, %s323, %s324
      %p328 = pneg %p322
      %p329 = scmp.eq.s32.totalorder %s58, 1
      %p330 = por %p328, %p329
      %p331 = scmp.ne.s32.totalorder %s323, %s326
      %p332 = scmp.eq.s32.totalorder %s58, 0
      %p333 = por %p331, %p332
      %p334 = scmp.ne.s32.totalorder %s323, %s326
      %p335 = scmp.eq.s32.totalorder %s63, 1
      %p336 = por %p334, %p335
      %p337 = scmp.ne.s32.totalorder %s326, %s327
      %p338 = scmp.eq.s32.totalorder %s63, 0
      %p339 = por %p337, %p338
      %p340 = scmp.ne.s32.totalorder %s326, %s327
      %p341 = scmp.eq.s32.totalorder %s64, 1
      %p342 = por %p340, %p341
      %p344 = scmp.ne.s32.totalorder %s327, %s343
      %p345 = scmp.eq.s32.totalorder %s64, 0
      %p346 = por %p344, %p345
      %s347 = ssub.s32 %s58, %s65
      %p348 = scmp.eq.s32.totalorder %s347, 0
      %s350 = sadd.s32 %s349, 1
      %s351 = scalar_select %p348, %s349, %s350
      %p354 = pneg %p348
      %p355 = scmp.eq.s32.totalorder %s58, 1
      %p356 = por %p354, %p355
      %p357 = scmp.ne.s32.totalorder %s349, %s352
      %p358 = scmp.eq.s32.totalorder %s58, 0
      %p359 = por %p357, %p358
      %p360 = scmp.ne.s32.totalorder %s349, %s352
      %p361 = scmp.eq.s32.totalorder %s63, 1
      %p362 = por %p360, %p361
      %p363 = scmp.ne.s32.totalorder %s352, %s353
      %p364 = scmp.eq.s32.totalorder %s63, 0
      %p365 = por %p363, %p364
      %p366 = scmp.ne.s32.totalorder %s352, %s353
      %p367 = scmp.eq.s32.totalorder %s64, 1
      %p368 = por %p366, %p367
      %p370 = scmp.ne.s32.totalorder %s353, %s369
      %p371 = scmp.eq.s32.totalorder %s64, 0
      %p372 = por %p370, %p371
      %s373 = ssub.s32 %s58, %s65
      %p374 = scmp.eq.s32.totalorder %s373, 0
      %s376 = sadd.s32 %s375, 1
      %s377 = scalar_select %p374, %s375, %s376
      %p380 = pneg %p374
      %p381 = scmp.eq.s32.totalorder %s58, 1
      %p382 = por %p380, %p381
      %p383 = scmp.ne.s32.totalorder %s375, %s378
      %p384 = scmp.eq.s32.totalorder %s58, 0
      %p385 = por %p383, %p384
      %p386 = scmp.ne.s32.totalorder %s375, %s378
      %p387 = scmp.eq.s32.totalorder %s63, 1
      %p388 = por %p386, %p387
      %p389 = scmp.ne.s32.totalorder %s378, %s379
      %p390 = scmp.eq.s32.totalorder %s63, 0
      %p391 = por %p389, %p390
      %p392 = scmp.ne.s32.totalorder %s378, %s379
      %p393 = scmp.eq.s32.totalorder %s64, 1
      %p394 = por %p392, %p393
      %p396 = scmp.ne.s32.totalorder %s379, %s395
      %p397 = scmp.eq.s32.totalorder %s64, 0
      %p398 = por %p396, %p397
      %s399 = ssub.s32 %s58, %s65
      %p400 = scmp.eq.s32.totalorder %s399, 0
      %s402 = sadd.s32 %s401, 1
      %s403 = scalar_select %p400, %s401, %s402
      %p406 = pneg %p400
      %p407 = scmp.eq.s32.totalorder %s58, 1
      %p408 = por %p406, %p407
      %p409 = scmp.ne.s32.totalorder %s401, %s404
      %p410 = scmp.eq.s32.totalorder %s58, 0
      %p411 = por %p409, %p410
      %p412 = scmp.ne.s32.totalorder %s401, %s404
      %p413 = scmp.eq.s32.totalorder %s63, 1
      %p414 = por %p412, %p413
      %p415 = scmp.ne.s32.totalorder %s404, %s405
      %p416 = scmp.eq.s32.totalorder %s63, 0
      %p417 = por %p415, %p416
      %p418 = scmp.ne.s32.totalorder %s404, %s405
      %p419 = scmp.eq.s32.totalorder %s64, 1
      %p420 = por %p418, %p419
      %p422 = scmp.ne.s32.totalorder %s405, %s421
      %p423 = scmp.eq.s32.totalorder %s64, 0
      %p424 = por %p422, %p423
      %s425 = ssub.s32 %s58, %s65
      %p426 = scmp.eq.s32.totalorder %s425, 0
      %s428 = sadd.s32 %s427, 1
      %s429 = scalar_select %p426, %s427, %s428
      %p432 = pneg %p426
      %p433 = scmp.eq.s32.totalorder %s58, 1
      %p434 = por %p432, %p433
      %p435 = scmp.ne.s32.totalorder %s427, %s430
      %p436 = scmp.eq.s32.totalorder %s58, 0
      %p437 = por %p435, %p436
      %p438 = scmp.ne.s32.totalorder %s427, %s430
      %p439 = scmp.eq.s32.totalorder %s63, 1
      %p440 = por %p438, %p439
      %p441 = scmp.ne.s32.totalorder %s430, %s431
      %p442 = scmp.eq.s32.totalorder %s63, 0
      %p443 = por %p441, %p442
      %p444 = scmp.ne.s32.totalorder %s430, %s431
      %p445 = scmp.eq.s32.totalorder %s64, 1
      %p446 = por %p444, %p445
      %p448 = scmp.ne.s32.totalorder %s431, %s447
      %p449 = scmp.eq.s32.totalorder %s64, 0
      %p450 = por %p448, %p449
      %s451 = ssub.s32 %s58, %s65
      %p452 = scmp.eq.s32.totalorder %s451, 0
      %s454 = sadd.s32 %s453, 1
      %s455 = scalar_select %p452, %s453, %s454
      %p458 = pneg %p452
      %p459 = scmp.eq.s32.totalorder %s58, 1
      %p460 = por %p458, %p459
      %p461 = scmp.ne.s32.totalorder %s453, %s456
      %p462 = scmp.eq.s32.totalorder %s58, 0
      %p463 = por %p461, %p462
      %p464 = scmp.ne.s32.totalorder %s453, %s456
      %p465 = scmp.eq.s32.totalorder %s63, 1
      %p466 = por %p464, %p465
      %p467 = scmp.ne.s32.totalorder %s456, %s457
      %p468 = scmp.eq.s32.totalorder %s63, 0
      %p469 = por %p467, %p468
      %p470 = scmp.ne.s32.totalorder %s456, %s457
      %p471 = scmp.eq.s32.totalorder %s64, 1
      %p472 = por %p470, %p471
      %p474 = scmp.ne.s32.totalorder %s457, %s473
      %p475 = scmp.eq.s32.totalorder %s64, 0
      %p476 = por %p474, %p475
      %s477 = ssub.s32 %s58, %s65
      %p478 = scmp.eq.s32.totalorder %s477, 0
      %s480 = sadd.s32 %s479, 1
      %s481 = scalar_select %p478, %s479, %s480
      %p484 = pneg %p478
      %p485 = scmp.eq.s32.totalorder %s58, 1
      %p486 = por %p484, %p485
      %p487 = scmp.ne.s32.totalorder %s479, %s482
      %p488 = scmp.eq.s32.totalorder %s58, 0
      %p489 = por %p487, %p488
      %p490 = scmp.ne.s32.totalorder %s479, %s482
      %p491 = scmp.eq.s32.totalorder %s63, 1
      %p492 = por %p490, %p491
      %p493 = scmp.ne.s32.totalorder %s482, %s483
      %p494 = scmp.eq.s32.totalorder %s63, 0
      %p495 = por %p493, %p494
      %p496 = scmp.ne.s32.totalorder %s482, %s483
      %p497 = scmp.eq.s32.totalorder %s64, 1
      %p498 = por %p496, %p497
      %p500 = scmp.ne.s32.totalorder %s483, %s499
      %p501 = scmp.eq.s32.totalorder %s64, 0
      %p502 = por %p500, %p501
      %s503 = ssub.s32 %s58, %s65
      %p504 = scmp.eq.s32.totalorder %s503, 0
      %s506 = sadd.s32 %s505, 1
      %s507 = scalar_select %p504, %s505, %s506
      %p510 = pneg %p504
      %p511 = scmp.eq.s32.totalorder %s58, 1
      %p512 = por %p510, %p511
      %p513 = scmp.ne.s32.totalorder %s505, %s508
      %p514 = scmp.eq.s32.totalorder %s58, 0
      %p515 = por %p513, %p514
      %p516 = scmp.ne.s32.totalorder %s505, %s508
      %p517 = scmp.eq.s32.totalorder %s63, 1
      %p518 = por %p516, %p517
      %p519 = scmp.ne.s32.totalorder %s508, %s509
      %p520 = scmp.eq.s32.totalorder %s63, 0
      %p521 = por %p519, %p520
      %p522 = scmp.ne.s32.totalorder %s508, %s509
      %p523 = scmp.eq.s32.totalorder %s64, 1
      %p524 = por %p522, %p523
      %p526 = scmp.ne.s32.totalorder %s509, %s525
      %p527 = scmp.eq.s32.totalorder %s64, 0
      %p528 = por %p526, %p527
      %s529 = ssub.s32 %s58, %s65
      %p530 = scmp.eq.s32.totalorder %s529, 0
      %s532 = sadd.s32 %s531, 1
      %s533 = scalar_select %p530, %s531, %s532
      %p536 = pneg %p530
      %p537 = scmp.eq.s32.totalorder %s58, 1
      %p538 = por %p536, %p537
      %p539 = scmp.ne.s32.totalorder %s531, %s534
      %p540 = scmp.eq.s32.totalorder %s58, 0
      %p541 = por %p539, %p540
      %p542 = scmp.ne.s32.totalorder %s531, %s534
      %p543 = scmp.eq.s32.totalorder %s63, 1
      %p544 = por %p542, %p543
      %p545 = scmp.ne.s32.totalorder %s534, %s535
      %p546 = scmp.eq.s32.totalorder %s63, 0
      %p547 = por %p545, %p546
      %p548 = scmp.ne.s32.totalorder %s534, %s535
      %p549 = scmp.eq.s32.totalorder %s64, 1
      %p550 = por %p548, %p549
      %p552 = scmp.ne.s32.totalorder %s535, %s551
      %p553 = scmp.eq.s32.totalorder %s64, 0
      %p554 = por %p552, %p553
      %s555 = ssub.s32 %s58, %s65
      %p556 = scmp.eq.s32.totalorder %s555, 0
      %s558 = sadd.s32 %s557, 1
      %s559 = scalar_select %p556, %s557, %s558
      %p562 = pneg %p556
      %p563 = scmp.eq.s32.totalorder %s58, 1
      %p564 = por %p562, %p563
      %p565 = scmp.ne.s32.totalorder %s557, %s560
      %p566 = scmp.eq.s32.totalorder %s58, 0
      %p567 = por %p565, %p566
      %p568 = scmp.ne.s32.totalorder %s557, %s560
      %p569 = scmp.eq.s32.totalorder %s63, 1
      %p570 = por %p568, %p569
      %p571 = scmp.ne.s32.totalorder %s560, %s561
      %p572 = scmp.eq.s32.totalorder %s63, 0
      %p573 = por %p571, %p572
      %p574 = scmp.ne.s32.totalorder %s560, %s561
      %p575 = scmp.eq.s32.totalorder %s64, 1
      %p576 = por %p574, %p575
      %p578 = scmp.ne.s32.totalorder %s561, %s577
      %p579 = scmp.eq.s32.totalorder %s64, 0
      %p580 = por %p578, %p579
      %s581 = ssub.s32 %s58, %s65
      %p582 = scmp.eq.s32.totalorder %s581, 0
      %s584 = sadd.s32 %s583, 1
      %s585 = scalar_select %p582, %s583, %s584
      %p588 = pneg %p582
      %p589 = scmp.eq.s32.totalorder %s58, 1
      %p590 = por %p588, %p589
      %p591 = scmp.ne.s32.totalorder %s583, %s586
      %p592 = scmp.eq.s32.totalorder %s58, 0
      %p593 = por %p591, %p592
      %p594 = scmp.ne.s32.totalorder %s583, %s586
      %p595 = scmp.eq.s32.totalorder %s63, 1
      %p596 = por %p594, %p595
      %p597 = scmp.ne.s32.totalorder %s586, %s587
      %p598 = scmp.eq.s32.totalorder %s63, 0
      %p599 = por %p597, %p598
      %p600 = scmp.ne.s32.totalorder %s586, %s587
      %p601 = scmp.eq.s32.totalorder %s64, 1
      %p602 = por %p600, %p601
      %p604 = scmp.ne.s32.totalorder %s587, %s603
      %p605 = scmp.eq.s32.totalorder %s64, 0
      %p606 = por %p604, %p605
      %s608 = sadd.s32 %s607, 1
      %p611 = scmp.eq.s32.totalorder %s58, 1
      %p612 = scmp.ne.s32.totalorder %s607, %s609
      %p613 = scmp.eq.s32.totalorder %s58, 0
      %p614 = por %p612, %p613
      %p615 = scmp.ne.s32.totalorder %s607, %s609
      %p616 = scmp.eq.s32.totalorder %s63, 1
      %p617 = por %p615, %p616
      %p618 = scmp.ne.s32.totalorder %s609, %s610
      %p619 = scmp.eq.s32.totalorder %s63, 0
      %p620 = por %p618, %p619
      %p621 = scmp.ne.s32.totalorder %s609, %s610
      %p622 = scmp.eq.s32.totalorder %s64, 1
      %p623 = por %p621, %p622
      %p625 = scmp.ne.s32.totalorder %s610, %s624
      %p626 = scmp.eq.s32.totalorder %s64, 0
      %p627 = por %p625, %p626
      %s629 = sadd.s32 %s628, 1
      %p632 = scmp.eq.s32.totalorder %s58, 1
      %p633 = scmp.ne.s32.totalorder %s628, %s630
      %p634 = scmp.eq.s32.totalorder %s58, 0
      %p635 = por %p633, %p634
      %p636 = scmp.ne.s32.totalorder %s628, %s630
      %p637 = scmp.eq.s32.totalorder %s63, 1
      %p638 = por %p636, %p637
      %p639 = scmp.ne.s32.totalorder %s630, %s631
      %p640 = scmp.eq.s32.totalorder %s63, 0
      %p641 = por %p639, %p640
      %p642 = scmp.ne.s32.totalorder %s630, %s631
      %p643 = scmp.eq.s32.totalorder %s64, 1
      %p644 = por %p642, %p643
      %p646 = scmp.ne.s32.totalorder %s631, %s645
      %p647 = scmp.eq.s32.totalorder %s64, 0
      %p648 = por %p646, %p647
      %s650 = sadd.s32 %s649, 1
      %p653 = scmp.eq.s32.totalorder %s58, 1
      %p654 = scmp.ne.s32.totalorder %s649, %s651
      %p655 = scmp.eq.s32.totalorder %s58, 0
      %p656 = por %p654, %p655
      %p657 = scmp.ne.s32.totalorder %s649, %s651
      %p658 = scmp.eq.s32.totalorder %s63, 1
      %p659 = por %p657, %p658
      %p660 = scmp.ne.s32.totalorder %s651, %s652
      %p661 = scmp.eq.s32.totalorder %s63, 0
      %p662 = por %p660, %p661
      %p663 = scmp.ne.s32.totalorder %s651, %s652
      %p664 = scmp.eq.s32.totalorder %s64, 1
      %p665 = por %p663, %p664
      %p667 = scmp.ne.s32.totalorder %s652, %s666
      %p668 = scmp.eq.s32.totalorder %s64, 0
      %p669 = por %p667, %p668
      %p670 = scmp.le.s32.totalorder 1, %s58
      %p671 = scmp.lt.s32.totalorder %s58, 3
      %p672 = pnand %p670, %p671
      %p673 = pneg %p672
      // Predicated region
      $region9: #{transformer_classifier_forward.1} parent=5 // pred_check
        _
      $region10: #{transformer_classifier_forward.1} parent=5 // pred_check_branch
        %675 = sbr.rel (%p672) target = $region12
      $region11: #{transformer_classifier_forward.1} parent=5 // pred_region
        %s676 = ssub.s32 %s58, 1
        // Predicated region
        $region13: #{transformer_classifier_forward.1} parent=11 // pred_check
          %p677 = pneg %p79
        $region14: #{transformer_classifier_forward.1} parent=11 // pred_check_branch
          %679 = sbr.rel (%p677) target = $region16
        $region15: #{transformer_classifier_forward.1} parent=11 // pred_region
          _
        $region16: #{transformer_classifier_forward.1} parent=11 // pred_fallthru
          _
        // Predicated region
        $region17: #{transformer_classifier_forward.1} parent=11 // pred_check
          %p680 = pneg %p620
        $region18: #{transformer_classifier_forward.1} parent=11 // pred_check_branch
          %682 = sbr.rel (%p680) target = $region20
        $region19: #{transformer_classifier_forward.1} parent=11 // pred_region
          %s684 = ssub.s32 2048, 2048
          %685 = vsyncadd [#allocation32], %s684
          %s686 = sshll.u32 [#allocation31], 4
          %s687 = int_to_ptr.vmem [resolvable:$true] %s686
          %692 = dma.hbm_to_vmem [thread:$0]  %s21, 2048, %s687, [#allocation32], 128, 128, 8
        $region20: #{transformer_classifier_forward.1} parent=11 // pred_fallthru
          _
        // Predicated region
        $region21: #{transformer_classifier_forward.1} parent=11 // pred_check
          %p693 = pneg %p641
        $region22: #{transformer_classifier_forward.1} parent=11 // pred_check_branch
          %695 = sbr.rel (%p693) target = $region24
        $region23: #{transformer_classifier_forward.1} parent=11 // pred_region
          %s697 = ssub.s32 16, 16
          %698 = vsyncadd [#allocation32], %s697
          %s700 = sshll.u32 [#allocation33], 4
          %s701 = int_to_ptr.vmem [resolvable:$true] %s700
          %703 = dma.hbm_to_vmem [thread:$0]  %s22, 16, %s701, [#allocation32]
        $region24: #{transformer_classifier_forward.1} parent=11 // pred_fallthru
          _
      $region12: #{transformer_classifier_forward.1} parent=5 // pred_fallthru
        _
      %p704 = scmp.lt.s32.totalorder %s58, 2
      // Predicated region
      $region25: #{transformer_classifier_forward.1} parent=5 // pred_check
        %p705 = pneg %p704
      $region26: #{transformer_classifier_forward.1} parent=5 // pred_check_branch
        %707 = sbr.rel (%p705) target = $region28
      $region27: #{transformer_classifier_forward.1} parent=5 // pred_region
        // Predicated region
        $region29: #{transformer_classifier_forward.1} parent=27 // pred_check
          %p708 = pneg %p99
        $region30: #{transformer_classifier_forward.1} parent=27 // pred_check_branch
          %710 = sbr.rel (%p708) target = $region32
        $region31: #{transformer_classifier_forward.1} parent=27 // pred_region
          %s711 = sand.u32 %s89, 1
          %s712 = scalar_lea.sflag [#allocation5], %s711
          %s713 = sand.u32 %s89, 1
          %s714 = smul.addr %s713, 192
          %s715 = scalar_lea.vmem [#allocation4], %s714
          %s717 = ssub.s32 3072, 3072
          %718 = vsyncadd %s712, %s717
          %s719 = smul.addr %s58, 48
          %s720 = smul.addr %s719, 64
          %s721 = scalar_lea.hbm %s1, %s720
          %s722 = sshll.u32 %s715, 4
          %s723 = int_to_ptr.vmem [resolvable:$true] %s722
          %728 = dma.hbm_to_vmem [thread:$0]  %s721, 3072, %s723, %s712, 192, 192, 12
        $region32: #{transformer_classifier_forward.1} parent=27 // pred_fallthru
          _
        // Predicated region
        $region33: #{transformer_classifier_forward.1} parent=27 // pred_check
          %p729 = pneg %p125
        $region34: #{transformer_classifier_forward.1} parent=27 // pred_check_branch
          %731 = sbr.rel (%p729) target = $region36
        $region35: #{transformer_classifier_forward.1} parent=27 // pred_region
          %p732 = scmp.lt.s32.totalorder %s58, 1
          %s733 = scalar_select %p732, %s58, 1
          %s734 = smul.addr %s733, 3
          %s735 = scalar_lea.vmem %s2, %s734
        $region36: #{transformer_classifier_forward.1} parent=27 // pred_fallthru
          _
        // Predicated region
        $region37: #{transformer_classifier_forward.1} parent=27 // pred_check
          %p736 = pneg %p151
        $region38: #{transformer_classifier_forward.1} parent=27 // pred_check_branch
          %738 = sbr.rel (%p736) target = $region40
        $region39: #{transformer_classifier_forward.1} parent=27 // pred_region
          %p739 = scmp.lt.s32.totalorder %s58, 1
          %s740 = scalar_select %p739, %s58, 1
          %s741 = smul.addr %s740, 16
          %s742 = smul.addr %s741, 4
          %s743 = scalar_lea.vmem %s3, %s742
        $region40: #{transformer_classifier_forward.1} parent=27 // pred_fallthru
          _
        // Predicated region
        $region41: #{transformer_classifier_forward.1} parent=27 // pred_check
          %p744 = pneg %p177
        $region42: #{transformer_classifier_forward.1} parent=27 // pred_check_branch
          %746 = sbr.rel (%p744) target = $region44
        $region43: #{transformer_classifier_forward.1} parent=27 // pred_region
          %s747 = sand.u32 %s58, 1
          %s748 = scalar_lea.sflag [#allocation8], %s747
          %s749 = sand.u32 %s167, 1
          %s750 = scalar_lea.vmem [#allocation7], %s749
          %s752 = ssub.s32 16, 16
          %753 = vsyncadd %s748, %s752
          %s754 = smul.addr %s58, 16
          %s755 = scalar_lea.hbm %s4, %s754
          %s757 = sshll.u32 %s750, 4
          %s758 = int_to_ptr.vmem [resolvable:$true] %s757
          %760 = dma.hbm_to_vmem [thread:$0]  %s755, 16, %s758, %s748
        $region44: #{transformer_classifier_forward.1} parent=27 // pred_fallthru
          _
        // Predicated region
        $region45: #{transformer_classifier_forward.1} parent=27 // pred_check
          %p761 = pneg %p203
        $region46: #{transformer_classifier_forward.1} parent=27 // pred_check_branch
          %763 = sbr.rel (%p761) target = $region48
        $region47: #{transformer_classifier_forward.1} parent=27 // pred_region
          %s764 = sand.u32 %s58, 1
          %s765 = scalar_lea.sflag [#allocation8], %s764
          %s766 = sand.u32 %s193, 1
          %s767 = smul.addr %s766, 64
          %s768 = scalar_lea.vmem [#allocation9], %s767
          %s770 = ssub.s32 1024, 1024
          %771 = vsyncadd %s765, %s770
          %s772 = smul.addr %s58, 16
          %s773 = smul.addr %s772, 64
          %s774 = scalar_lea.hbm %s5, %s773
          %s775 = sshll.u32 %s768, 4
          %s776 = int_to_ptr.vmem [resolvable:$true] %s775
          %781 = dma.hbm_to_vmem [thread:$0]  %s774, 1024, %s776, %s765, 64, 64, 4
        $region48: #{transformer_classifier_forward.1} parent=27 // pred_fallthru
          _
        // Predicated region
        $region49: #{transformer_classifier_forward.1} parent=27 // pred_check
          %p782 = pneg %p229
        $region50: #{transformer_classifier_forward.1} parent=27 // pred_check_branch
          %784 = sbr.rel (%p782) target = $region52
        $region51: #{transformer_classifier_forward.1} parent=27 // pred_region
          %s785 = sand.u32 %s58, 1
          %s786 = scalar_lea.sflag [#allocation11], %s785
          %s787 = sand.u32 %s219, 1
          %s788 = scalar_lea.vmem [#allocation10], %s787
          %s790 = ssub.s32 16, 16
          %791 = vsyncadd %s786, %s790
          %s792 = smul.addr %s58, 16
          %s793 = scalar_lea.hbm %s6, %s792
          %s795 = sshll.u32 %s788, 4
          %s796 = int_to_ptr.vmem [resolvable:$true] %s795
          %798 = dma.hbm_to_vmem [thread:$0]  %s793, 16, %s796, %s786
        $region52: #{transformer_classifier_forward.1} parent=27 // pred_fallthru
          _
        // Predicated region
        $region53: #{transformer_classifier_forward.1} parent=27 // pred_check
          %p799 = pneg %p255
        $region54: #{transformer_classifier_forward.1} parent=27 // pred_check_branch
          %801 = sbr.rel (%p799) target = $region56
        $region55: #{transformer_classifier_forward.1} parent=27 // pred_region
          %s802 = sand.u32 %s58, 1
          %s803 = scalar_lea.sflag [#allocation11], %s802
          %s804 = sand.u32 %s245, 1
          %s805 = smul.addr %s804, 128
          %s806 = scalar_lea.vmem [#allocation12], %s805
          %s808 = ssub.s32 2048, 2048
          %809 = vsyncadd %s803, %s808
          %s810 = smul.addr %s58, 32
          %s811 = smul.addr %s810, 64
          %s812 = scalar_lea.hbm %s7, %s811
          %s813 = sshll.u32 %s806, 4
          %s814 = int_to_ptr.vmem [resolvable:$true] %s813
          %819 = dma.hbm_to_vmem [thread:$0]  %s812, 2048, %s814, %s803, 128, 128, 8
        $region56: #{transformer_classifier_forward.1} parent=27 // pred_fallthru
          _
        // Predicated region
        $region57: #{transformer_classifier_forward.1} parent=27 // pred_check
          %p820 = pneg %p281
        $region58: #{transformer_classifier_forward.1} parent=27 // pred_check_branch
          %822 = sbr.rel (%p820) target = $region60
        $region59: #{transformer_classifier_forward.1} parent=27 // pred_region
          %s823 = sand.u32 %s58, 1
          %s824 = scalar_lea.sflag [#allocation14], %s823
          %s825 = sand.u32 %s271, 1
          %s826 = smul.addr %s825, 2
          %s827 = scalar_lea.vmem [#allocation13], %s826
          %s829 = ssub.s32 32, 32
          %830 = vsyncadd %s824, %s829
          %s831 = smul.addr %s58, 2
          %s832 = smul.addr %s831, 16
          %s833 = scalar_lea.hbm %s8, %s832
          %s835 = sshll.u32 %s827, 4
          %s836 = int_to_ptr.vmem [resolvable:$true] %s835
          %838 = dma.hbm_to_vmem [thread:$0]  %s833, 32, %s836, %s824
        $region60: #{transformer_classifier_forward.1} parent=27 // pred_fallthru
          _
        // Predicated region
        $region61: #{transformer_classifier_forward.1} parent=27 // pred_check
          %p839 = pneg %p307
        $region62: #{transformer_classifier_forward.1} parent=27 // pred_check_branch
          %841 = sbr.rel (%p839) target = $region64
        $region63: #{transformer_classifier_forward.1} parent=27 // pred_region
          %s842 = sand.u32 %s58, 1
          %s843 = scalar_lea.sflag [#allocation14], %s842
          %s844 = sand.u32 %s297, 1
          %s845 = smul.addr %s844, 64
          %s846 = scalar_lea.vmem [#allocation15], %s845
          %s848 = ssub.s32 1024, 1024
          %849 = vsyncadd %s843, %s848
          %s850 = smul.addr %s58, 16
          %s851 = smul.addr %s850, 64
          %s852 = scalar_lea.hbm %s9, %s851
          %s853 = sshll.u32 %s846, 4
          %s854 = int_to_ptr.vmem [resolvable:$true] %s853
          %859 = dma.hbm_to_vmem [thread:$0]  %s852, 1024, %s854, %s843, 64, 64, 4
        $region64: #{transformer_classifier_forward.1} parent=27 // pred_fallthru
          _
        // Predicated region
        $region65: #{transformer_classifier_forward.1} parent=27 // pred_check
          %p860 = pneg %p333
        $region66: #{transformer_classifier_forward.1} parent=27 // pred_check_branch
          %862 = sbr.rel (%p860) target = $region68
        $region67: #{transformer_classifier_forward.1} parent=27 // pred_region
          %s863 = sand.u32 %s58, 1
          %s864 = scalar_lea.sflag [#allocation17], %s863
          %s865 = sand.u32 %s323, 1
          %s866 = scalar_lea.vmem [#allocation16], %s865
          %s868 = ssub.s32 16, 16
          %869 = vsyncadd %s864, %s868
          %s870 = smul.addr %s58, 16
          %s871 = scalar_lea.hbm %s10, %s870
          %s873 = sshll.u32 %s866, 4
          %s874 = int_to_ptr.vmem [resolvable:$true] %s873
          %876 = dma.hbm_to_vmem [thread:$0]  %s871, 16, %s874, %s864
        $region68: #{transformer_classifier_forward.1} parent=27 // pred_fallthru
          _
        // Predicated region
        $region69: #{transformer_classifier_forward.1} parent=27 // pred_check
          %p877 = pneg %p359
        $region70: #{transformer_classifier_forward.1} parent=27 // pred_check_branch
          %879 = sbr.rel (%p877) target = $region72
        $region71: #{transformer_classifier_forward.1} parent=27 // pred_region
          %s880 = sand.u32 %s58, 1
          %s881 = scalar_lea.sflag [#allocation17], %s880
          %s882 = sand.u32 %s349, 1
          %s883 = smul.addr %s882, 1024
          %s884 = scalar_lea.vmem [#allocation18], %s883
          %s886 = ssub.s32 16384, 16384
          %887 = vsyncadd %s881, %s886
          %s888 = smul.addr %s58, 256
          %s889 = smul.addr %s888, 64
          %s890 = scalar_lea.hbm %s11, %s889
          %s891 = sshll.u32 %s884, 4
          %s892 = int_to_ptr.vmem [resolvable:$true] %s891
          %897 = dma.hbm_to_vmem [thread:$0]  %s890, 16384, %s892, %s881, 1024, 1024, 64
        $region72: #{transformer_classifier_forward.1} parent=27 // pred_fallthru
          _
        // Predicated region
        $region73: #{transformer_classifier_forward.1} parent=27 // pred_check
          %p898 = pneg %p385
        $region74: #{transformer_classifier_forward.1} parent=27 // pred_check_branch
          %900 = sbr.rel (%p898) target = $region76
        $region75: #{transformer_classifier_forward.1} parent=27 // pred_region
          %p901 = scmp.lt.s32.totalorder %s58, 1
          %s902 = scalar_select %p901, %s58, 1
          %s903 = smul.addr %s902, 16
          %s904 = scalar_lea.vmem %s12, %s903
        $region76: #{transformer_classifier_forward.1} parent=27 // pred_fallthru
          _
        // Predicated region
        $region77: #{transformer_classifier_forward.1} parent=27 // pred_check
          %p905 = pneg %p411
        $region78: #{transformer_classifier_forward.1} parent=27 // pred_check_branch
          %907 = sbr.rel (%p905) target = $region80
        $region79: #{transformer_classifier_forward.1} parent=27 // pred_region
          %s908 = sand.u32 %s58, 1
          %s909 = scalar_lea.sflag [#allocation20], %s908
          %s910 = sand.u32 %s401, 1
          %s911 = smul.addr %s910, 1024
          %s912 = scalar_lea.vmem [#allocation19], %s911
          %s914 = ssub.s32 16384, 16384
          %915 = vsyncadd %s909, %s914
          %s916 = smul.addr %s58, 256
          %s917 = smul.addr %s916, 64
          %s918 = scalar_lea.hbm %s13, %s917
          %s919 = sshll.u32 %s912, 4
          %s920 = int_to_ptr.vmem [resolvable:$true] %s919
          %925 = dma.hbm_to_vmem [thread:$0]  %s918, 16384, %s920, %s909, 64, 64, 4
        $region80: #{transformer_classifier_forward.1} parent=27 // pred_fallthru
          _
        // Predicated region
        $region81: #{transformer_classifier_forward.1} parent=27 // pred_check
          %p926 = pneg %p437
        $region82: #{transformer_classifier_forward.1} parent=27 // pred_check_branch
          %928 = sbr.rel (%p926) target = $region84
        $region83: #{transformer_classifier_forward.1} parent=27 // pred_region
          %s929 = sand.u32 %s58, 1
          %s930 = scalar_lea.sflag [#allocation20], %s929
          %s931 = sand.u32 %s427, 1
          %s932 = scalar_lea.vmem [#allocation21], %s931
          %s934 = ssub.s32 16, 16
          %935 = vsyncadd %s930, %s934
          %s936 = smul.addr %s58, 16
          %s937 = scalar_lea.hbm %s14, %s936
          %s939 = sshll.u32 %s932, 4
          %s940 = int_to_ptr.vmem [resolvable:$true] %s939
          %942 = dma.hbm_to_vmem [thread:$0]  %s937, 16, %s940, %s930
        $region84: #{transformer_classifier_forward.1} parent=27 // pred_fallthru
          _
        // Predicated region
        $region85: #{transformer_classifier_forward.1} parent=27 // pred_check
          %p943 = pneg %p463
        $region86: #{transformer_classifier_forward.1} parent=27 // pred_check_branch
          %945 = sbr.rel (%p943) target = $region88
        $region87: #{transformer_classifier_forward.1} parent=27 // pred_region
          %s946 = sand.u32 %s58, 1
          %s947 = scalar_lea.sflag [#allocation23], %s946
          %s948 = sand.u32 %s453, 1
          %s949 = scalar_lea.vmem [#allocation22], %s948
          %s951 = ssub.s32 16, 16
          %952 = vsyncadd %s947, %s951
          %s953 = smul.addr %s58, 16
          %s954 = scalar_lea.hbm %s15, %s953
          %s956 = sshll.u32 %s949, 4
          %s957 = int_to_ptr.vmem [resolvable:$true] %s956
          %959 = dma.hbm_to_vmem [thread:$0]  %s954, 16, %s957, %s947
        $region88: #{transformer_classifier_forward.1} parent=27 // pred_fallthru
          _
        // Predicated region
        $region89: #{transformer_classifier_forward.1} parent=27 // pred_check
          %p960 = pneg %p489
        $region90: #{transformer_classifier_forward.1} parent=27 // pred_check_branch
          %962 = sbr.rel (%p960) target = $region92
        $region91: #{transformer_classifier_forward.1} parent=27 // pred_region
          %s963 = sand.u32 %s58, 1
          %s964 = scalar_lea.sflag [#allocation23], %s963
          %s965 = sand.u32 %s479, 1
          %s966 = scalar_lea.vmem [#allocation24], %s965
          %s968 = ssub.s32 16, 16
          %969 = vsyncadd %s964, %s968
          %s970 = smul.addr %s58, 16
          %s971 = scalar_lea.hbm %s16, %s970
          %s973 = sshll.u32 %s966, 4
          %s974 = int_to_ptr.vmem [resolvable:$true] %s973
          %976 = dma.hbm_to_vmem [thread:$0]  %s971, 16, %s974, %s964
        $region92: #{transformer_classifier_forward.1} parent=27 // pred_fallthru
          _
        // Predicated region
        $region93: #{transformer_classifier_forward.1} parent=27 // pred_check
          %p977 = pneg %p515
        $region94: #{transformer_classifier_forward.1} parent=27 // pred_check_branch
          %979 = sbr.rel (%p977) target = $region96
        $region95: #{transformer_classifier_forward.1} parent=27 // pred_region
          %s980 = sand.u32 %s58, 1
          %s981 = scalar_lea.sflag [#allocation26], %s980
          %s982 = sand.u32 %s505, 1
          %s983 = scalar_lea.vmem [#allocation25], %s982
          %s985 = ssub.s32 16, 16
          %986 = vsyncadd %s981, %s985
          %s987 = smul.addr %s58, 16
          %s988 = scalar_lea.hbm %s17, %s987
          %s990 = sshll.u32 %s983, 4
          %s991 = int_to_ptr.vmem [resolvable:$true] %s990
          %993 = dma.hbm_to_vmem [thread:$0]  %s988, 16, %s991, %s981
        $region96: #{transformer_classifier_forward.1} parent=27 // pred_fallthru
          _
        // Predicated region
        $region97: #{transformer_classifier_forward.1} parent=27 // pred_check
          %p994 = pneg %p541
        $region98: #{transformer_classifier_forward.1} parent=27 // pred_check_branch
          %996 = sbr.rel (%p994) target = $region100
        $region99: #{transformer_classifier_forward.1} parent=27 // pred_region
          %s997 = sand.u32 %s58, 1
          %s998 = scalar_lea.sflag [#allocation26], %s997
          %s999 = sand.u32 %s531, 1
          %s1000 = scalar_lea.vmem [#allocation27], %s999
          %s1002 = ssub.s32 16, 16
          %1003 = vsyncadd %s998, %s1002
          %s1004 = smul.addr %s58, 16
          %s1005 = scalar_lea.hbm %s18, %s1004
          %s1007 = sshll.u32 %s1000, 4
          %s1008 = int_to_ptr.vmem [resolvable:$true] %s1007
          %1010 = dma.hbm_to_vmem [thread:$0]  %s1005, 16, %s1008, %s998
        $region100: #{transformer_classifier_forward.1} parent=27 // pred_fallthru
          _
        // Predicated region
        $region101: #{transformer_classifier_forward.1} parent=27 // pred_check
          %p1011 = pneg %p567
        $region102: #{transformer_classifier_forward.1} parent=27 // pred_check_branch
          %1013 = sbr.rel (%p1011) target = $region104
        $region103: #{transformer_classifier_forward.1} parent=27 // pred_region
          %s1014 = sand.u32 %s58, 1
          %s1015 = scalar_lea.sflag [#allocation29], %s1014
          %s1016 = sand.u32 %s557, 1
          %s1017 = scalar_lea.vmem [#allocation28], %s1016
          %s1019 = ssub.s32 16, 16
          %1020 = vsyncadd %s1015, %s1019
          %s1021 = smul.addr %s58, 16
          %s1022 = scalar_lea.hbm %s19, %s1021
          %s1024 = sshll.u32 %s1017, 4
          %s1025 = int_to_ptr.vmem [resolvable:$true] %s1024
          %1027 = dma.hbm_to_vmem [thread:$0]  %s1022, 16, %s1025, %s1015
        $region104: #{transformer_classifier_forward.1} parent=27 // pred_fallthru
          _
        // Predicated region
        $region105: #{transformer_classifier_forward.1} parent=27 // pred_check
          %p1028 = pneg %p593
        $region106: #{transformer_classifier_forward.1} parent=27 // pred_check_branch
          %1030 = sbr.rel (%p1028) target = $region108
        $region107: #{transformer_classifier_forward.1} parent=27 // pred_region
          %s1031 = sand.u32 %s58, 1
          %s1032 = scalar_lea.sflag [#allocation29], %s1031
          %s1033 = sand.u32 %s583, 1
          %s1034 = scalar_lea.vmem [#allocation30], %s1033
          %s1036 = ssub.s32 16, 16
          %1037 = vsyncadd %s1032, %s1036
          %s1038 = smul.addr %s58, 16
          %s1039 = scalar_lea.hbm %s20, %s1038
          %s1041 = sshll.u32 %s1034, 4
          %s1042 = int_to_ptr.vmem [resolvable:$true] %s1041
          %1044 = dma.hbm_to_vmem [thread:$0]  %s1039, 16, %s1042, %s1032
        $region108: #{transformer_classifier_forward.1} parent=27 // pred_fallthru
          _
      $region28: #{transformer_classifier_forward.1} parent=5 // pred_fallthru
        _
      %p1045 = scmp.le.s32.totalorder 1, %s58
      %p1046 = scmp.lt.s32.totalorder %s58, 3
      %p1047 = pnand %p1045, %p1046
      %p1048 = pneg %p1047
      // Predicated region
      $region109: #{transformer_classifier_forward.1} parent=5 // pred_check
        _
      $region110: #{transformer_classifier_forward.1} parent=5 // pred_check_branch
        %1050 = sbr.rel (%p1047) target = $region112
      $region111: #{transformer_classifier_forward.1} parent=5 // pred_region
        %s1051 = ssub.s32 %s58, 1
        %s1052 = sand.u32 %s92, 1
        %s1053 = scalar_lea.sflag [#allocation5], %s1052
        %s1054 = sand.u32 %s92, 1
        %s1055 = smul.addr %s1054, 192
        %s1056 = scalar_lea.vmem [#allocation4], %s1055
        // Predicated region
        $region113: #{transformer_classifier_forward.1} parent=111 // pred_check
          %p1057 = pneg %p105
        $region114: #{transformer_classifier_forward.1} parent=111 // pred_check_branch
          %1059 = sbr.rel (%p1057) target = $region116
        $region115: #{transformer_classifier_forward.1} parent=111 // pred_region
          %1060 = dma.done %s1053, 3072
        $region116: #{transformer_classifier_forward.1} parent=111 // pred_fallthru
          _
        %s1061 = sand.u32 %s63, 1
        %s1062 = scalar_lea.sflag [#allocation8], %s1061
        %s1063 = sand.u32 %s170, 1
        %s1064 = scalar_lea.vmem [#allocation7], %s1063
        // Predicated region
        $region117: #{transformer_classifier_forward.1} parent=111 // pred_check
          %p1065 = pneg %p183
        $region118: #{transformer_classifier_forward.1} parent=111 // pred_check_branch
          %1067 = sbr.rel (%p1065) target = $region120
        $region119: #{transformer_classifier_forward.1} parent=111 // pred_region
          %1068 = dma.done %s1062, 16
        $region120: #{transformer_classifier_forward.1} parent=111 // pred_fallthru
          _
        %s1069 = sand.u32 %s63, 1
        %s1070 = scalar_lea.sflag [#allocation8], %s1069
        %s1071 = sand.u32 %s196, 1
        %s1072 = smul.addr %s1071, 64
        %s1073 = scalar_lea.vmem [#allocation9], %s1072
        // Predicated region
        $region121: #{transformer_classifier_forward.1} parent=111 // pred_check
          %p1074 = pneg %p209
        $region122: #{transformer_classifier_forward.1} parent=111 // pred_check_branch
          %1076 = sbr.rel (%p1074) target = $region124
        $region123: #{transformer_classifier_forward.1} parent=111 // pred_region
          %1077 = dma.done %s1070, 1024
        $region124: #{transformer_classifier_forward.1} parent=111 // pred_fallthru
          _
        %s1078 = sand.u32 %s63, 1
        %s1079 = scalar_lea.sflag [#allocation11], %s1078
        %s1080 = sand.u32 %s222, 1
        %s1081 = scalar_lea.vmem [#allocation10], %s1080
        // Predicated region
        $region125: #{transformer_classifier_forward.1} parent=111 // pred_check
          %p1082 = pneg %p235
        $region126: #{transformer_classifier_forward.1} parent=111 // pred_check_branch
          %1084 = sbr.rel (%p1082) target = $region128
        $region127: #{transformer_classifier_forward.1} parent=111 // pred_region
          %1085 = dma.done %s1079, 16
        $region128: #{transformer_classifier_forward.1} parent=111 // pred_fallthru
          _
        %s1086 = sand.u32 %s63, 1
        %s1087 = scalar_lea.sflag [#allocation11], %s1086
        %s1088 = sand.u32 %s248, 1
        %s1089 = smul.addr %s1088, 128
        %s1090 = scalar_lea.vmem [#allocation12], %s1089
        // Predicated region
        $region129: #{transformer_classifier_forward.1} parent=111 // pred_check
          %p1091 = pneg %p261
        $region130: #{transformer_classifier_forward.1} parent=111 // pred_check_branch
          %1093 = sbr.rel (%p1091) target = $region132
        $region131: #{transformer_classifier_forward.1} parent=111 // pred_region
          %1094 = dma.done %s1087, 2048
        $region132: #{transformer_classifier_forward.1} parent=111 // pred_fallthru
          _
        %s1095 = sand.u32 %s63, 1
        %s1096 = scalar_lea.sflag [#allocation14], %s1095
        %s1097 = sand.u32 %s274, 1
        %s1098 = smul.addr %s1097, 2
        %s1099 = scalar_lea.vmem [#allocation13], %s1098
        // Predicated region
        $region133: #{transformer_classifier_forward.1} parent=111 // pred_check
          %p1100 = pneg %p287
        $region134: #{transformer_classifier_forward.1} parent=111 // pred_check_branch
          %1102 = sbr.rel (%p1100) target = $region136
        $region135: #{transformer_classifier_forward.1} parent=111 // pred_region
          %1103 = dma.done %s1096, 32
        $region136: #{transformer_classifier_forward.1} parent=111 // pred_fallthru
          _
        %s1104 = sand.u32 %s63, 1
        %s1105 = scalar_lea.sflag [#allocation14], %s1104
        %s1106 = sand.u32 %s300, 1
        %s1107 = smul.addr %s1106, 64
        %s1108 = scalar_lea.vmem [#allocation15], %s1107
        // Predicated region
        $region137: #{transformer_classifier_forward.1} parent=111 // pred_check
          %p1109 = pneg %p313
        $region138: #{transformer_classifier_forward.1} parent=111 // pred_check_branch
          %1111 = sbr.rel (%p1109) target = $region140
        $region139: #{transformer_classifier_forward.1} parent=111 // pred_region
          %1112 = dma.done %s1105, 1024
        $region140: #{transformer_classifier_forward.1} parent=111 // pred_fallthru
          _
        %s1113 = sand.u32 %s63, 1
        %s1114 = scalar_lea.sflag [#allocation17], %s1113
        %s1115 = sand.u32 %s326, 1
        %s1116 = scalar_lea.vmem [#allocation16], %s1115
        // Predicated region
        $region141: #{transformer_classifier_forward.1} parent=111 // pred_check
          %p1117 = pneg %p339
        $region142: #{transformer_classifier_forward.1} parent=111 // pred_check_branch
          %1119 = sbr.rel (%p1117) target = $region144
        $region143: #{transformer_classifier_forward.1} parent=111 // pred_region
          %1120 = dma.done %s1114, 16
        $region144: #{transformer_classifier_forward.1} parent=111 // pred_fallthru
          _
        %s1121 = sand.u32 %s63, 1
        %s1122 = scalar_lea.sflag [#allocation17], %s1121
        %s1123 = sand.u32 %s352, 1
        %s1124 = smul.addr %s1123, 1024
        %s1125 = scalar_lea.vmem [#allocation18], %s1124
        // Predicated region
        $region145: #{transformer_classifier_forward.1} parent=111 // pred_check
          %p1126 = pneg %p365
        $region146: #{transformer_classifier_forward.1} parent=111 // pred_check_branch
          %1128 = sbr.rel (%p1126) target = $region148
        $region147: #{transformer_classifier_forward.1} parent=111 // pred_region
          %1129 = dma.done %s1122, 16384
        $region148: #{transformer_classifier_forward.1} parent=111 // pred_fallthru
          _
        %s1130 = sand.u32 %s63, 1
        %s1131 = scalar_lea.sflag [#allocation20], %s1130
        %s1132 = sand.u32 %s404, 1
        %s1133 = smul.addr %s1132, 1024
        %s1134 = scalar_lea.vmem [#allocation19], %s1133
        // Predicated region
        $region149: #{transformer_classifier_forward.1} parent=111 // pred_check
          %p1135 = pneg %p417
        $region150: #{transformer_classifier_forward.1} parent=111 // pred_check_branch
          %1137 = sbr.rel (%p1135) target = $region152
        $region151: #{transformer_classifier_forward.1} parent=111 // pred_region
          %1138 = dma.done %s1131, 16384
        $region152: #{transformer_classifier_forward.1} parent=111 // pred_fallthru
          _
        %s1139 = sand.u32 %s63, 1
        %s1140 = scalar_lea.sflag [#allocation20], %s1139
        %s1141 = sand.u32 %s430, 1
        %s1142 = scalar_lea.vmem [#allocation21], %s1141
        // Predicated region
        $region153: #{transformer_classifier_forward.1} parent=111 // pred_check
          %p1143 = pneg %p443
        $region154: #{transformer_classifier_forward.1} parent=111 // pred_check_branch
          %1145 = sbr.rel (%p1143) target = $region156
        $region155: #{transformer_classifier_forward.1} parent=111 // pred_region
          %1146 = dma.done %s1140, 16
        $region156: #{transformer_classifier_forward.1} parent=111 // pred_fallthru
          _
        %s1147 = sand.u32 %s63, 1
        %s1148 = scalar_lea.sflag [#allocation23], %s1147
        %s1149 = sand.u32 %s456, 1
        %s1150 = scalar_lea.vmem [#allocation22], %s1149
        // Predicated region
        $region157: #{transformer_classifier_forward.1} parent=111 // pred_check
          %p1151 = pneg %p469
        $region158: #{transformer_classifier_forward.1} parent=111 // pred_check_branch
          %1153 = sbr.rel (%p1151) target = $region160
        $region159: #{transformer_classifier_forward.1} parent=111 // pred_region
          %1154 = dma.done %s1148, 16
        $region160: #{transformer_classifier_forward.1} parent=111 // pred_fallthru
          _
        %s1155 = sand.u32 %s63, 1
        %s1156 = scalar_lea.sflag [#allocation23], %s1155
        %s1157 = sand.u32 %s482, 1
        %s1158 = scalar_lea.vmem [#allocation24], %s1157
        // Predicated region
        $region161: #{transformer_classifier_forward.1} parent=111 // pred_check
          %p1159 = pneg %p495
        $region162: #{transformer_classifier_forward.1} parent=111 // pred_check_branch
          %1161 = sbr.rel (%p1159) target = $region164
        $region163: #{transformer_classifier_forward.1} parent=111 // pred_region
          %1162 = dma.done %s1156, 16
        $region164: #{transformer_classifier_forward.1} parent=111 // pred_fallthru
          _
        %s1163 = sand.u32 %s63, 1
        %s1164 = scalar_lea.sflag [#allocation26], %s1163
        %s1165 = sand.u32 %s508, 1
        %s1166 = scalar_lea.vmem [#allocation25], %s1165
        // Predicated region
        $region165: #{transformer_classifier_forward.1} parent=111 // pred_check
          %p1167 = pneg %p521
        $region166: #{transformer_classifier_forward.1} parent=111 // pred_check_branch
          %1169 = sbr.rel (%p1167) target = $region168
        $region167: #{transformer_classifier_forward.1} parent=111 // pred_region
          %1170 = dma.done %s1164, 16
        $region168: #{transformer_classifier_forward.1} parent=111 // pred_fallthru
          _
        %s1171 = sand.u32 %s63, 1
        %s1172 = scalar_lea.sflag [#allocation26], %s1171
        %s1173 = sand.u32 %s534, 1
        %s1174 = scalar_lea.vmem [#allocation27], %s1173
        // Predicated region
        $region169: #{transformer_classifier_forward.1} parent=111 // pred_check
          %p1175 = pneg %p547
        $region170: #{transformer_classifier_forward.1} parent=111 // pred_check_branch
          %1177 = sbr.rel (%p1175) target = $region172
        $region171: #{transformer_classifier_forward.1} parent=111 // pred_region
          %1178 = dma.done %s1172, 16
        $region172: #{transformer_classifier_forward.1} parent=111 // pred_fallthru
          _
        %s1179 = sand.u32 %s63, 1
        %s1180 = scalar_lea.sflag [#allocation29], %s1179
        %s1181 = sand.u32 %s560, 1
        %s1182 = scalar_lea.vmem [#allocation28], %s1181
        // Predicated region
        $region173: #{transformer_classifier_forward.1} parent=111 // pred_check
          %p1183 = pneg %p573
        $region174: #{transformer_classifier_forward.1} parent=111 // pred_check_branch
          %1185 = sbr.rel (%p1183) target = $region176
        $region175: #{transformer_classifier_forward.1} parent=111 // pred_region
          %1186 = dma.done %s1180, 16
        $region176: #{transformer_classifier_forward.1} parent=111 // pred_fallthru
          _
        %s1187 = sand.u32 %s63, 1
        %s1188 = scalar_lea.sflag [#allocation29], %s1187
        %s1189 = sand.u32 %s586, 1
        %s1190 = scalar_lea.vmem [#allocation30], %s1189
        // Predicated region
        $region177: #{transformer_classifier_forward.1} parent=111 // pred_check
          %p1191 = pneg %p599
        $region178: #{transformer_classifier_forward.1} parent=111 // pred_check_branch
          %1193 = sbr.rel (%p1191) target = $region180
        $region179: #{transformer_classifier_forward.1} parent=111 // pred_region
          %1194 = dma.done %s1188, 16
        $region180: #{transformer_classifier_forward.1} parent=111 // pred_fallthru
          _
        // Predicated region
        $region181: #{transformer_classifier_forward.1} parent=111 // pred_check
          %p1195 = pneg %p620
        $region182: #{transformer_classifier_forward.1} parent=111 // pred_check_branch
          %1197 = sbr.rel (%p1195) target = $region184
        $region183: #{transformer_classifier_forward.1} parent=111 // pred_region
          %1198 = dma.done [#allocation32], 2048
        $region184: #{transformer_classifier_forward.1} parent=111 // pred_fallthru
          _
        // Predicated region
        $region185: #{transformer_classifier_forward.1} parent=111 // pred_check
          %p1199 = pneg %p641
        $region186: #{transformer_classifier_forward.1} parent=111 // pred_check_branch
          %1201 = sbr.rel (%p1199) target = $region188
        $region187: #{transformer_classifier_forward.1} parent=111 // pred_region
          %1202 = dma.done [#allocation32], 16
        $region188: #{transformer_classifier_forward.1} parent=111 // pred_fallthru
          _
        %p1203 = pneg %p79
        %p1204 = pneg %p76
        %s1205 = sand.u32 %s92, 1
        %s1206 = scalar_lea.sflag [#allocation5], %s1205
        %s1207 = sand.u32 %s92, 1
        %s1208 = smul.addr %s1207, 192
        %s1209 = scalar_lea.vmem [#allocation4], %s1208
        %p1210 = pneg %p105
        %p1211 = pneg %p102
        %p1212 = scmp.lt.s32.totalorder %s63, 1
        %s1213 = scalar_select %p1212, %s63, 1
        %s1214 = smul.addr %s1213, 3
        %s1215 = scalar_lea.vmem %s2, %s1214
        %p1216 = pneg %p131
        %p1217 = pneg %p128
        %p1218 = scmp.lt.s32.totalorder %s63, 1
        %s1219 = scalar_select %p1218, %s63, 1
        %s1220 = smul.addr %s1219, 16
        %s1221 = smul.addr %s1220, 4
        %s1222 = scalar_lea.vmem %s3, %s1221
        %p1223 = pneg %p157
        %p1224 = pneg %p154
        %s1225 = sand.u32 %s63, 1
        %s1226 = scalar_lea.sflag [#allocation8], %s1225
        %s1227 = sand.u32 %s170, 1
        %s1228 = scalar_lea.vmem [#allocation7], %s1227
        %p1229 = pneg %p183
        %p1230 = pneg %p180
        %s1231 = sand.u32 %s63, 1
        %s1232 = scalar_lea.sflag [#allocation8], %s1231
        %s1233 = sand.u32 %s196, 1
        %s1234 = smul.addr %s1233, 64
        %s1235 = scalar_lea.vmem [#allocation9], %s1234
        %p1236 = pneg %p209
        %p1237 = pneg %p206
        %s1238 = sand.u32 %s63, 1
        %s1239 = scalar_lea.sflag [#allocation11], %s1238
        %s1240 = sand.u32 %s222, 1
        %s1241 = scalar_lea.vmem [#allocation10], %s1240
        %p1242 = pneg %p235
        %p1243 = pneg %p232
        %s1244 = sand.u32 %s63, 1
        %s1245 = scalar_lea.sflag [#allocation11], %s1244
        %s1246 = sand.u32 %s248, 1
        %s1247 = smul.addr %s1246, 128
        %s1248 = scalar_lea.vmem [#allocation12], %s1247
        %p1249 = pneg %p261
        %p1250 = pneg %p258
        %s1251 = sand.u32 %s63, 1
        %s1252 = scalar_lea.sflag [#allocation14], %s1251
        %s1253 = sand.u32 %s274, 1
        %s1254 = smul.addr %s1253, 2
        %s1255 = scalar_lea.vmem [#allocation13], %s1254
        %p1256 = pneg %p287
        %p1257 = pneg %p284
        %s1258 = sand.u32 %s63, 1
        %s1259 = scalar_lea.sflag [#allocation14], %s1258
        %s1260 = sand.u32 %s300, 1
        %s1261 = smul.addr %s1260, 64
        %s1262 = scalar_lea.vmem [#allocation15], %s1261
        %p1263 = pneg %p313
        %p1264 = pneg %p310
        %s1265 = sand.u32 %s63, 1
        %s1266 = scalar_lea.sflag [#allocation17], %s1265
        %s1267 = sand.u32 %s326, 1
        %s1268 = scalar_lea.vmem [#allocation16], %s1267
        %p1269 = pneg %p339
        %p1270 = pneg %p336
        %s1271 = sand.u32 %s63, 1
        %s1272 = scalar_lea.sflag [#allocation17], %s1271
        %s1273 = sand.u32 %s352, 1
        %s1274 = smul.addr %s1273, 1024
        %s1275 = scalar_lea.vmem [#allocation18], %s1274
        %p1276 = pneg %p365
        %p1277 = pneg %p362
        %p1278 = scmp.lt.s32.totalorder %s63, 1
        %s1279 = scalar_select %p1278, %s63, 1
        %s1280 = smul.addr %s1279, 16
        %s1281 = scalar_lea.vmem %s12, %s1280
        %p1282 = pneg %p391
        %p1283 = pneg %p388
        %s1284 = sand.u32 %s63, 1
        %s1285 = scalar_lea.sflag [#allocation20], %s1284
        %s1286 = sand.u32 %s404, 1
        %s1287 = smul.addr %s1286, 1024
        %s1288 = scalar_lea.vmem [#allocation19], %s1287
        %p1289 = pneg %p417
        %p1290 = pneg %p414
        %s1291 = sand.u32 %s63, 1
        %s1292 = scalar_lea.sflag [#allocation20], %s1291
        %s1293 = sand.u32 %s430, 1
        %s1294 = scalar_lea.vmem [#allocation21], %s1293
        %p1295 = pneg %p443
        %p1296 = pneg %p440
        %s1297 = sand.u32 %s63, 1
        %s1298 = scalar_lea.sflag [#allocation23], %s1297
        %s1299 = sand.u32 %s456, 1
        %s1300 = scalar_lea.vmem [#allocation22], %s1299
        %p1301 = pneg %p469
        %p1302 = pneg %p466
        %s1303 = sand.u32 %s63, 1
        %s1304 = scalar_lea.sflag [#allocation23], %s1303
        %s1305 = sand.u32 %s482, 1
        %s1306 = scalar_lea.vmem [#allocation24], %s1305
        %p1307 = pneg %p495
        %p1308 = pneg %p492
        %s1309 = sand.u32 %s63, 1
        %s1310 = scalar_lea.sflag [#allocation26], %s1309
        %s1311 = sand.u32 %s508, 1
        %s1312 = scalar_lea.vmem [#allocation25], %s1311
        %p1313 = pneg %p521
        %p1314 = pneg %p518
        %s1315 = sand.u32 %s63, 1
        %s1316 = scalar_lea.sflag [#allocation26], %s1315
        %s1317 = sand.u32 %s534, 1
        %s1318 = scalar_lea.vmem [#allocation27], %s1317
        %p1319 = pneg %p547
        %p1320 = pneg %p544
        %s1321 = sand.u32 %s63, 1
        %s1322 = scalar_lea.sflag [#allocation29], %s1321
        %s1323 = sand.u32 %s560, 1
        %s1324 = scalar_lea.vmem [#allocation28], %s1323
        %p1325 = pneg %p573
        %p1326 = pneg %p570
        %s1327 = sand.u32 %s63, 1
        %s1328 = scalar_lea.sflag [#allocation29], %s1327
        %s1329 = sand.u32 %s586, 1
        %s1330 = scalar_lea.vmem [#allocation30], %s1329
        %p1331 = pneg %p599
        %p1332 = pneg %p596
        %p1333 = pneg %p620
        %p1334 = pneg %p617
        %p1335 = pneg %p641
        %p1336 = pneg %p638
        %p1337 = pneg %p662
        %p1338 = pneg %p659
        %p1339 = scmp.lt.s32.totalorder %s63, 1
        %s1340 = scalar_select %p1339, %s63, 1
        %s1341 = smul.addr %s1340, 3
        %s1342 = scalar_lea.vmem %s2, %s1341
        %p1343 = scmp.lt.s32.totalorder %s63, 1
        %s1344 = scalar_select %p1343, %s63, 1
        %s1345 = smul.addr %s1344, 16
        %s1346 = smul.addr %s1345, 4
        %s1347 = scalar_lea.vmem %s3, %s1346
        %p1348 = scmp.lt.s32.totalorder %s63, 1
        %s1349 = scalar_select %p1348, %s63, 1
        %s1350 = smul.addr %s1349, 16
        %s1351 = scalar_lea.vmem %s12, %s1350
        %p1353 = scmp.eq.s32.totalorder %s63, 0
        // Predicated region
        $region189: #{transformer_classifier_forward.1} parent=111 // pred_check
          %p1354 = pneg %p1353
        $region190: #{transformer_classifier_forward.1} parent=111 // pred_check_branch
          %1356 = sbr.rel (%p1354) target = $region192
        $region191: #{transformer_classifier_forward.1} parent=111 // pred_region
          %v1357 = vld [vmem:[%s0] sm:$0xff]
          %1358 = vst [vmem:[#allocation2] sm:$0xff] %v1357
        $region192: #{transformer_classifier_forward.1} parent=111 // pred_fallthru
          _
        %v1359 = vld [vmem:[#allocation2] sm:$0xff]
        %v1360 = vld [vmem:[%s0] sm:$0xff]
        %v1361 = vlaneseq
        %v1362 = vshrl.u32 %v1361, 7
        %v1363 = vlaneseq
        %v1364 = vand.u32 %v1363, 127
        %vm1365 = vcmp.gt.s32.totalorder %v1364, %v1362
        %v1366 = vsel %vm1365, -1e+30, 0.0
        %v1367 = vpack.c.bf16 %v1359, %v1359
        %v1368 = vld [vmem:[%s1056] sm:$0xff]
        %v1369 = vld [vmem:[%s1056 + $0x8] sm:$0xf]
        %v1370 = vld [vmem:[%s1056 + $0xc] sm:$0xff]
        %v1371 = vld [vmem:[%s1056 + $0x14] sm:$0xf]
        %v1372 = vld [vmem:[%s1056 + $0x18] sm:$0xff]
        %v1373 = vld [vmem:[%s1056 + $0x20] sm:$0xf]
        %v1374 = vld [vmem:[%s1056 + $0x24] sm:$0xff]
        %v1375 = vld [vmem:[%s1056 + $0x2c] sm:$0xf]
        %v1376 = vld [vmem:[%s1056 + $0x30] sm:$0xff]
        %v1377 = vld [vmem:[%s1056 + $0x38] sm:$0xf]
        %v1378 = vld [vmem:[%s1056 + $0x3c] sm:$0xff]
        %v1379 = vld [vmem:[%s1056 + $0x44] sm:$0xf]
        %v1380 = vld [vmem:[%s1056 + $0x48] sm:$0xff]
        %v1381 = vld [vmem:[%s1056 + $0x50] sm:$0xf]
        %v1382 = vld [vmem:[%s1056 + $0x54] sm:$0xff]
        %v1383 = vld [vmem:[%s1056 + $0x5c] sm:$0xf]
        %v1384 = vld [vmem:[%s1056 + $0x60] sm:$0xff]
        %v1385 = vld [vmem:[%s1056 + $0x68] sm:$0xf]
        %v1386 = vld [vmem:[%s1056 + $0x6c] sm:$0xff]
        %v1387 = vld [vmem:[%s1056 + $0x74] sm:$0xf]
        %v1388 = vld [vmem:[%s1056 + $0x78] sm:$0xff]
        %v1389 = vld [vmem:[%s1056 + $0x80] sm:$0xf]
        %v1390 = vld [vmem:[%s1056 + $0x84] sm:$0xff]
        %v1391 = vld [vmem:[%s1056 + $0x8c] sm:$0xf]
        %v1392 = vld [vmem:[%s1056 + $0x90] sm:$0xff]
        %v1393 = vld [vmem:[%s1056 + $0x98] sm:$0xf]
        %v1394 = vld [vmem:[%s1056 + $0x9c] sm:$0xff]
        %v1395 = vld [vmem:[%s1056 + $0xa4] sm:$0xf]
        %v1396 = vld [vmem:[%s1056 + $0xa8] sm:$0xff]
        %v1397 = vld [vmem:[%s1056 + $0xb0] sm:$0xf]
        %v1398 = vld [vmem:[%s1056 + $0xb4] sm:$0xff]
        %v1399 = vld [vmem:[%s1056 + $0xbc] sm:$0xf]
        %v1400 = vld [vmem:[%s1342] sm:$0x7]
        %v1402 = vlaneseq
        %v1403 = vshrl.u32 %v1402, 7
        %v1404 = vsub.s32 0, %v1403
        %v1405 = vrot.slane %v1400, %v1404
        %v1406 = vlaneseq
        %v1407 = vshrl.u32 %v1406, 7
        %v1408 = vsub.s32 1, %v1407
        %v1409 = vrot.slane %v1400, %v1408
        %v1410 = vlaneseq
        %v1411 = vshrl.u32 %v1410, 7
        %v1412 = vsub.s32 2, %v1411
        %v1413 = vrot.slane %v1400, %v1412
        %v1449 = vunpack.c.l.b16 %v1368
        %v1450 = vunpack.c.h.b16 %v1368
        %v1451 = vunpack.c.l.b16 %v1369
        %v1452 = vunpack.c.l.b16 %v1370
        %v1453 = vunpack.c.h.b16 %v1370
        %v1454 = vunpack.c.l.b16 %v1371
        %v1455 = vunpack.c.l.b16 %v1372
        %v1456 = vunpack.c.h.b16 %v1372
        %v1457 = vunpack.c.l.b16 %v1373
        %v1458 = vunpack.c.l.b16 %v1374
        %v1459 = vunpack.c.h.b16 %v1374
        %v1460 = vunpack.c.l.b16 %v1375
        %v1461 = vunpack.c.l.b16 %v1376
        %v1462 = vunpack.c.h.b16 %v1376
        %v1463 = vunpack.c.l.b16 %v1377
        %v1464 = vunpack.c.l.b16 %v1378
        %v1465 = vunpack.c.h.b16 %v1378
        %v1466 = vunpack.c.l.b16 %v1379
        %v1467 = vunpack.c.l.b16 %v1380
        %v1468 = vunpack.c.h.b16 %v1380
        %v1469 = vunpack.c.l.b16 %v1381
        %v1470 = vunpack.c.l.b16 %v1382
        %v1471 = vunpack.c.h.b16 %v1382
        %v1472 = vunpack.c.l.b16 %v1383
        %v1473 = vunpack.c.l.b16 %v1384
        %v1474 = vunpack.c.h.b16 %v1384
        %v1475 = vunpack.c.l.b16 %v1385
        %v1476 = vunpack.c.l.b16 %v1386
        %v1477 = vunpack.c.h.b16 %v1386
        %v1478 = vunpack.c.l.b16 %v1387
        %v1479 = vunpack.c.l.b16 %v1388
        %v1480 = vunpack.c.h.b16 %v1388
        %v1481 = vunpack.c.l.b16 %v1389
        %v1482 = vunpack.c.l.b16 %v1390
        %v1483 = vunpack.c.h.b16 %v1390
        %v1484 = vunpack.c.l.b16 %v1391
        %v1485 = vunpack.c.l.b16 %v1392
        %v1486 = vunpack.c.h.b16 %v1392
        %v1487 = vunpack.c.l.b16 %v1393
        %v1488 = vunpack.c.l.b16 %v1394
        %v1489 = vunpack.c.h.b16 %v1394
        %v1490 = vunpack.c.l.b16 %v1395
        %v1491 = vunpack.c.l.b16 %v1396
        %v1492 = vunpack.c.h.b16 %v1396
        %v1493 = vunpack.c.l.b16 %v1397
        %v1494 = vunpack.c.l.b16 %v1398
        %v1495 = vunpack.c.h.b16 %v1398
        %v1496 = vunpack.c.l.b16 %v1399
        %v1497 = vpack.c.b16 %v1452, %v1449
        %v1498 = vpack.c.b16 %v1453, %v1450
        %v1499 = vpack.c.b16 %v1454, %v1451
        %v1500 = vpack.c.b16 %v1458, %v1455
        %v1501 = vpack.c.b16 %v1459, %v1456
        %v1502 = vpack.c.b16 %v1460, %v1457
        %v1503 = vpack.c.b16 %v1464, %v1461
        %v1504 = vpack.c.b16 %v1465, %v1462
        %v1505 = vpack.c.b16 %v1466, %v1463
        %v1506 = vpack.c.b16 %v1470, %v1467
        %v1507 = vpack.c.b16 %v1471, %v1468
        %v1508 = vpack.c.b16 %v1472, %v1469
        %v1509 = vpack.c.b16 %v1476, %v1473
        %v1510 = vpack.c.b16 %v1477, %v1474
        %v1511 = vpack.c.b16 %v1478, %v1475
        %v1512 = vpack.c.b16 %v1482, %v1479
        %v1513 = vpack.c.b16 %v1483, %v1480
        %v1514 = vpack.c.b16 %v1484, %v1481
        %v1515 = vpack.c.b16 %v1488, %v1485
        %v1516 = vpack.c.b16 %v1489, %v1486
        %v1517 = vpack.c.b16 %v1490, %v1487
        %v1518 = vpack.c.b16 %v1494, %v1491
        %v1519 = vpack.c.b16 %v1495, %v1492
        %v1520 = vpack.c.b16 %v1496, %v1493
        %1545 = vmatprep.subr.bf16.mxu0 %v1498
        %1546 = vmatpush1.bf16.msra.mxu0 %v1497
        %1547 = vmatprep.subr.bf16.mxu0 %v1501
        %1548 = vmatpush1.bf16.msra.mxu0 %v1500
        %1549 = vmatprep.subr.bf16.mxu0 %v1504
        %1550 = vmatpush1.bf16.msra.mxu0 %v1503
        %1551 = vmatprep.subr.bf16.mxu0 %v1507
        %1552 = vmatpush1.bf16.msra.mxu0 %v1506
        %1553 = vmatprep.subr.bf16.mxu0 %v1510
        %1554 = vmatpush1.bf16.msra.mxu0 %v1509
        %1555 = vmatprep.subr.bf16.mxu0 %v1513
        %1556 = vmatpush1.bf16.msra.mxu0 %v1512
        %1557 = vmatprep.subr.bf16.mxu0 %v1516
        %1558 = vmatpush1.bf16.msra.mxu0 %v1515
        %1559 = vmatprep.subr.bf16.mxu0 %v1519
        %1560 = vmatpush1.bf16.msra.mxu0 %v1518
        %1561 = vmatprep.subr.bf16.mxu0 0
        %1562 = vmatpush1.bf16.msra.mxu0 0
        %1563 = vmatprep.subr.bf16.mxu0 0
        %1564 = vmatpush1.bf16.msra.mxu0 0
        %1565 = vmatprep.subr.bf16.mxu0 0
        %1566 = vmatpush1.bf16.msra.mxu0 0
        %1567 = vmatprep.subr.bf16.mxu0 0
        %1568 = vmatpush1.bf16.msra.mxu0 0
        %1569 = vmatprep.subr.bf16.mxu0 0
        %1570 = vmatpush1.bf16.msra.mxu0 0
        %1571 = vmatprep.subr.bf16.mxu0 0
        %1572 = vmatpush1.bf16.msra.mxu0 0
        %1573 = vmatprep.subr.bf16.mxu0 0
        %1574 = vmatpush1.bf16.msra.mxu0 0
        %1575 = vmatprep.subr.bf16.mxu0 0
        %1576 = vmatpush1.bf16.msra.mxu0 0
        %1577 = vmatprep.mubr.bf16.mxu0 0
        %1578 = vmatmul.mubr.bf16.gmra.mrb[0].mxu0 %v1367
        %v1579 = vpop.f32.mrb[0].mxu0
        %v1580 = vadd.f32 %v1405, %v1579
        %v1581 = vpop.f32.mrb[0].mxu0
        %v1582 = vadd.f32 %v1409, %v1581
        %v1583 = vpop.f32.mrb[0].mxu0
        %v1584 = vpop.f32.mrb[0].mxu0
        %1585 = vdwg.mxu0
        %1586 = vmatprep.subr.bf16.mxu0 0
        %1587 = vmatpush1.bf16.msra.mxu0 %v1499
        %1588 = vmatprep.subr.bf16.mxu0 0
        %1589 = vmatpush1.bf16.msra.mxu0 %v1502
        %1590 = vmatprep.subr.bf16.mxu0 0
        %1591 = vmatpush1.bf16.msra.mxu0 %v1505
        %1592 = vmatprep.subr.bf16.mxu0 0
        %1593 = vmatpush1.bf16.msra.mxu0 %v1508
        %1594 = vmatprep.subr.bf16.mxu0 0
        %1595 = vmatpush1.bf16.msra.mxu0 %v1511
        %1596 = vmatprep.subr.bf16.mxu0 0
        %1597 = vmatpush1.bf16.msra.mxu0 %v1514
        %1598 = vmatprep.subr.bf16.mxu0 0
        %1599 = vmatpush1.bf16.msra.mxu0 %v1517
        %1600 = vmatprep.subr.bf16.mxu0 0
        %1601 = vmatpush1.bf16.msra.mxu0 %v1520
        %1602 = vmatprep.subr.bf16.mxu0 0
        %1603 = vmatpush1.bf16.msra.mxu0 0
        %1604 = vmatprep.subr.bf16.mxu0 0
        %1605 = vmatpush1.bf16.msra.mxu0 0
        %1606 = vmatprep.subr.bf16.mxu0 0
        %1607 = vmatpush1.bf16.msra.mxu0 0
        %1608 = vmatprep.subr.bf16.mxu0 0
        %1609 = vmatpush1.bf16.msra.mxu0 0
        %1610 = vmatprep.subr.bf16.mxu0 0
        %1611 = vmatpush1.bf16.msra.mxu0 0
        %1612 = vmatprep.subr.bf16.mxu0 0
        %1613 = vmatpush1.bf16.msra.mxu0 0
        %1614 = vmatprep.subr.bf16.mxu0 0
        %1615 = vmatpush1.bf16.msra.mxu0 0
        %1616 = vmatprep.subr.bf16.mxu0 0
        %1617 = vmatpush1.bf16.msra.mxu0 0
        %1618 = vmatprep.mubr.bf16.mxu0 0
        %1619 = vmatmul.mubr.bf16.gmra.mrb[0].mxu0 %v1367
        %v1620 = vpop.f32.mrb[0].mxu0
        %v1621 = vadd.f32 %v1413, %v1620
        %v1622 = vpop.f32.mrb[0].mxu0
        %v1623 = vpop.f32.mrb[0].mxu0
        %v1624 = vpop.f32.mrb[0].mxu0
        %1625 = vdwg.mxu0
        %v1626 = vpack.c.bf16 %v1580, %v1580
        %v1627 = vpack.c.bf16 %v1582, %v1582
        %v1628 = vpack.c.bf16 %v1621, %v1621
        %vm1629 = vcmask 261120
        %v1631 = vsel %vm1629, %v1626, 0
        %v1634 = vsel %vm1629, %v1627, 0
        %1636 = vmatprep.subr.bf16.mxu0 0
        %1637 = vmatpush1.bf16.xpose.msra.mxu0 %v1634
        %1638 = vmatprep.subr.bf16.mxu0 0
        %1639 = vmatpush1.bf16.xpose.msra.mxu0 0
        %1640 = vmatprep.subr.bf16.mxu0 0
        %1641 = vmatpush1.bf16.xpose.msra.mxu0 0
        %1642 = vmatprep.subr.bf16.mxu0 0
        %1643 = vmatpush1.bf16.xpose.msra.mxu0 0
        %1644 = vmatprep.subr.bf16.mxu0 0
        %1645 = vmatpush1.bf16.xpose.msra.mxu0 0
        %1646 = vmatprep.subr.bf16.mxu0 0
        %1647 = vmatpush1.bf16.xpose.msra.mxu0 0
        %1648 = vmatprep.subr.bf16.mxu0 0
        %1649 = vmatpush1.bf16.xpose.msra.mxu0 0
        %1650 = vmatprep.subr.bf16.mxu0 0
        %1651 = vmatpush1.bf16.xpose.msra.mxu0 0
        %1652 = vmatprep.subr.bf16.mxu0 0
        %1653 = vmatpush1.bf16.xpose.msra.mxu0 0
        %1654 = vmatprep.subr.bf16.mxu0 0
        %1655 = vmatpush1.bf16.xpose.msra.mxu0 0
        %1656 = vmatprep.subr.bf16.mxu0 0
        %1657 = vmatpush1.bf16.xpose.msra.mxu0 0
        %1658 = vmatprep.subr.bf16.mxu0 0
        %1659 = vmatpush1.bf16.xpose.msra.mxu0 0
        %1660 = vmatprep.subr.bf16.mxu0 0
        %1661 = vmatpush1.bf16.xpose.msra.mxu0 0
        %1662 = vmatprep.subr.bf16.mxu0 0
        %1663 = vmatpush1.bf16.xpose.msra.mxu0 0
        %1664 = vmatprep.subr.bf16.mxu0 0
        %1665 = vmatpush1.bf16.xpose.msra.mxu0 0
        %1666 = vmatprep.subr.bf16.mxu0 0
        %1667 = vmatpush1.bf16.xpose.msra.mxu0 0
        %1668 = vmatprep.mubr.bf16.mxu0 0
        %1669 = vmatmul.mubr.bf16.gmra.mrb[0].mxu0 %v1631
        %v1670 = vpop.f32.mrb[0].mxu0
        %v1671 = vadd.f32 %v1366, %v1670
        %v1672 = vpop.f32.mrb[0].mxu0
        %v1673 = vpop.f32.mrb[0].mxu0
        %v1674 = vpop.f32.mrb[0].mxu0
        %1675 = vdwg.mxu0
        %vm1676 = vcmask 64512
        %v1677 = vsel %vm1676, %v1671, -inf
        %1678 = vmax.xlane.f32.xlu0 %v1677
        %v1679 = vpop.xlane.xlu0 %1678
        %v1680 = vsub.f32 %v1671, %v1679
        %v1681 = vmul.f32 %v1680, 1.442695
        %v1682 = vpow.pop %v1681
        %v1683 = vsel %vm1676, %v1682, 0.0
        %1684 = vadd.xlane.f32.xlu0 %v1683
        %v1685 = vpop.xlane.xlu0 %1684
        %v1686 = vrcp.pop %v1685
        %v1687 = vmul.f32 %v1682, %v1686
        %v1688 = vpack.c.bf16 %v1687, %v1687
        %v1690 = vsel %vm1676, %v1688, 0
        %vm1692 = vcmask 1043456
        %v1694 = vsel %vm1692, %v1628, 0
        %1696 = vmatprep.subr.bf16.mxu0 0
        %1697 = vmatpush1.bf16.msra.mxu0 %v1694
        %1698 = vmatprep.subr.bf16.mxu0 0
        %1699 = vmatpush1.bf16.msra.mxu0 0
        %1700 = vmatprep.subr.bf16.mxu0 0
        %1701 = vmatpush1.bf16.msra.mxu0 0
        %1702 = vmatprep.subr.bf16.mxu0 0
        %1703 = vmatpush1.bf16.msra.mxu0 0
        %1704 = vmatprep.subr.bf16.mxu0 0
        %1705 = vmatpush1.bf16.msra.mxu0 0
        %1706 = vmatprep.subr.bf16.mxu0 0
        %1707 = vmatpush1.bf16.msra.mxu0 0
        %1708 = vmatprep.subr.bf16.mxu0 0
        %1709 = vmatpush1.bf16.msra.mxu0 0
        %1710 = vmatprep.subr.bf16.mxu0 0
        %1711 = vmatpush1.bf16.msra.mxu0 0
        %1712 = vmatprep.subr.bf16.mxu0 0
        %1713 = vmatpush1.bf16.msra.mxu0 0
        %1714 = vmatprep.subr.bf16.mxu0 0
        %1715 = vmatpush1.bf16.msra.mxu0 0
        %1716 = vmatprep.subr.bf16.mxu0 0
        %1717 = vmatpush1.bf16.msra.mxu0 0
        %1718 = vmatprep.subr.bf16.mxu0 0
        %1719 = vmatpush1.bf16.msra.mxu0 0
        %1720 = vmatprep.subr.bf16.mxu0 0
        %1721 = vmatpush1.bf16.msra.mxu0 0
        %1722 = vmatprep.subr.bf16.mxu0 0
        %1723 = vmatpush1.bf16.msra.mxu0 0
        %1724 = vmatprep.subr.bf16.mxu0 0
        %1725 = vmatpush1.bf16.msra.mxu0 0
        %1726 = vmatprep.subr.bf16.mxu0 0
        %1727 = vmatpush1.bf16.msra.mxu0 0
        %1728 = vmatprep.mubr.bf16.mxu0 0
        %1729 = vmatmul.mubr.bf16.gmra.mrb[0].mxu0 %v1690
        %v1730 = vpop.f32.mrb[0].mxu0
        %v1731 = vadd.f32 0.0, %v1730
        %v1732 = vpop.f32.mrb[0].mxu0
        %v1733 = vpop.f32.mrb[0].mxu0
        %v1734 = vpop.f32.mrb[0].mxu0
        %1735 = vdwg.mxu0
        %1736 = vst.msk [vmem:[#allocation3] sm:$0xff] %vm1629, %v1731
        %1738 = vrot.lane.b32.xlu0 %v1626, 96
        %v1739 = vpop.permute.xlu0 %1738
        %1741 = vrot.lane.b32.xlu0 %v1627, 96
        %v1742 = vpop.permute.xlu0 %1741
        %v1744 = vsel %vm1629, %v1739, 0
        %v1747 = vsel %vm1629, %v1742, 0
        %1749 = vmatprep.subr.bf16.mxu0 0
        %1750 = vmatpush1.bf16.xpose.msra.mxu0 %v1747
        %1751 = vmatprep.subr.bf16.mxu0 0
        %1752 = vmatpush1.bf16.xpose.msra.mxu0 0
        %1753 = vmatprep.subr.bf16.mxu0 0
        %1754 = vmatpush1.bf16.xpose.msra.mxu0 0
        %1755 = vmatprep.subr.bf16.mxu0 0
        %1756 = vmatpush1.bf16.xpose.msra.mxu0 0
        %1757 = vmatprep.subr.bf16.mxu0 0
        %1758 = vmatpush1.bf16.xpose.msra.mxu0 0
        %1759 = vmatprep.subr.bf16.mxu0 0
        %1760 = vmatpush1.bf16.xpose.msra.mxu0 0
        %1761 = vmatprep.subr.bf16.mxu0 0
        %1762 = vmatpush1.bf16.xpose.msra.mxu0 0
        %1763 = vmatprep.subr.bf16.mxu0 0
        %1764 = vmatpush1.bf16.xpose.msra.mxu0 0
        %1765 = vmatprep.subr.bf16.mxu0 0
        %1766 = vmatpush1.bf16.xpose.msra.mxu0 0
        %1767 = vmatprep.subr.bf16.mxu0 0
        %1768 = vmatpush1.bf16.xpose.msra.mxu0 0
        %1769 = vmatprep.subr.bf16.mxu0 0
        %1770 = vmatpush1.bf16.xpose.msra.mxu0 0
        %1771 = vmatprep.subr.bf16.mxu0 0
        %1772 = vmatpush1.bf16.xpose.msra.mxu0 0
        %1773 = vmatprep.subr.bf16.mxu0 0
        %1774 = vmatpush1.bf16.xpose.msra.mxu0 0
        %1775 = vmatprep.subr.bf16.mxu0 0
        %1776 = vmatpush1.bf16.xpose.msra.mxu0 0
        %1777 = vmatprep.subr.bf16.mxu0 0
        %1778 = vmatpush1.bf16.xpose.msra.mxu0 0
        %1779 = vmatprep.subr.bf16.mxu0 0
        %1780 = vmatpush1.bf16.xpose.msra.mxu0 0
        %1781 = vmatprep.mubr.bf16.mxu0 0
        %1782 = vmatmul.mubr.bf16.gmra.mrb[0].mxu0 %v1744
        %v1783 = vpop.f32.mrb[0].mxu0
        %v1784 = vadd.f32 %v1366, %v1783
        %v1785 = vpop.f32.mrb[0].mxu0
        %v1786 = vpop.f32.mrb[0].mxu0
        %v1787 = vpop.f32.mrb[0].mxu0
        %1788 = vdwg.mxu0
        %v1789 = vsel %vm1676, %v1784, -inf
        %1790 = vmax.xlane.f32.xlu0 %v1789
        %v1791 = vpop.xlane.xlu0 %1790
        %v1792 = vsub.f32 %v1784, %v1791
        %v1793 = vmul.f32 %v1792, 1.442695
        %v1794 = vpow.pop %v1793
        %v1795 = vsel %vm1676, %v1794, 0.0
        %1796 = vadd.xlane.f32.xlu0 %v1795
        %v1797 = vpop.xlane.xlu0 %1796
        %v1798 = vrcp.pop %v1797
        %v1799 = vmul.f32 %v1794, %v1798
        %v1800 = vpack.c.bf16 %v1799, %v1799
        %1802 = vrot.lane.b32.xlu0 %v1628, 96
        %v1803 = vpop.permute.xlu0 %1802
        %v1805 = vsel %vm1676, %v1800, 0
        %v1808 = vsel %vm1692, %v1803, 0
        %1810 = vmatprep.subr.bf16.mxu0 0
        %1811 = vmatpush1.bf16.msra.mxu0 %v1808
        %1812 = vmatprep.subr.bf16.mxu0 0
        %1813 = vmatpush1.bf16.msra.mxu0 0
        %1814 = vmatprep.subr.bf16.mxu0 0
        %1815 = vmatpush1.bf16.msra.mxu0 0
        %1816 = vmatprep.subr.bf16.mxu0 0
        %1817 = vmatpush1.bf16.msra.mxu0 0
        %1818 = vmatprep.subr.bf16.mxu0 0
        %1819 = vmatpush1.bf16.msra.mxu0 0
        %1820 = vmatprep.subr.bf16.mxu0 0
        %1821 = vmatpush1.bf16.msra.mxu0 0
        %1822 = vmatprep.subr.bf16.mxu0 0
        %1823 = vmatpush1.bf16.msra.mxu0 0
        %1824 = vmatprep.subr.bf16.mxu0 0
        %1825 = vmatpush1.bf16.msra.mxu0 0
        %1826 = vmatprep.subr.bf16.mxu0 0
        %1827 = vmatpush1.bf16.msra.mxu0 0
        %1828 = vmatprep.subr.bf16.mxu0 0
        %1829 = vmatpush1.bf16.msra.mxu0 0
        %1830 = vmatprep.subr.bf16.mxu0 0
        %1831 = vmatpush1.bf16.msra.mxu0 0
        %1832 = vmatprep.subr.bf16.mxu0 0
        %1833 = vmatpush1.bf16.msra.mxu0 0
        %1834 = vmatprep.subr.bf16.mxu0 0
        %1835 = vmatpush1.bf16.msra.mxu0 0
        %1836 = vmatprep.subr.bf16.mxu0 0
        %1837 = vmatpush1.bf16.msra.mxu0 0
        %1838 = vmatprep.subr.bf16.mxu0 0
        %1839 = vmatpush1.bf16.msra.mxu0 0
        %1840 = vmatprep.subr.bf16.mxu0 0
        %1841 = vmatpush1.bf16.msra.mxu0 0
        %1842 = vmatprep.mubr.bf16.mxu0 0
        %1843 = vmatmul.mubr.bf16.gmra.mrb[0].mxu0 %v1805
        %v1844 = vpop.f32.mrb[0].mxu0
        %v1845 = vadd.f32 0.0, %v1844
        %v1846 = vpop.f32.mrb[0].mxu0
        %v1847 = vpop.f32.mrb[0].mxu0
        %v1848 = vpop.f32.mrb[0].mxu0
        %1849 = vdwg.mxu0
        %1851 = vrot.lane.b32.xlu0 %v1845, 32
        %v1852 = vpop.permute.xlu0 %1851
        %vm1854 = vcmask 523520
        %1855 = vst.msk [vmem:[#allocation3] sm:$0xff] %vm1854, %v1852
        %1856 = vrot.lane.b32.xlu0 %v1626, 64
        %v1857 = vpop.permute.xlu0 %1856
        %1858 = vrot.lane.b32.xlu0 %v1627, 64
        %v1859 = vpop.permute.xlu0 %1858
        %v1861 = vsel %vm1629, %v1857, 0
        %v1864 = vsel %vm1629, %v1859, 0
        %1866 = vmatprep.subr.bf16.mxu0 0
        %1867 = vmatpush1.bf16.xpose.msra.mxu0 %v1864
        %1868 = vmatprep.subr.bf16.mxu0 0
        %1869 = vmatpush1.bf16.xpose.msra.mxu0 0
        %1870 = vmatprep.subr.bf16.mxu0 0
        %1871 = vmatpush1.bf16.xpose.msra.mxu0 0
        %1872 = vmatprep.subr.bf16.mxu0 0
        %1873 = vmatpush1.bf16.xpose.msra.mxu0 0
        %1874 = vmatprep.subr.bf16.mxu0 0
        %1875 = vmatpush1.bf16.xpose.msra.mxu0 0
        %1876 = vmatprep.subr.bf16.mxu0 0
        %1877 = vmatpush1.bf16.xpose.msra.mxu0 0
        %1878 = vmatprep.subr.bf16.mxu0 0
        %1879 = vmatpush1.bf16.xpose.msra.mxu0 0
        %1880 = vmatprep.subr.bf16.mxu0 0
        %1881 = vmatpush1.bf16.xpose.msra.mxu0 0
        %1882 = vmatprep.subr.bf16.mxu0 0
        %1883 = vmatpush1.bf16.xpose.msra.mxu0 0
        %1884 = vmatprep.subr.bf16.mxu0 0
        %1885 = vmatpush1.bf16.xpose.msra.mxu0 0
        %1886 = vmatprep.subr.bf16.mxu0 0
        %1887 = vmatpush1.bf16.xpose.msra.mxu0 0
        %1888 = vmatprep.subr.bf16.mxu0 0
        %1889 = vmatpush1.bf16.xpose.msra.mxu0 0
        %1890 = vmatprep.subr.bf16.mxu0 0
        %1891 = vmatpush1.bf16.xpose.msra.mxu0 0
        %1892 = vmatprep.subr.bf16.mxu0 0
        %1893 = vmatpush1.bf16.xpose.msra.mxu0 0
        %1894 = vmatprep.subr.bf16.mxu0 0
        %1895 = vmatpush1.bf16.xpose.msra.mxu0 0
        %1896 = vmatprep.subr.bf16.mxu0 0
        %1897 = vmatpush1.bf16.xpose.msra.mxu0 0
        %1898 = vmatprep.mubr.bf16.mxu0 0
        %1899 = vmatmul.mubr.bf16.gmra.mrb[0].mxu0 %v1861
        %v1900 = vpop.f32.mrb[0].mxu0
        %v1901 = vadd.f32 %v1366, %v1900
        %v1902 = vpop.f32.mrb[0].mxu0
        %v1903 = vpop.f32.mrb[0].mxu0
        %v1904 = vpop.f32.mrb[0].mxu0
        %1905 = vdwg.mxu0
        %v1906 = vsel %vm1676, %v1901, -inf
        %1907 = vmax.xlane.f32.xlu0 %v1906
        %v1908 = vpop.xlane.xlu0 %1907
        %v1909 = vsub.f32 %v1901, %v1908
        %v1910 = vmul.f32 %v1909, 1.442695
        %v1911 = vpow.pop %v1910
        %v1912 = vsel %vm1676, %v1911, 0.0
        %1913 = vadd.xlane.f32.xlu0 %v1912
        %v1914 = vpop.xlane.xlu0 %1913
        %v1915 = vrcp.pop %v1914
        %v1916 = vmul.f32 %v1911, %v1915
        %v1917 = vpack.c.bf16 %v1916, %v1916
        %1918 = vrot.lane.b32.xlu0 %v1628, 64
        %v1919 = vpop.permute.xlu0 %1918
        %v1921 = vsel %vm1676, %v1917, 0
        %v1924 = vsel %vm1692, %v1919, 0
        %1926 = vmatprep.subr.bf16.mxu0 0
        %1927 = vmatpush1.bf16.msra.mxu0 %v1924
        %1928 = vmatprep.subr.bf16.mxu0 0
        %1929 = vmatpush1.bf16.msra.mxu0 0
        %1930 = vmatprep.subr.bf16.mxu0 0
        %1931 = vmatpush1.bf16.msra.mxu0 0
        %1932 = vmatprep.subr.bf16.mxu0 0
        %1933 = vmatpush1.bf16.msra.mxu0 0
        %1934 = vmatprep.subr.bf16.mxu0 0
        %1935 = vmatpush1.bf16.msra.mxu0 0
        %1936 = vmatprep.subr.bf16.mxu0 0
        %1937 = vmatpush1.bf16.msra.mxu0 0
        %1938 = vmatprep.subr.bf16.mxu0 0
        %1939 = vmatpush1.bf16.msra.mxu0 0
        %1940 = vmatprep.subr.bf16.mxu0 0
        %1941 = vmatpush1.bf16.msra.mxu0 0
        %1942 = vmatprep.subr.bf16.mxu0 0
        %1943 = vmatpush1.bf16.msra.mxu0 0
        %1944 = vmatprep.subr.bf16.mxu0 0
        %1945 = vmatpush1.bf16.msra.mxu0 0
        %1946 = vmatprep.subr.bf16.mxu0 0
        %1947 = vmatpush1.bf16.msra.mxu0 0
        %1948 = vmatprep.subr.bf16.mxu0 0
        %1949 = vmatpush1.bf16.msra.mxu0 0
        %1950 = vmatprep.subr.bf16.mxu0 0
        %1951 = vmatpush1.bf16.msra.mxu0 0
        %1952 = vmatprep.subr.bf16.mxu0 0
        %1953 = vmatpush1.bf16.msra.mxu0 0
        %1954 = vmatprep.subr.bf16.mxu0 0
        %1955 = vmatpush1.bf16.msra.mxu0 0
        %1956 = vmatprep.subr.bf16.mxu0 0
        %1957 = vmatpush1.bf16.msra.mxu0 0
        %1958 = vmatprep.mubr.bf16.mxu0 0
        %1959 = vmatmul.mubr.bf16.gmra.mrb[0].mxu0 %v1921
        %v1960 = vpop.f32.mrb[0].mxu0
        %v1961 = vadd.f32 0.0, %v1960
        %v1962 = vpop.f32.mrb[0].mxu0
        %v1963 = vpop.f32.mrb[0].mxu0
        %v1964 = vpop.f32.mrb[0].mxu0
        %1965 = vdwg.mxu0
        %1967 = vrot.lane.b32.xlu0 %v1961, 64
        %v1968 = vpop.permute.xlu0 %1967
        %vm1970 = vcmask 785920
        %1971 = vst.msk [vmem:[#allocation3] sm:$0xff] %vm1970, %v1968
        %1972 = vrot.lane.b32.xlu0 %v1626, 32
        %v1973 = vpop.permute.xlu0 %1972
        %1974 = vrot.lane.b32.xlu0 %v1627, 32
        %v1975 = vpop.permute.xlu0 %1974
        %v1977 = vsel %vm1629, %v1973, 0
        %v1980 = vsel %vm1629, %v1975, 0
        %1982 = vmatprep.subr.bf16.mxu0 0
        %1983 = vmatpush1.bf16.xpose.msra.mxu0 %v1980
        %1984 = vmatprep.subr.bf16.mxu0 0
        %1985 = vmatpush1.bf16.xpose.msra.mxu0 0
        %1986 = vmatprep.subr.bf16.mxu0 0
        %1987 = vmatpush1.bf16.xpose.msra.mxu0 0
        %1988 = vmatprep.subr.bf16.mxu0 0
        %1989 = vmatpush1.bf16.xpose.msra.mxu0 0
        %1990 = vmatprep.subr.bf16.mxu0 0
        %1991 = vmatpush1.bf16.xpose.msra.mxu0 0
        %1992 = vmatprep.subr.bf16.mxu0 0
        %1993 = vmatpush1.bf16.xpose.msra.mxu0 0
        %1994 = vmatprep.subr.bf16.mxu0 0
        %1995 = vmatpush1.bf16.xpose.msra.mxu0 0
        %1996 = vmatprep.subr.bf16.mxu0 0
        %1997 = vmatpush1.bf16.xpose.msra.mxu0 0
        %1998 = vmatprep.subr.bf16.mxu0 0
        %1999 = vmatpush1.bf16.xpose.msra.mxu0 0
        %2000 = vmatprep.subr.bf16.mxu0 0
        %2001 = vmatpush1.bf16.xpose.msra.mxu0 0
        %2002 = vmatprep.subr.bf16.mxu0 0
        %2003 = vmatpush1.bf16.xpose.msra.mxu0 0
        %2004 = vmatprep.subr.bf16.mxu0 0
        %2005 = vmatpush1.bf16.xpose.msra.mxu0 0
        %2006 = vmatprep.subr.bf16.mxu0 0
        %2007 = vmatpush1.bf16.xpose.msra.mxu0 0
        %2008 = vmatprep.subr.bf16.mxu0 0
        %2009 = vmatpush1.bf16.xpose.msra.mxu0 0
        %2010 = vmatprep.subr.bf16.mxu0 0
        %2011 = vmatpush1.bf16.xpose.msra.mxu0 0
        %2012 = vmatprep.subr.bf16.mxu0 0
        %2013 = vmatpush1.bf16.xpose.msra.mxu0 0
        %2014 = vmatprep.mubr.bf16.mxu0 0
        %2015 = vmatmul.mubr.bf16.gmra.mrb[0].mxu0 %v1977
        %v2016 = vpop.f32.mrb[0].mxu0
        %v2017 = vadd.f32 %v1366, %v2016
        %v2018 = vpop.f32.mrb[0].mxu0
        %v2019 = vpop.f32.mrb[0].mxu0
        %v2020 = vpop.f32.mrb[0].mxu0
        %2021 = vdwg.mxu0
        %v2022 = vsel %vm1676, %v2017, -inf
        %2023 = vmax.xlane.f32.xlu0 %v2022
        %v2024 = vpop.xlane.xlu0 %2023
        %v2025 = vsub.f32 %v2017, %v2024
        %v2026 = vmul.f32 %v2025, 1.442695
        %v2027 = vpow.pop %v2026
        %v2028 = vsel %vm1676, %v2027, 0.0
        %2029 = vadd.xlane.f32.xlu0 %v2028
        %v2030 = vpop.xlane.xlu0 %2029
        %v2031 = vrcp.pop %v2030
        %v2032 = vmul.f32 %v2027, %v2031
        %v2033 = vpack.c.bf16 %v2032, %v2032
        %2034 = vrot.lane.b32.xlu0 %v1628, 32
        %v2035 = vpop.permute.xlu0 %2034
        %v2037 = vsel %vm1676, %v2033, 0
        %v2040 = vsel %vm1692, %v2035, 0
        %2042 = vmatprep.subr.bf16.mxu0 0
        %2043 = vmatpush1.bf16.msra.mxu0 %v2040
        %2044 = vmatprep.subr.bf16.mxu0 0
        %2045 = vmatpush1.bf16.msra.mxu0 0
        %2046 = vmatprep.subr.bf16.mxu0 0
        %2047 = vmatpush1.bf16.msra.mxu0 0
        %2048 = vmatprep.subr.bf16.mxu0 0
        %2049 = vmatpush1.bf16.msra.mxu0 0
        %2050 = vmatprep.subr.bf16.mxu0 0
        %2051 = vmatpush1.bf16.msra.mxu0 0
        %2052 = vmatprep.subr.bf16.mxu0 0
        %2053 = vmatpush1.bf16.msra.mxu0 0
        %2054 = vmatprep.subr.bf16.mxu0 0
        %2055 = vmatpush1.bf16.msra.mxu0 0
        %2056 = vmatprep.subr.bf16.mxu0 0
        %2057 = vmatpush1.bf16.msra.mxu0 0
        %2058 = vmatprep.subr.bf16.mxu0 0
        %2059 = vmatpush1.bf16.msra.mxu0 0
        %2060 = vmatprep.subr.bf16.mxu0 0
        %2061 = vmatpush1.bf16.msra.mxu0 0
        %2062 = vmatprep.subr.bf16.mxu0 0
        %2063 = vmatpush1.bf16.msra.mxu0 0
        %2064 = vmatprep.subr.bf16.mxu0 0
        %2065 = vmatpush1.bf16.msra.mxu0 0
        %2066 = vmatprep.subr.bf16.mxu0 0
        %2067 = vmatpush1.bf16.msra.mxu0 0
        %2068 = vmatprep.subr.bf16.mxu0 0
        %2069 = vmatpush1.bf16.msra.mxu0 0
        %2070 = vmatprep.subr.bf16.mxu0 0
        %2071 = vmatpush1.bf16.msra.mxu0 0
        %2072 = vmatprep.subr.bf16.mxu0 0
        %2073 = vmatpush1.bf16.msra.mxu0 0
        %2074 = vmatprep.mubr.bf16.mxu0 0
        %2075 = vmatmul.mubr.bf16.gmra.mrb[0].mxu0 %v2037
        %v2076 = vpop.f32.mrb[0].mxu0
        %v2077 = vadd.f32 0.0, %v2076
        %v2078 = vpop.f32.mrb[0].mxu0
        %v2079 = vpop.f32.mrb[0].mxu0
        %v2080 = vpop.f32.mrb[0].mxu0
        %2081 = vdwg.mxu0
        %2083 = vrot.lane.b32.xlu0 %v2077, 96
        %v2084 = vpop.permute.xlu0 %2083
        %vm2086 = vcmask 1048320
        %2087 = vst.msk [vmem:[#allocation3] sm:$0xff] %vm2086, %v2084
        %v2088 = vld [vmem:[#allocation3] sm:$0xff]
        %v2089 = vpack.c.bf16 %v2088, %v2088
        %v2090 = vld [vmem:[%s1347] sm:$0xf]
        %v2091 = vld [vmem:[%s1347 + $0x4] sm:$0xf]
        %v2092 = vld [vmem:[%s1347 + $0x8] sm:$0xf]
        %v2093 = vld [vmem:[%s1347 + $0xc] sm:$0xf]
        %v2094 = vld [vmem:[%s1347 + $0x10] sm:$0xf]
        %v2095 = vld [vmem:[%s1347 + $0x14] sm:$0xf]
        %v2096 = vld [vmem:[%s1347 + $0x18] sm:$0xf]
        %v2097 = vld [vmem:[%s1347 + $0x1c] sm:$0xf]
        %v2098 = vld [vmem:[%s1347 + $0x20] sm:$0xf]
        %v2099 = vld [vmem:[%s1347 + $0x24] sm:$0xf]
        %v2100 = vld [vmem:[%s1347 + $0x28] sm:$0xf]
        %v2101 = vld [vmem:[%s1347 + $0x2c] sm:$0xf]
        %v2102 = vld [vmem:[%s1347 + $0x30] sm:$0xf]
        %v2103 = vld [vmem:[%s1347 + $0x34] sm:$0xf]
        %v2104 = vld [vmem:[%s1347 + $0x38] sm:$0xf]
        %v2105 = vld [vmem:[%s1347 + $0x3c] sm:$0xf]
        %v2106 = vld [vmem:[%s1064] sm:$0x1]
        %v2108 = vlaneseq
        %v2109 = vshrl.u32 %v2108, 7
        %v2110 = vsub.s32 0, %v2109
        %v2111 = vrot.slane %v2106, %v2110
        %v2129 = vunpack.c.l.b16 %v2090
        %v2130 = vunpack.c.l.b16 %v2091
        %v2131 = vunpack.c.l.b16 %v2092
        %v2132 = vunpack.c.l.b16 %v2093
        %v2133 = vunpack.c.l.b16 %v2094
        %v2134 = vunpack.c.l.b16 %v2095
        %v2135 = vunpack.c.l.b16 %v2096
        %v2136 = vunpack.c.l.b16 %v2097
        %v2137 = vunpack.c.l.b16 %v2098
        %v2138 = vunpack.c.l.b16 %v2099
        %v2139 = vunpack.c.l.b16 %v2100
        %v2140 = vunpack.c.l.b16 %v2101
        %v2141 = vunpack.c.l.b16 %v2102
        %v2142 = vunpack.c.l.b16 %v2103
        %v2143 = vunpack.c.l.b16 %v2104
        %v2144 = vunpack.c.l.b16 %v2105
        %v2145 = vpack.c.b16 %v2130, %v2129
        %v2146 = vpack.c.b16 %v2132, %v2131
        %v2147 = vpack.c.b16 %v2134, %v2133
        %v2148 = vpack.c.b16 %v2136, %v2135
        %v2149 = vpack.c.b16 %v2138, %v2137
        %v2150 = vpack.c.b16 %v2140, %v2139
        %v2151 = vpack.c.b16 %v2142, %v2141
        %v2152 = vpack.c.b16 %v2144, %v2143
        %2161 = vmatprep.subr.bf16.mxu0 0
        %2162 = vmatpush1.bf16.msra.mxu0 %v2145
        %2163 = vmatprep.subr.bf16.mxu0 0
        %2164 = vmatpush1.bf16.msra.mxu0 %v2146
        %2165 = vmatprep.subr.bf16.mxu0 0
        %2166 = vmatpush1.bf16.msra.mxu0 %v2147
        %2167 = vmatprep.subr.bf16.mxu0 0
        %2168 = vmatpush1.bf16.msra.mxu0 %v2148
        %2169 = vmatprep.subr.bf16.mxu0 0
        %2170 = vmatpush1.bf16.msra.mxu0 %v2149
        %2171 = vmatprep.subr.bf16.mxu0 0
        %2172 = vmatpush1.bf16.msra.mxu0 %v2150
        %2173 = vmatprep.subr.bf16.mxu0 0
        %2174 = vmatpush1.bf16.msra.mxu0 %v2151
        %2175 = vmatprep.subr.bf16.mxu0 0
        %2176 = vmatpush1.bf16.msra.mxu0 %v2152
        %2177 = vmatprep.subr.bf16.mxu0 0
        %2178 = vmatpush1.bf16.msra.mxu0 0
        %2179 = vmatprep.subr.bf16.mxu0 0
        %2180 = vmatpush1.bf16.msra.mxu0 0
        %2181 = vmatprep.subr.bf16.mxu0 0
        %2182 = vmatpush1.bf16.msra.mxu0 0
        %2183 = vmatprep.subr.bf16.mxu0 0
        %2184 = vmatpush1.bf16.msra.mxu0 0
        %2185 = vmatprep.subr.bf16.mxu0 0
        %2186 = vmatpush1.bf16.msra.mxu0 0
        %2187 = vmatprep.subr.bf16.mxu0 0
        %2188 = vmatpush1.bf16.msra.mxu0 0
        %2189 = vmatprep.subr.bf16.mxu0 0
        %2190 = vmatpush1.bf16.msra.mxu0 0
        %2191 = vmatprep.subr.bf16.mxu0 0
        %2192 = vmatpush1.bf16.msra.mxu0 0
        %2193 = vmatprep.mubr.bf16.mxu0 0
        %2194 = vmatmul.mubr.bf16.gmra.mrb[0].mxu0 %v2089
        %v2195 = vpop.f32.mrb[0].mxu0
        %v2196 = vadd.f32 %v2111, %v2195
        %v2197 = vpop.f32.mrb[0].mxu0
        %v2198 = vpop.f32.mrb[0].mxu0
        %v2199 = vpop.f32.mrb[0].mxu0
        %2200 = vdwg.mxu0
        %v2201 = vadd.f32 %v1359, %v2196
        %v2202 = vld [vmem:[%s1150] sm:$0x1]
        %v2203 = vld [vmem:[%s1158] sm:$0x1]
        %2204 = vadd.xlane.f32.xlu0 %v2201
        %v2205 = vpop.xlane.xlu0 %2204
        %v2206 = vrcp.pop 128.0
        %v2207 = vmul.f32 %v2205, %v2206
        %v2208 = vsub.f32 %v2201, %v2207
        %v2209 = vmul.f32 %v2208, %v2208
        %2210 = vadd.xlane.f32.xlu0 %v2209
        %v2211 = vpop.xlane.xlu0 %2210
        %v2212 = vmul.f32 %v2211, %v2206
        %v2213 = vadd.f32 %v2212, 1e-05
        %v2214 = vrsqrt.pop %v2213
        %v2215 = vmul.f32 %v2208, %v2214
        %v2217 = vlaneseq
        %v2218 = vshrl.u32 %v2217, 7
        %v2219 = vsub.s32 0, %v2218
        %v2220 = vrot.slane %v2202, %v2219
        %v2222 = vmul.f32 %v2215, %v2220
        %v2224 = vlaneseq
        %v2225 = vshrl.u32 %v2224, 7
        %v2226 = vsub.s32 0, %v2225
        %v2227 = vrot.slane %v2203, %v2226
        %v2229 = vadd.f32 %v2222, %v2227
        %v2230 = vpack.c.bf16 %v2229, %v2229
        %v2231 = vld [vmem:[%s1073] sm:$0xf]
        %v2232 = vld [vmem:[%s1073 + $0x4] sm:$0xf]
        %v2233 = vld [vmem:[%s1073 + $0x8] sm:$0xf]
        %v2234 = vld [vmem:[%s1073 + $0xc] sm:$0xf]
        %v2235 = vld [vmem:[%s1073 + $0x10] sm:$0xf]
        %v2236 = vld [vmem:[%s1073 + $0x14] sm:$0xf]
        %v2237 = vld [vmem:[%s1073 + $0x18] sm:$0xf]
        %v2238 = vld [vmem:[%s1073 + $0x1c] sm:$0xf]
        %v2239 = vld [vmem:[%s1073 + $0x20] sm:$0xf]
        %v2240 = vld [vmem:[%s1073 + $0x24] sm:$0xf]
        %v2241 = vld [vmem:[%s1073 + $0x28] sm:$0xf]
        %v2242 = vld [vmem:[%s1073 + $0x2c] sm:$0xf]
        %v2243 = vld [vmem:[%s1073 + $0x30] sm:$0xf]
        %v2244 = vld [vmem:[%s1073 + $0x34] sm:$0xf]
        %v2245 = vld [vmem:[%s1073 + $0x38] sm:$0xf]
        %v2246 = vld [vmem:[%s1073 + $0x3c] sm:$0xf]
        %v2247 = vld [vmem:[%s1081] sm:$0x1]
        %v2249 = vlaneseq
        %v2250 = vshrl.u32 %v2249, 7
        %v2251 = vsub.s32 0, %v2250
        %v2252 = vrot.slane %v2247, %v2251
        %v2270 = vunpack.c.l.b16 %v2231
        %v2271 = vunpack.c.l.b16 %v2232
        %v2272 = vunpack.c.l.b16 %v2233
        %v2273 = vunpack.c.l.b16 %v2234
        %v2274 = vunpack.c.l.b16 %v2235
        %v2275 = vunpack.c.l.b16 %v2236
        %v2276 = vunpack.c.l.b16 %v2237
        %v2277 = vunpack.c.l.b16 %v2238
        %v2278 = vunpack.c.l.b16 %v2239
        %v2279 = vunpack.c.l.b16 %v2240
        %v2280 = vunpack.c.l.b16 %v2241
        %v2281 = vunpack.c.l.b16 %v2242
        %v2282 = vunpack.c.l.b16 %v2243
        %v2283 = vunpack.c.l.b16 %v2244
        %v2284 = vunpack.c.l.b16 %v2245
        %v2285 = vunpack.c.l.b16 %v2246
        %v2286 = vpack.c.b16 %v2271, %v2270
        %v2287 = vpack.c.b16 %v2273, %v2272
        %v2288 = vpack.c.b16 %v2275, %v2274
        %v2289 = vpack.c.b16 %v2277, %v2276
        %v2290 = vpack.c.b16 %v2279, %v2278
        %v2291 = vpack.c.b16 %v2281, %v2280
        %v2292 = vpack.c.b16 %v2283, %v2282
        %v2293 = vpack.c.b16 %v2285, %v2284
        %2302 = vmatprep.subr.bf16.mxu0 0
        %2303 = vmatpush1.bf16.msra.mxu0 %v2286
        %2304 = vmatprep.subr.bf16.mxu0 0
        %2305 = vmatpush1.bf16.msra.mxu0 %v2287
        %2306 = vmatprep.subr.bf16.mxu0 0
        %2307 = vmatpush1.bf16.msra.mxu0 %v2288
        %2308 = vmatprep.subr.bf16.mxu0 0
        %2309 = vmatpush1.bf16.msra.mxu0 %v2289
        %2310 = vmatprep.subr.bf16.mxu0 0
        %2311 = vmatpush1.bf16.msra.mxu0 %v2290
        %2312 = vmatprep.subr.bf16.mxu0 0
        %2313 = vmatpush1.bf16.msra.mxu0 %v2291
        %2314 = vmatprep.subr.bf16.mxu0 0
        %2315 = vmatpush1.bf16.msra.mxu0 %v2292
        %2316 = vmatprep.subr.bf16.mxu0 0
        %2317 = vmatpush1.bf16.msra.mxu0 %v2293
        %2318 = vmatprep.subr.bf16.mxu0 0
        %2319 = vmatpush1.bf16.msra.mxu0 0
        %2320 = vmatprep.subr.bf16.mxu0 0
        %2321 = vmatpush1.bf16.msra.mxu0 0
        %2322 = vmatprep.subr.bf16.mxu0 0
        %2323 = vmatpush1.bf16.msra.mxu0 0
        %2324 = vmatprep.subr.bf16.mxu0 0
        %2325 = vmatpush1.bf16.msra.mxu0 0
        %2326 = vmatprep.subr.bf16.mxu0 0
        %2327 = vmatpush1.bf16.msra.mxu0 0
        %2328 = vmatprep.subr.bf16.mxu0 0
        %2329 = vmatpush1.bf16.msra.mxu0 0
        %2330 = vmatprep.subr.bf16.mxu0 0
        %2331 = vmatpush1.bf16.msra.mxu0 0
        %2332 = vmatprep.subr.bf16.mxu0 0
        %2333 = vmatpush1.bf16.msra.mxu0 0
        %2334 = vmatprep.mubr.bf16.mxu0 0
        %2335 = vmatmul.mubr.bf16.gmra.mrb[0].mxu0 %v2230
        %v2336 = vpop.f32.mrb[0].mxu0
        %v2337 = vadd.f32 %v2252, %v2336
        %v2338 = vpop.f32.mrb[0].mxu0
        %v2339 = vpop.f32.mrb[0].mxu0
        %v2340 = vpop.f32.mrb[0].mxu0
        %2341 = vdwg.mxu0
        %v2342 = vpack.c.bf16 %v1360, %v1360
        %v2343 = vld [vmem:[%s1090] sm:$0xff]
        %v2344 = vld [vmem:[%s1090 + $0x8] sm:$0xff]
        %v2345 = vld [vmem:[%s1090 + $0x10] sm:$0xff]
        %v2346 = vld [vmem:[%s1090 + $0x18] sm:$0xff]
        %v2347 = vld [vmem:[%s1090 + $0x20] sm:$0xff]
        %v2348 = vld [vmem:[%s1090 + $0x28] sm:$0xff]
        %v2349 = vld [vmem:[%s1090 + $0x30] sm:$0xff]
        %v2350 = vld [vmem:[%s1090 + $0x38] sm:$0xff]
        %v2351 = vld [vmem:[%s1090 + $0x40] sm:$0xff]
        %v2352 = vld [vmem:[%s1090 + $0x48] sm:$0xff]
        %v2353 = vld [vmem:[%s1090 + $0x50] sm:$0xff]
        %v2354 = vld [vmem:[%s1090 + $0x58] sm:$0xff]
        %v2355 = vld [vmem:[%s1090 + $0x60] sm:$0xff]
        %v2356 = vld [vmem:[%s1090 + $0x68] sm:$0xff]
        %v2357 = vld [vmem:[%s1090 + $0x70] sm:$0xff]
        %v2358 = vld [vmem:[%s1090 + $0x78] sm:$0xff]
        %v2359 = vld [vmem:[%s1099] sm:$0x3]
        %v2361 = vlaneseq
        %v2362 = vshrl.u32 %v2361, 7
        %v2363 = vsub.s32 0, %v2362
        %v2364 = vrot.slane %v2359, %v2363
        %v2365 = vlaneseq
        %v2366 = vshrl.u32 %v2365, 7
        %v2367 = vsub.s32 1, %v2366
        %v2368 = vrot.slane %v2359, %v2367
        %v2387 = vunpack.c.l.b16 %v2343
        %v2388 = vunpack.c.h.b16 %v2343
        %v2389 = vunpack.c.l.b16 %v2344
        %v2390 = vunpack.c.h.b16 %v2344
        %v2391 = vunpack.c.l.b16 %v2345
        %v2392 = vunpack.c.h.b16 %v2345
        %v2393 = vunpack.c.l.b16 %v2346
        %v2394 = vunpack.c.h.b16 %v2346
        %v2395 = vunpack.c.l.b16 %v2347
        %v2396 = vunpack.c.h.b16 %v2347
        %v2397 = vunpack.c.l.b16 %v2348
        %v2398 = vunpack.c.h.b16 %v2348
        %v2399 = vunpack.c.l.b16 %v2349
        %v2400 = vunpack.c.h.b16 %v2349
        %v2401 = vunpack.c.l.b16 %v2350
        %v2402 = vunpack.c.h.b16 %v2350
        %v2403 = vunpack.c.l.b16 %v2351
        %v2404 = vunpack.c.h.b16 %v2351
        %v2405 = vunpack.c.l.b16 %v2352
        %v2406 = vunpack.c.h.b16 %v2352
        %v2407 = vunpack.c.l.b16 %v2353
        %v2408 = vunpack.c.h.b16 %v2353
        %v2409 = vunpack.c.l.b16 %v2354
        %v2410 = vunpack.c.h.b16 %v2354
        %v2411 = vunpack.c.l.b16 %v2355
        %v2412 = vunpack.c.h.b16 %v2355
        %v2413 = vunpack.c.l.b16 %v2356
        %v2414 = vunpack.c.h.b16 %v2356
        %v2415 = vunpack.c.l.b16 %v2357
        %v2416 = vunpack.c.h.b16 %v2357
        %v2417 = vunpack.c.l.b16 %v2358
        %v2418 = vunpack.c.h.b16 %v2358
        %v2419 = vpack.c.b16 %v2389, %v2387
        %v2420 = vpack.c.b16 %v2390, %v2388
        %v2421 = vpack.c.b16 %v2393, %v2391
        %v2422 = vpack.c.b16 %v2394, %v2392
        %v2423 = vpack.c.b16 %v2397, %v2395
        %v2424 = vpack.c.b16 %v2398, %v2396
        %v2425 = vpack.c.b16 %v2401, %v2399
        %v2426 = vpack.c.b16 %v2402, %v2400
        %v2427 = vpack.c.b16 %v2405, %v2403
        %v2428 = vpack.c.b16 %v2406, %v2404
        %v2429 = vpack.c.b16 %v2409, %v2407
        %v2430 = vpack.c.b16 %v2410, %v2408
        %v2431 = vpack.c.b16 %v2413, %v2411
        %v2432 = vpack.c.b16 %v2414, %v2412
        %v2433 = vpack.c.b16 %v2417, %v2415
        %v2434 = vpack.c.b16 %v2418, %v2416
        %2451 = vmatprep.subr.bf16.mxu0 %v2420
        %2452 = vmatpush1.bf16.msra.mxu0 %v2419
        %2453 = vmatprep.subr.bf16.mxu0 %v2422
        %2454 = vmatpush1.bf16.msra.mxu0 %v2421
        %2455 = vmatprep.subr.bf16.mxu0 %v2424
        %2456 = vmatpush1.bf16.msra.mxu0 %v2423
        %2457 = vmatprep.subr.bf16.mxu0 %v2426
        %2458 = vmatpush1.bf16.msra.mxu0 %v2425
        %2459 = vmatprep.subr.bf16.mxu0 %v2428
        %2460 = vmatpush1.bf16.msra.mxu0 %v2427
        %2461 = vmatprep.subr.bf16.mxu0 %v2430
        %2462 = vmatpush1.bf16.msra.mxu0 %v2429
        %2463 = vmatprep.subr.bf16.mxu0 %v2432
        %2464 = vmatpush1.bf16.msra.mxu0 %v2431
        %2465 = vmatprep.subr.bf16.mxu0 %v2434
        %2466 = vmatpush1.bf16.msra.mxu0 %v2433
        %2467 = vmatprep.subr.bf16.mxu0 0
        %2468 = vmatpush1.bf16.msra.mxu0 0
        %2469 = vmatprep.subr.bf16.mxu0 0
        %2470 = vmatpush1.bf16.msra.mxu0 0
        %2471 = vmatprep.subr.bf16.mxu0 0
        %2472 = vmatpush1.bf16.msra.mxu0 0
        %2473 = vmatprep.subr.bf16.mxu0 0
        %2474 = vmatpush1.bf16.msra.mxu0 0
        %2475 = vmatprep.subr.bf16.mxu0 0
        %2476 = vmatpush1.bf16.msra.mxu0 0
        %2477 = vmatprep.subr.bf16.mxu0 0
        %2478 = vmatpush1.bf16.msra.mxu0 0
        %2479 = vmatprep.subr.bf16.mxu0 0
        %2480 = vmatpush1.bf16.msra.mxu0 0
        %2481 = vmatprep.subr.bf16.mxu0 0
        %2482 = vmatpush1.bf16.msra.mxu0 0
        %2483 = vmatprep.mubr.bf16.mxu0 0
        %2484 = vmatmul.mubr.bf16.gmra.mrb[0].mxu0 %v2342
        %v2485 = vpop.f32.mrb[0].mxu0
        %v2486 = vadd.f32 %v2364, %v2485
        %v2487 = vpop.f32.mrb[0].mxu0
        %v2488 = vadd.f32 %v2368, %v2487
        %v2489 = vpop.f32.mrb[0].mxu0
        %v2490 = vpop.f32.mrb[0].mxu0
        %2491 = vdwg.mxu0
        %v2492 = vpack.c.bf16 %v2337, %v2337
        %v2493 = vpack.c.bf16 %v2486, %v2486
        %v2494 = vpack.c.bf16 %v2488, %v2488
        %v2496 = vsel %vm1629, %v2492, 0
        %v2499 = vsel %vm1629, %v2493, 0
        %2501 = vmatprep.subr.bf16.mxu0 0
        %2502 = vmatpush1.bf16.xpose.msra.mxu0 %v2499
        %2503 = vmatprep.subr.bf16.mxu0 0
        %2504 = vmatpush1.bf16.xpose.msra.mxu0 0
        %2505 = vmatprep.subr.bf16.mxu0 0
        %2506 = vmatpush1.bf16.xpose.msra.mxu0 0
        %2507 = vmatprep.subr.bf16.mxu0 0
        %2508 = vmatpush1.bf16.xpose.msra.mxu0 0
        %2509 = vmatprep.subr.bf16.mxu0 0
        %2510 = vmatpush1.bf16.xpose.msra.mxu0 0
        %2511 = vmatprep.subr.bf16.mxu0 0
        %2512 = vmatpush1.bf16.xpose.msra.mxu0 0
        %2513 = vmatprep.subr.bf16.mxu0 0
        %2514 = vmatpush1.bf16.xpose.msra.mxu0 0
        %2515 = vmatprep.subr.bf16.mxu0 0
        %2516 = vmatpush1.bf16.xpose.msra.mxu0 0
        %2517 = vmatprep.subr.bf16.mxu0 0
        %2518 = vmatpush1.bf16.xpose.msra.mxu0 0
        %2519 = vmatprep.subr.bf16.mxu0 0
        %2520 = vmatpush1.bf16.xpose.msra.mxu0 0
        %2521 = vmatprep.subr.bf16.mxu0 0
        %2522 = vmatpush1.bf16.xpose.msra.mxu0 0
        %2523 = vmatprep.subr.bf16.mxu0 0
        %2524 = vmatpush1.bf16.xpose.msra.mxu0 0
        %2525 = vmatprep.subr.bf16.mxu0 0
        %2526 = vmatpush1.bf16.xpose.msra.mxu0 0
        %2527 = vmatprep.subr.bf16.mxu0 0
        %2528 = vmatpush1.bf16.xpose.msra.mxu0 0
        %2529 = vmatprep.subr.bf16.mxu0 0
        %2530 = vmatpush1.bf16.xpose.msra.mxu0 0
        %2531 = vmatprep.subr.bf16.mxu0 0
        %2532 = vmatpush1.bf16.xpose.msra.mxu0 0
        %2533 = vmatprep.mubr.bf16.mxu0 0
        %2534 = vmatmul.mubr.bf16.gmra.mrb[0].mxu0 %v2496
        %v2535 = vpop.f32.mrb[0].mxu0
        %v2536 = vadd.f32 0.0, %v2535
        %v2537 = vpop.f32.mrb[0].mxu0
        %v2538 = vpop.f32.mrb[0].mxu0
        %v2539 = vpop.f32.mrb[0].mxu0
        %2540 = vdwg.mxu0
        %v2541 = vsel %vm1676, %v2536, -inf
        %2542 = vmax.xlane.f32.xlu0 %v2541
        %v2543 = vpop.xlane.xlu0 %2542
        %v2544 = vsub.f32 %v2536, %v2543
        %v2545 = vmul.f32 %v2544, 1.442695
        %v2546 = vpow.pop %v2545
        %v2547 = vsel %vm1676, %v2546, 0.0
        %2548 = vadd.xlane.f32.xlu0 %v2547
        %v2549 = vpop.xlane.xlu0 %2548
        %v2550 = vrcp.pop %v2549
        %v2551 = vmul.f32 %v2546, %v2550
        %v2552 = vpack.c.bf16 %v2551, %v2551
        %v2554 = vsel %vm1676, %v2552, 0
        %v2557 = vsel %vm1692, %v2494, 0
        %2559 = vmatprep.subr.bf16.mxu0 0
        %2560 = vmatpush1.bf16.msra.mxu0 %v2557
        %2561 = vmatprep.subr.bf16.mxu0 0
        %2562 = vmatpush1.bf16.msra.mxu0 0
        %2563 = vmatprep.subr.bf16.mxu0 0
        %2564 = vmatpush1.bf16.msra.mxu0 0
        %2565 = vmatprep.subr.bf16.mxu0 0
        %2566 = vmatpush1.bf16.msra.mxu0 0
        %2567 = vmatprep.subr.bf16.mxu0 0
        %2568 = vmatpush1.bf16.msra.mxu0 0
        %2569 = vmatprep.subr.bf16.mxu0 0
        %2570 = vmatpush1.bf16.msra.mxu0 0
        %2571 = vmatprep.subr.bf16.mxu0 0
        %2572 = vmatpush1.bf16.msra.mxu0 0
        %2573 = vmatprep.subr.bf16.mxu0 0
        %2574 = vmatpush1.bf16.msra.mxu0 0
        %2575 = vmatprep.subr.bf16.mxu0 0
        %2576 = vmatpush1.bf16.msra.mxu0 0
        %2577 = vmatprep.subr.bf16.mxu0 0
        %2578 = vmatpush1.bf16.msra.mxu0 0
        %2579 = vmatprep.subr.bf16.mxu0 0
        %2580 = vmatpush1.bf16.msra.mxu0 0
        %2581 = vmatprep.subr.bf16.mxu0 0
        %2582 = vmatpush1.bf16.msra.mxu0 0
        %2583 = vmatprep.subr.bf16.mxu0 0
        %2584 = vmatpush1.bf16.msra.mxu0 0
        %2585 = vmatprep.subr.bf16.mxu0 0
        %2586 = vmatpush1.bf16.msra.mxu0 0
        %2587 = vmatprep.subr.bf16.mxu0 0
        %2588 = vmatpush1.bf16.msra.mxu0 0
        %2589 = vmatprep.subr.bf16.mxu0 0
        %2590 = vmatpush1.bf16.msra.mxu0 0
        %2591 = vmatprep.mubr.bf16.mxu0 0
        %2592 = vmatmul.mubr.bf16.gmra.mrb[0].mxu0 %v2554
        %v2593 = vpop.f32.mrb[0].mxu0
        %v2594 = vadd.f32 0.0, %v2593
        %v2595 = vpop.f32.mrb[0].mxu0
        %v2596 = vpop.f32.mrb[0].mxu0
        %v2597 = vpop.f32.mrb[0].mxu0
        %2598 = vdwg.mxu0
        %2599 = vst.msk [vmem:[#allocation3] sm:$0xff] %vm1629, %v2594
        %2601 = vrot.lane.b32.xlu0 %v2492, 96
        %v2602 = vpop.permute.xlu0 %2601
        %2604 = vrot.lane.b32.xlu0 %v2493, 96
        %v2605 = vpop.permute.xlu0 %2604
        %v2607 = vsel %vm1629, %v2602, 0
        %v2610 = vsel %vm1629, %v2605, 0
        %2612 = vmatprep.subr.bf16.mxu0 0
        %2613 = vmatpush1.bf16.xpose.msra.mxu0 %v2610
        %2614 = vmatprep.subr.bf16.mxu0 0
        %2615 = vmatpush1.bf16.xpose.msra.mxu0 0
        %2616 = vmatprep.subr.bf16.mxu0 0
        %2617 = vmatpush1.bf16.xpose.msra.mxu0 0
        %2618 = vmatprep.subr.bf16.mxu0 0
        %2619 = vmatpush1.bf16.xpose.msra.mxu0 0
        %2620 = vmatprep.subr.bf16.mxu0 0
        %2621 = vmatpush1.bf16.xpose.msra.mxu0 0
        %2622 = vmatprep.subr.bf16.mxu0 0
        %2623 = vmatpush1.bf16.xpose.msra.mxu0 0
        %2624 = vmatprep.subr.bf16.mxu0 0
        %2625 = vmatpush1.bf16.xpose.msra.mxu0 0
        %2626 = vmatprep.subr.bf16.mxu0 0
        %2627 = vmatpush1.bf16.xpose.msra.mxu0 0
        %2628 = vmatprep.subr.bf16.mxu0 0
        %2629 = vmatpush1.bf16.xpose.msra.mxu0 0
        %2630 = vmatprep.subr.bf16.mxu0 0
        %2631 = vmatpush1.bf16.xpose.msra.mxu0 0
        %2632 = vmatprep.subr.bf16.mxu0 0
        %2633 = vmatpush1.bf16.xpose.msra.mxu0 0
        %2634 = vmatprep.subr.bf16.mxu0 0
        %2635 = vmatpush1.bf16.xpose.msra.mxu0 0
        %2636 = vmatprep.subr.bf16.mxu0 0
        %2637 = vmatpush1.bf16.xpose.msra.mxu0 0
        %2638 = vmatprep.subr.bf16.mxu0 0
        %2639 = vmatpush1.bf16.xpose.msra.mxu0 0
        %2640 = vmatprep.subr.bf16.mxu0 0
        %2641 = vmatpush1.bf16.xpose.msra.mxu0 0
        %2642 = vmatprep.subr.bf16.mxu0 0
        %2643 = vmatpush1.bf16.xpose.msra.mxu0 0
        %2644 = vmatprep.mubr.bf16.mxu0 0
        %2645 = vmatmul.mubr.bf16.gmra.mrb[0].mxu0 %v2607
        %v2646 = vpop.f32.mrb[0].mxu0
        %v2647 = vadd.f32 0.0, %v2646
        %v2648 = vpop.f32.mrb[0].mxu0
        %v2649 = vpop.f32.mrb[0].mxu0
        %v2650 = vpop.f32.mrb[0].mxu0
        %2651 = vdwg.mxu0
        %v2652 = vsel %vm1676, %v2647, -inf
        %2653 = vmax.xlane.f32.xlu0 %v2652
        %v2654 = vpop.xlane.xlu0 %2653
        %v2655 = vsub.f32 %v2647, %v2654
        %v2656 = vmul.f32 %v2655, 1.442695
        %v2657 = vpow.pop %v2656
        %v2658 = vsel %vm1676, %v2657, 0.0
        %2659 = vadd.xlane.f32.xlu0 %v2658
        %v2660 = vpop.xlane.xlu0 %2659
        %v2661 = vrcp.pop %v2660
        %v2662 = vmul.f32 %v2657, %v2661
        %v2663 = vpack.c.bf16 %v2662, %v2662
        %2665 = vrot.lane.b32.xlu0 %v2494, 96
        %v2666 = vpop.permute.xlu0 %2665
        %v2668 = vsel %vm1676, %v2663, 0
        %v2671 = vsel %vm1692, %v2666, 0
        %2673 = vmatprep.subr.bf16.mxu0 0
        %2674 = vmatpush1.bf16.msra.mxu0 %v2671
        %2675 = vmatprep.subr.bf16.mxu0 0
        %2676 = vmatpush1.bf16.msra.mxu0 0
        %2677 = vmatprep.subr.bf16.mxu0 0
        %2678 = vmatpush1.bf16.msra.mxu0 0
        %2679 = vmatprep.subr.bf16.mxu0 0
        %2680 = vmatpush1.bf16.msra.mxu0 0
        %2681 = vmatprep.subr.bf16.mxu0 0
        %2682 = vmatpush1.bf16.msra.mxu0 0
        %2683 = vmatprep.subr.bf16.mxu0 0
        %2684 = vmatpush1.bf16.msra.mxu0 0
        %2685 = vmatprep.subr.bf16.mxu0 0
        %2686 = vmatpush1.bf16.msra.mxu0 0
        %2687 = vmatprep.subr.bf16.mxu0 0
        %2688 = vmatpush1.bf16.msra.mxu0 0
        %2689 = vmatprep.subr.bf16.mxu0 0
        %2690 = vmatpush1.bf16.msra.mxu0 0
        %2691 = vmatprep.subr.bf16.mxu0 0
        %2692 = vmatpush1.bf16.msra.mxu0 0
        %2693 = vmatprep.subr.bf16.mxu0 0
        %2694 = vmatpush1.bf16.msra.mxu0 0
        %2695 = vmatprep.subr.bf16.mxu0 0
        %2696 = vmatpush1.bf16.msra.mxu0 0
        %2697 = vmatprep.subr.bf16.mxu0 0
        %2698 = vmatpush1.bf16.msra.mxu0 0
        %2699 = vmatprep.subr.bf16.mxu0 0
        %2700 = vmatpush1.bf16.msra.mxu0 0
        %2701 = vmatprep.subr.bf16.mxu0 0
        %2702 = vmatpush1.bf16.msra.mxu0 0
        %2703 = vmatprep.subr.bf16.mxu0 0
        %2704 = vmatpush1.bf16.msra.mxu0 0
        %2705 = vmatprep.mubr.bf16.mxu0 0
        %2706 = vmatmul.mubr.bf16.gmra.mrb[0].mxu0 %v2668
        %v2707 = vpop.f32.mrb[0].mxu0
        %v2708 = vadd.f32 0.0, %v2707
        %v2709 = vpop.f32.mrb[0].mxu0
        %v2710 = vpop.f32.mrb[0].mxu0
        %v2711 = vpop.f32.mrb[0].mxu0
        %2712 = vdwg.mxu0
        %2714 = vrot.lane.b32.xlu0 %v2708, 32
        %v2715 = vpop.permute.xlu0 %2714
        %2717 = vst.msk [vmem:[#allocation3] sm:$0xff] %vm1854, %v2715
        %2718 = vrot.lane.b32.xlu0 %v2492, 64
        %v2719 = vpop.permute.xlu0 %2718
        %2720 = vrot.lane.b32.xlu0 %v2493, 64
        %v2721 = vpop.permute.xlu0 %2720
        %v2723 = vsel %vm1629, %v2719, 0
        %v2726 = vsel %vm1629, %v2721, 0
        %2728 = vmatprep.subr.bf16.mxu0 0
        %2729 = vmatpush1.bf16.xpose.msra.mxu0 %v2726
        %2730 = vmatprep.subr.bf16.mxu0 0
        %2731 = vmatpush1.bf16.xpose.msra.mxu0 0
        %2732 = vmatprep.subr.bf16.mxu0 0
        %2733 = vmatpush1.bf16.xpose.msra.mxu0 0
        %2734 = vmatprep.subr.bf16.mxu0 0
        %2735 = vmatpush1.bf16.xpose.msra.mxu0 0
        %2736 = vmatprep.subr.bf16.mxu0 0
        %2737 = vmatpush1.bf16.xpose.msra.mxu0 0
        %2738 = vmatprep.subr.bf16.mxu0 0
        %2739 = vmatpush1.bf16.xpose.msra.mxu0 0
        %2740 = vmatprep.subr.bf16.mxu0 0
        %2741 = vmatpush1.bf16.xpose.msra.mxu0 0
        %2742 = vmatprep.subr.bf16.mxu0 0
        %2743 = vmatpush1.bf16.xpose.msra.mxu0 0
        %2744 = vmatprep.subr.bf16.mxu0 0
        %2745 = vmatpush1.bf16.xpose.msra.mxu0 0
        %2746 = vmatprep.subr.bf16.mxu0 0
        %2747 = vmatpush1.bf16.xpose.msra.mxu0 0
        %2748 = vmatprep.subr.bf16.mxu0 0
        %2749 = vmatpush1.bf16.xpose.msra.mxu0 0
        %2750 = vmatprep.subr.bf16.mxu0 0
        %2751 = vmatpush1.bf16.xpose.msra.mxu0 0
        %2752 = vmatprep.subr.bf16.mxu0 0
        %2753 = vmatpush1.bf16.xpose.msra.mxu0 0
        %2754 = vmatprep.subr.bf16.mxu0 0
        %2755 = vmatpush1.bf16.xpose.msra.mxu0 0
        %2756 = vmatprep.subr.bf16.mxu0 0
        %2757 = vmatpush1.bf16.xpose.msra.mxu0 0
        %2758 = vmatprep.subr.bf16.mxu0 0
        %2759 = vmatpush1.bf16.xpose.msra.mxu0 0
        %2760 = vmatprep.mubr.bf16.mxu0 0
        %2761 = vmatmul.mubr.bf16.gmra.mrb[0].mxu0 %v2723
        %v2762 = vpop.f32.mrb[0].mxu0
        %v2763 = vadd.f32 0.0, %v2762
        %v2764 = vpop.f32.mrb[0].mxu0
        %v2765 = vpop.f32.mrb[0].mxu0
        %v2766 = vpop.f32.mrb[0].mxu0
        %2767 = vdwg.mxu0
        %v2768 = vsel %vm1676, %v2763, -inf
        %2769 = vmax.xlane.f32.xlu0 %v2768
        %v2770 = vpop.xlane.xlu0 %2769
        %v2771 = vsub.f32 %v2763, %v2770
        %v2772 = vmul.f32 %v2771, 1.442695
        %v2773 = vpow.pop %v2772
        %v2774 = vsel %vm1676, %v2773, 0.0
        %2775 = vadd.xlane.f32.xlu0 %v2774
        %v2776 = vpop.xlane.xlu0 %2775
        %v2777 = vrcp.pop %v2776
        %v2778 = vmul.f32 %v2773, %v2777
        %v2779 = vpack.c.bf16 %v2778, %v2778
        %2780 = vrot.lane.b32.xlu0 %v2494, 64
        %v2781 = vpop.permute.xlu0 %2780
        %v2783 = vsel %vm1676, %v2779, 0
        %v2786 = vsel %vm1692, %v2781, 0
        %2788 = vmatprep.subr.bf16.mxu0 0
        %2789 = vmatpush1.bf16.msra.mxu0 %v2786
        %2790 = vmatprep.subr.bf16.mxu0 0
        %2791 = vmatpush1.bf16.msra.mxu0 0
        %2792 = vmatprep.subr.bf16.mxu0 0
        %2793 = vmatpush1.bf16.msra.mxu0 0
        %2794 = vmatprep.subr.bf16.mxu0 0
        %2795 = vmatpush1.bf16.msra.mxu0 0
        %2796 = vmatprep.subr.bf16.mxu0 0
        %2797 = vmatpush1.bf16.msra.mxu0 0
        %2798 = vmatprep.subr.bf16.mxu0 0
        %2799 = vmatpush1.bf16.msra.mxu0 0
        %2800 = vmatprep.subr.bf16.mxu0 0
        %2801 = vmatpush1.bf16.msra.mxu0 0
        %2802 = vmatprep.subr.bf16.mxu0 0
        %2803 = vmatpush1.bf16.msra.mxu0 0
        %2804 = vmatprep.subr.bf16.mxu0 0
        %2805 = vmatpush1.bf16.msra.mxu0 0
        %2806 = vmatprep.subr.bf16.mxu0 0
        %2807 = vmatpush1.bf16.msra.mxu0 0
        %2808 = vmatprep.subr.bf16.mxu0 0
        %2809 = vmatpush1.bf16.msra.mxu0 0
        %2810 = vmatprep.subr.bf16.mxu0 0
        %2811 = vmatpush1.bf16.msra.mxu0 0
        %2812 = vmatprep.subr.bf16.mxu0 0
        %2813 = vmatpush1.bf16.msra.mxu0 0
        %2814 = vmatprep.subr.bf16.mxu0 0
        %2815 = vmatpush1.bf16.msra.mxu0 0
        %2816 = vmatprep.subr.bf16.mxu0 0
        %2817 = vmatpush1.bf16.msra.mxu0 0
        %2818 = vmatprep.subr.bf16.mxu0 0
        %2819 = vmatpush1.bf16.msra.mxu0 0
        %2820 = vmatprep.mubr.bf16.mxu0 0
        %2821 = vmatmul.mubr.bf16.gmra.mrb[0].mxu0 %v2783
        %v2822 = vpop.f32.mrb[0].mxu0
        %v2823 = vadd.f32 0.0, %v2822
        %v2824 = vpop.f32.mrb[0].mxu0
        %v2825 = vpop.f32.mrb[0].mxu0
        %v2826 = vpop.f32.mrb[0].mxu0
        %2827 = vdwg.mxu0
        %2829 = vrot.lane.b32.xlu0 %v2823, 64
        %v2830 = vpop.permute.xlu0 %2829
        %2832 = vst.msk [vmem:[#allocation3] sm:$0xff] %vm1970, %v2830
        %2833 = vrot.lane.b32.xlu0 %v2492, 32
        %v2834 = vpop.permute.xlu0 %2833
        %2835 = vrot.lane.b32.xlu0 %v2493, 32
        %v2836 = vpop.permute.xlu0 %2835
        %v2838 = vsel %vm1629, %v2834, 0
        %v2841 = vsel %vm1629, %v2836, 0
        %2843 = vmatprep.subr.bf16.mxu0 0
        %2844 = vmatpush1.bf16.xpose.msra.mxu0 %v2841
        %2845 = vmatprep.subr.bf16.mxu0 0
        %2846 = vmatpush1.bf16.xpose.msra.mxu0 0
        %2847 = vmatprep.subr.bf16.mxu0 0
        %2848 = vmatpush1.bf16.xpose.msra.mxu0 0
        %2849 = vmatprep.subr.bf16.mxu0 0
        %2850 = vmatpush1.bf16.xpose.msra.mxu0 0
        %2851 = vmatprep.subr.bf16.mxu0 0
        %2852 = vmatpush1.bf16.xpose.msra.mxu0 0
        %2853 = vmatprep.subr.bf16.mxu0 0
        %2854 = vmatpush1.bf16.xpose.msra.mxu0 0
        %2855 = vmatprep.subr.bf16.mxu0 0
        %2856 = vmatpush1.bf16.xpose.msra.mxu0 0
        %2857 = vmatprep.subr.bf16.mxu0 0
        %2858 = vmatpush1.bf16.xpose.msra.mxu0 0
        %2859 = vmatprep.subr.bf16.mxu0 0
        %2860 = vmatpush1.bf16.xpose.msra.mxu0 0
        %2861 = vmatprep.subr.bf16.mxu0 0
        %2862 = vmatpush1.bf16.xpose.msra.mxu0 0
        %2863 = vmatprep.subr.bf16.mxu0 0
        %2864 = vmatpush1.bf16.xpose.msra.mxu0 0
        %2865 = vmatprep.subr.bf16.mxu0 0
        %2866 = vmatpush1.bf16.xpose.msra.mxu0 0
        %2867 = vmatprep.subr.bf16.mxu0 0
        %2868 = vmatpush1.bf16.xpose.msra.mxu0 0
        %2869 = vmatprep.subr.bf16.mxu0 0
        %2870 = vmatpush1.bf16.xpose.msra.mxu0 0
        %2871 = vmatprep.subr.bf16.mxu0 0
        %2872 = vmatpush1.bf16.xpose.msra.mxu0 0
        %2873 = vmatprep.subr.bf16.mxu0 0
        %2874 = vmatpush1.bf16.xpose.msra.mxu0 0
        %2875 = vmatprep.mubr.bf16.mxu0 0
        %2876 = vmatmul.mubr.bf16.gmra.mrb[0].mxu0 %v2838
        %v2877 = vpop.f32.mrb[0].mxu0
        %v2878 = vadd.f32 0.0, %v2877
        %v2879 = vpop.f32.mrb[0].mxu0
        %v2880 = vpop.f32.mrb[0].mxu0
        %v2881 = vpop.f32.mrb[0].mxu0
        %2882 = vdwg.mxu0
        %v2883 = vsel %vm1676, %v2878, -inf
        %2884 = vmax.xlane.f32.xlu0 %v2883
        %v2885 = vpop.xlane.xlu0 %2884
        %v2886 = vsub.f32 %v2878, %v2885
        %v2887 = vmul.f32 %v2886, 1.442695
        %v2888 = vpow.pop %v2887
        %v2889 = vsel %vm1676, %v2888, 0.0
        %2890 = vadd.xlane.f32.xlu0 %v2889
        %v2891 = vpop.xlane.xlu0 %2890
        %v2892 = vrcp.pop %v2891
        %v2893 = vmul.f32 %v2888, %v2892
        %v2894 = vpack.c.bf16 %v2893, %v2893
        %2895 = vrot.lane.b32.xlu0 %v2494, 32
        %v2896 = vpop.permute.xlu0 %2895
        %v2898 = vsel %vm1676, %v2894, 0
        %v2901 = vsel %vm1692, %v2896, 0
        %2903 = vmatprep.subr.bf16.mxu0 0
        %2904 = vmatpush1.bf16.msra.mxu0 %v2901
        %2905 = vmatprep.subr.bf16.mxu0 0
        %2906 = vmatpush1.bf16.msra.mxu0 0
        %2907 = vmatprep.subr.bf16.mxu0 0
        %2908 = vmatpush1.bf16.msra.mxu0 0
        %2909 = vmatprep.subr.bf16.mxu0 0
        %2910 = vmatpush1.bf16.msra.mxu0 0
        %2911 = vmatprep.subr.bf16.mxu0 0
        %2912 = vmatpush1.bf16.msra.mxu0 0
        %2913 = vmatprep.subr.bf16.mxu0 0
        %2914 = vmatpush1.bf16.msra.mxu0 0
        %2915 = vmatprep.subr.bf16.mxu0 0
        %2916 = vmatpush1.bf16.msra.mxu0 0
        %2917 = vmatprep.subr.bf16.mxu0 0
        %2918 = vmatpush1.bf16.msra.mxu0 0
        %2919 = vmatprep.subr.bf16.mxu0 0
        %2920 = vmatpush1.bf16.msra.mxu0 0
        %2921 = vmatprep.subr.bf16.mxu0 0
        %2922 = vmatpush1.bf16.msra.mxu0 0
        %2923 = vmatprep.subr.bf16.mxu0 0
        %2924 = vmatpush1.bf16.msra.mxu0 0
        %2925 = vmatprep.subr.bf16.mxu0 0
        %2926 = vmatpush1.bf16.msra.mxu0 0
        %2927 = vmatprep.subr.bf16.mxu0 0
        %2928 = vmatpush1.bf16.msra.mxu0 0
        %2929 = vmatprep.subr.bf16.mxu0 0
        %2930 = vmatpush1.bf16.msra.mxu0 0
        %2931 = vmatprep.subr.bf16.mxu0 0
        %2932 = vmatpush1.bf16.msra.mxu0 0
        %2933 = vmatprep.subr.bf16.mxu0 0
        %2934 = vmatpush1.bf16.msra.mxu0 0
        %2935 = vmatprep.mubr.bf16.mxu0 0
        %2936 = vmatmul.mubr.bf16.gmra.mrb[0].mxu0 %v2898
        %v2937 = vpop.f32.mrb[0].mxu0
        %v2938 = vadd.f32 0.0, %v2937
        %v2939 = vpop.f32.mrb[0].mxu0
        %v2940 = vpop.f32.mrb[0].mxu0
        %v2941 = vpop.f32.mrb[0].mxu0
        %2942 = vdwg.mxu0
        %2944 = vrot.lane.b32.xlu0 %v2938, 96
        %v2945 = vpop.permute.xlu0 %2944
        %2947 = vst.msk [vmem:[#allocation3] sm:$0xff] %vm2086, %v2945
        %v2948 = vld [vmem:[#allocation3] sm:$0xff]
        %v2949 = vpack.c.bf16 %v2948, %v2948
        %v2950 = vld [vmem:[%s1108] sm:$0xf]
        %v2951 = vld [vmem:[%s1108 + $0x4] sm:$0xf]
        %v2952 = vld [vmem:[%s1108 + $0x8] sm:$0xf]
        %v2953 = vld [vmem:[%s1108 + $0xc] sm:$0xf]
        %v2954 = vld [vmem:[%s1108 + $0x10] sm:$0xf]
        %v2955 = vld [vmem:[%s1108 + $0x14] sm:$0xf]
        %v2956 = vld [vmem:[%s1108 + $0x18] sm:$0xf]
        %v2957 = vld [vmem:[%s1108 + $0x1c] sm:$0xf]
        %v2958 = vld [vmem:[%s1108 + $0x20] sm:$0xf]
        %v2959 = vld [vmem:[%s1108 + $0x24] sm:$0xf]
        %v2960 = vld [vmem:[%s1108 + $0x28] sm:$0xf]
        %v2961 = vld [vmem:[%s1108 + $0x2c] sm:$0xf]
        %v2962 = vld [vmem:[%s1108 + $0x30] sm:$0xf]
        %v2963 = vld [vmem:[%s1108 + $0x34] sm:$0xf]
        %v2964 = vld [vmem:[%s1108 + $0x38] sm:$0xf]
        %v2965 = vld [vmem:[%s1108 + $0x3c] sm:$0xf]
        %v2966 = vld [vmem:[%s1116] sm:$0x1]
        %v2968 = vlaneseq
        %v2969 = vshrl.u32 %v2968, 7
        %v2970 = vsub.s32 0, %v2969
        %v2971 = vrot.slane %v2966, %v2970
        %v2989 = vunpack.c.l.b16 %v2950
        %v2990 = vunpack.c.l.b16 %v2951
        %v2991 = vunpack.c.l.b16 %v2952
        %v2992 = vunpack.c.l.b16 %v2953
        %v2993 = vunpack.c.l.b16 %v2954
        %v2994 = vunpack.c.l.b16 %v2955
        %v2995 = vunpack.c.l.b16 %v2956
        %v2996 = vunpack.c.l.b16 %v2957
        %v2997 = vunpack.c.l.b16 %v2958
        %v2998 = vunpack.c.l.b16 %v2959
        %v2999 = vunpack.c.l.b16 %v2960
        %v3000 = vunpack.c.l.b16 %v2961
        %v3001 = vunpack.c.l.b16 %v2962
        %v3002 = vunpack.c.l.b16 %v2963
        %v3003 = vunpack.c.l.b16 %v2964
        %v3004 = vunpack.c.l.b16 %v2965
        %v3005 = vpack.c.b16 %v2990, %v2989
        %v3006 = vpack.c.b16 %v2992, %v2991
        %v3007 = vpack.c.b16 %v2994, %v2993
        %v3008 = vpack.c.b16 %v2996, %v2995
        %v3009 = vpack.c.b16 %v2998, %v2997
        %v3010 = vpack.c.b16 %v3000, %v2999
        %v3011 = vpack.c.b16 %v3002, %v3001
        %v3012 = vpack.c.b16 %v3004, %v3003
        %3021 = vmatprep.subr.bf16.mxu0 0
        %3022 = vmatpush1.bf16.msra.mxu0 %v3005
        %3023 = vmatprep.subr.bf16.mxu0 0
        %3024 = vmatpush1.bf16.msra.mxu0 %v3006
        %3025 = vmatprep.subr.bf16.mxu0 0
        %3026 = vmatpush1.bf16.msra.mxu0 %v3007
        %3027 = vmatprep.subr.bf16.mxu0 0
        %3028 = vmatpush1.bf16.msra.mxu0 %v3008
        %3029 = vmatprep.subr.bf16.mxu0 0
        %3030 = vmatpush1.bf16.msra.mxu0 %v3009
        %3031 = vmatprep.subr.bf16.mxu0 0
        %3032 = vmatpush1.bf16.msra.mxu0 %v3010
        %3033 = vmatprep.subr.bf16.mxu0 0
        %3034 = vmatpush1.bf16.msra.mxu0 %v3011
        %3035 = vmatprep.subr.bf16.mxu0 0
        %3036 = vmatpush1.bf16.msra.mxu0 %v3012
        %3037 = vmatprep.subr.bf16.mxu0 0
        %3038 = vmatpush1.bf16.msra.mxu0 0
        %3039 = vmatprep.subr.bf16.mxu0 0
        %3040 = vmatpush1.bf16.msra.mxu0 0
        %3041 = vmatprep.subr.bf16.mxu0 0
        %3042 = vmatpush1.bf16.msra.mxu0 0
        %3043 = vmatprep.subr.bf16.mxu0 0
        %3044 = vmatpush1.bf16.msra.mxu0 0
        %3045 = vmatprep.subr.bf16.mxu0 0
        %3046 = vmatpush1.bf16.msra.mxu0 0
        %3047 = vmatprep.subr.bf16.mxu0 0
        %3048 = vmatpush1.bf16.msra.mxu0 0
        %3049 = vmatprep.subr.bf16.mxu0 0
        %3050 = vmatpush1.bf16.msra.mxu0 0
        %3051 = vmatprep.subr.bf16.mxu0 0
        %3052 = vmatpush1.bf16.msra.mxu0 0
        %3053 = vmatprep.mubr.bf16.mxu0 0
        %3054 = vmatmul.mubr.bf16.gmra.mrb[0].mxu0 %v2949
        %v3055 = vpop.f32.mrb[0].mxu0
        %v3056 = vadd.f32 %v2971, %v3055
        %v3057 = vpop.f32.mrb[0].mxu0
        %v3058 = vpop.f32.mrb[0].mxu0
        %v3059 = vpop.f32.mrb[0].mxu0
        %3060 = vdwg.mxu0
        %v3061 = vadd.f32 %v2229, %v3056
        %v3062 = vld [vmem:[%s1166] sm:$0x1]
        %v3063 = vld [vmem:[%s1174] sm:$0x1]
        %3064 = vadd.xlane.f32.xlu0 %v3061
        %v3065 = vpop.xlane.xlu0 %3064
        %v3066 = vmul.f32 %v3065, %v2206
        %v3067 = vsub.f32 %v3061, %v3066
        %v3068 = vmul.f32 %v3067, %v3067
        %3069 = vadd.xlane.f32.xlu0 %v3068
        %v3070 = vpop.xlane.xlu0 %3069
        %v3071 = vmul.f32 %v3070, %v2206
        %v3072 = vadd.f32 %v3071, 1e-05
        %v3073 = vrsqrt.pop %v3072
        %v3074 = vmul.f32 %v3067, %v3073
        %v3076 = vlaneseq
        %v3077 = vshrl.u32 %v3076, 7
        %v3078 = vsub.s32 0, %v3077
        %v3079 = vrot.slane %v3062, %v3078
        %v3081 = vmul.f32 %v3074, %v3079
        %v3083 = vlaneseq
        %v3084 = vshrl.u32 %v3083, 7
        %v3085 = vsub.s32 0, %v3084
        %v3086 = vrot.slane %v3063, %v3085
        %v3088 = vadd.f32 %v3081, %v3086
        %v3089 = vpack.c.bf16 %v3088, %v3088
        %v3090 = vld [vmem:[%s1125] sm:$0xff]
        %v3091 = vld [vmem:[%s1125 + $0x8] sm:$0xff]
        %v3092 = vld [vmem:[%s1125 + $0x10] sm:$0xff]
        %v3093 = vld [vmem:[%s1125 + $0x18] sm:$0xff]
        %v3094 = vld [vmem:[%s1125 + $0x20] sm:$0xff]
        %v3095 = vld [vmem:[%s1125 + $0x28] sm:$0xff]
        %v3096 = vld [vmem:[%s1125 + $0x30] sm:$0xff]
        %v3097 = vld [vmem:[%s1125 + $0x38] sm:$0xff]
        %v3098 = vld [vmem:[%s1125 + $0x40] sm:$0xff]
        %v3099 = vld [vmem:[%s1125 + $0x48] sm:$0xff]
        %v3100 = vld [vmem:[%s1125 + $0x50] sm:$0xff]
        %v3101 = vld [vmem:[%s1125 + $0x58] sm:$0xff]
        %v3102 = vld [vmem:[%s1125 + $0x60] sm:$0xff]
        %v3103 = vld [vmem:[%s1125 + $0x68] sm:$0xff]
        %v3104 = vld [vmem:[%s1125 + $0x70] sm:$0xff]
        %v3105 = vld [vmem:[%s1125 + $0x78] sm:$0xff]
        %v3106 = vld [vmem:[%s1125 + $0x80] sm:$0xff]
        %v3107 = vld [vmem:[%s1125 + $0x88] sm:$0xff]
        %v3108 = vld [vmem:[%s1125 + $0x90] sm:$0xff]
        %v3109 = vld [vmem:[%s1125 + $0x98] sm:$0xff]
        %v3110 = vld [vmem:[%s1125 + $0xa0] sm:$0xff]
        %v3111 = vld [vmem:[%s1125 + $0xa8] sm:$0xff]
        %v3112 = vld [vmem:[%s1125 + $0xb0] sm:$0xff]
        %v3113 = vld [vmem:[%s1125 + $0xb8] sm:$0xff]
        %v3114 = vld [vmem:[%s1125 + $0xc0] sm:$0xff]
        %v3115 = vld [vmem:[%s1125 + $0xc8] sm:$0xff]
        %v3116 = vld [vmem:[%s1125 + $0xd0] sm:$0xff]
        %v3117 = vld [vmem:[%s1125 + $0xd8] sm:$0xff]
        %v3118 = vld [vmem:[%s1125 + $0xe0] sm:$0xff]
        %v3119 = vld [vmem:[%s1125 + $0xe8] sm:$0xff]
        %v3120 = vld [vmem:[%s1125 + $0xf0] sm:$0xff]
        %v3121 = vld [vmem:[%s1125 + $0xf8] sm:$0xff]
        %v3122 = vld [vmem:[%s1125 + $0x100] sm:$0xff]
        %v3123 = vld [vmem:[%s1125 + $0x108] sm:$0xff]
        %v3124 = vld [vmem:[%s1125 + $0x110] sm:$0xff]
        %v3125 = vld [vmem:[%s1125 + $0x118] sm:$0xff]
        %v3126 = vld [vmem:[%s1125 + $0x120] sm:$0xff]
        %v3127 = vld [vmem:[%s1125 + $0x128] sm:$0xff]
        %v3128 = vld [vmem:[%s1125 + $0x130] sm:$0xff]
        %v3129 = vld [vmem:[%s1125 + $0x138] sm:$0xff]
        %v3130 = vld [vmem:[%s1125 + $0x140] sm:$0xff]
        %v3131 = vld [vmem:[%s1125 + $0x148] sm:$0xff]
        %v3132 = vld [vmem:[%s1125 + $0x150] sm:$0xff]
        %v3133 = vld [vmem:[%s1125 + $0x158] sm:$0xff]
        %v3134 = vld [vmem:[%s1125 + $0x160] sm:$0xff]
        %v3135 = vld [vmem:[%s1125 + $0x168] sm:$0xff]
        %v3136 = vld [vmem:[%s1125 + $0x170] sm:$0xff]
        %v3137 = vld [vmem:[%s1125 + $0x178] sm:$0xff]
        %v3138 = vld [vmem:[%s1125 + $0x180] sm:$0xff]
        %v3139 = vld [vmem:[%s1125 + $0x188] sm:$0xff]
        %v3140 = vld [vmem:[%s1125 + $0x190] sm:$0xff]
        %v3141 = vld [vmem:[%s1125 + $0x198] sm:$0xff]
        %v3142 = vld [vmem:[%s1125 + $0x1a0] sm:$0xff]
        %v3143 = vld [vmem:[%s1125 + $0x1a8] sm:$0xff]
        %v3144 = vld [vmem:[%s1125 + $0x1b0] sm:$0xff]
        %v3145 = vld [vmem:[%s1125 + $0x1b8] sm:$0xff]
        %v3146 = vld [vmem:[%s1125 + $0x1c0] sm:$0xff]
        %v3147 = vld [vmem:[%s1125 + $0x1c8] sm:$0xff]
        %v3148 = vld [vmem:[%s1125 + $0x1d0] sm:$0xff]
        %v3149 = vld [vmem:[%s1125 + $0x1d8] sm:$0xff]
        %v3150 = vld [vmem:[%s1125 + $0x1e0] sm:$0xff]
        %v3151 = vld [vmem:[%s1125 + $0x1e8] sm:$0xff]
        %v3152 = vld [vmem:[%s1125 + $0x1f0] sm:$0xff]
        %v3153 = vld [vmem:[%s1125 + $0x1f8] sm:$0xff]
        %v3154 = vld [vmem:[%s1125 + $0x200] sm:$0xff]
        %v3155 = vld [vmem:[%s1125 + $0x208] sm:$0xff]
        %v3156 = vld [vmem:[%s1125 + $0x210] sm:$0xff]
        %v3157 = vld [vmem:[%s1125 + $0x218] sm:$0xff]
        %v3158 = vld [vmem:[%s1125 + $0x220] sm:$0xff]
        %v3159 = vld [vmem:[%s1125 + $0x228] sm:$0xff]
        %v3160 = vld [vmem:[%s1125 + $0x230] sm:$0xff]
        %v3161 = vld [vmem:[%s1125 + $0x238] sm:$0xff]
        %v3162 = vld [vmem:[%s1125 + $0x240] sm:$0xff]
        %v3163 = vld [vmem:[%s1125 + $0x248] sm:$0xff]
        %v3164 = vld [vmem:[%s1125 + $0x250] sm:$0xff]
        %v3165 = vld [vmem:[%s1125 + $0x258] sm:$0xff]
        %v3166 = vld [vmem:[%s1125 + $0x260] sm:$0xff]
        %v3167 = vld [vmem:[%s1125 + $0x268] sm:$0xff]
        %v3168 = vld [vmem:[%s1125 + $0x270] sm:$0xff]
        %v3169 = vld [vmem:[%s1125 + $0x278] sm:$0xff]
        %v3170 = vld [vmem:[%s1125 + $0x280] sm:$0xff]
        %v3171 = vld [vmem:[%s1125 + $0x288] sm:$0xff]
        %v3172 = vld [vmem:[%s1125 + $0x290] sm:$0xff]
        %v3173 = vld [vmem:[%s1125 + $0x298] sm:$0xff]
        %v3174 = vld [vmem:[%s1125 + $0x2a0] sm:$0xff]
        %v3175 = vld [vmem:[%s1125 + $0x2a8] sm:$0xff]
        %v3176 = vld [vmem:[%s1125 + $0x2b0] sm:$0xff]
        %v3177 = vld [vmem:[%s1125 + $0x2b8] sm:$0xff]
        %v3178 = vld [vmem:[%s1125 + $0x2c0] sm:$0xff]
        %v3179 = vld [vmem:[%s1125 + $0x2c8] sm:$0xff]
        %v3180 = vld [vmem:[%s1125 + $0x2d0] sm:$0xff]
        %v3181 = vld [vmem:[%s1125 + $0x2d8] sm:$0xff]
        %v3182 = vld [vmem:[%s1125 + $0x2e0] sm:$0xff]
        %v3183 = vld [vmem:[%s1125 + $0x2e8] sm:$0xff]
        %v3184 = vld [vmem:[%s1125 + $0x2f0] sm:$0xff]
        %v3185 = vld [vmem:[%s1125 + $0x2f8] sm:$0xff]
        %v3186 = vld [vmem:[%s1125 + $0x300] sm:$0xff]
        %v3187 = vld [vmem:[%s1125 + $0x308] sm:$0xff]
        %v3188 = vld [vmem:[%s1125 + $0x310] sm:$0xff]
        %v3189 = vld [vmem:[%s1125 + $0x318] sm:$0xff]
        %v3190 = vld [vmem:[%s1125 + $0x320] sm:$0xff]
        %v3191 = vld [vmem:[%s1125 + $0x328] sm:$0xff]
        %v3192 = vld [vmem:[%s1125 + $0x330] sm:$0xff]
        %v3193 = vld [vmem:[%s1125 + $0x338] sm:$0xff]
        %v3194 = vld [vmem:[%s1125 + $0x340] sm:$0xff]
        %v3195 = vld [vmem:[%s1125 + $0x348] sm:$0xff]
        %v3196 = vld [vmem:[%s1125 + $0x350] sm:$0xff]
        %v3197 = vld [vmem:[%s1125 + $0x358] sm:$0xff]
        %v3198 = vld [vmem:[%s1125 + $0x360] sm:$0xff]
        %v3199 = vld [vmem:[%s1125 + $0x368] sm:$0xff]
        %v3200 = vld [vmem:[%s1125 + $0x370] sm:$0xff]
        %v3201 = vld [vmem:[%s1125 + $0x378] sm:$0xff]
        %v3202 = vld [vmem:[%s1125 + $0x380] sm:$0xff]
        %v3203 = vld [vmem:[%s1125 + $0x388] sm:$0xff]
        %v3204 = vld [vmem:[%s1125 + $0x390] sm:$0xff]
        %v3205 = vld [vmem:[%s1125 + $0x398] sm:$0xff]
        %v3206 = vld [vmem:[%s1125 + $0x3a0] sm:$0xff]
        %v3207 = vld [vmem:[%s1125 + $0x3a8] sm:$0xff]
        %v3208 = vld [vmem:[%s1125 + $0x3b0] sm:$0xff]
        %v3209 = vld [vmem:[%s1125 + $0x3b8] sm:$0xff]
        %v3210 = vld [vmem:[%s1125 + $0x3c0] sm:$0xff]
        %v3211 = vld [vmem:[%s1125 + $0x3c8] sm:$0xff]
        %v3212 = vld [vmem:[%s1125 + $0x3d0] sm:$0xff]
        %v3213 = vld [vmem:[%s1125 + $0x3d8] sm:$0xff]
        %v3214 = vld [vmem:[%s1125 + $0x3e0] sm:$0xff]
        %v3215 = vld [vmem:[%s1125 + $0x3e8] sm:$0xff]
        %v3216 = vld [vmem:[%s1125 + $0x3f0] sm:$0xff]
        %v3217 = vld [vmem:[%s1125 + $0x3f8] sm:$0xff]
        %v3218 = vld [vmem:[%s1351] sm:$0xff]
        %v3219 = vld [vmem:[%s1351 + $0x8] sm:$0xff]
        %v3222 = vlaneseq
        %v3223 = vshrl.u32 %v3222, 7
        %v3224 = vsub.s32 0, %v3223
        %v3225 = vrot.slane %v3218, %v3224
        %v3226 = vlaneseq
        %v3227 = vshrl.u32 %v3226, 7
        %v3228 = vsub.s32 1, %v3227
        %v3229 = vrot.slane %v3218, %v3228
        %v3230 = vlaneseq
        %v3231 = vshrl.u32 %v3230, 7
        %v3232 = vsub.s32 2, %v3231
        %v3233 = vrot.slane %v3218, %v3232
        %v3234 = vlaneseq
        %v3235 = vshrl.u32 %v3234, 7
        %v3236 = vsub.s32 3, %v3235
        %v3237 = vrot.slane %v3218, %v3236
        %v3238 = vlaneseq
        %v3239 = vshrl.u32 %v3238, 7
        %v3240 = vsub.s32 4, %v3239
        %v3241 = vrot.slane %v3218, %v3240
        %v3242 = vlaneseq
        %v3243 = vshrl.u32 %v3242, 7
        %v3244 = vsub.s32 5, %v3243
        %v3245 = vrot.slane %v3218, %v3244
        %v3246 = vlaneseq
        %v3247 = vshrl.u32 %v3246, 7
        %v3248 = vsub.s32 6, %v3247
        %v3249 = vrot.slane %v3218, %v3248
        %v3250 = vlaneseq
        %v3251 = vshrl.u32 %v3250, 7
        %v3252 = vsub.s32 7, %v3251
        %v3253 = vrot.slane %v3218, %v3252
        %v3254 = vlaneseq
        %v3255 = vshrl.u32 %v3254, 7
        %v3256 = vsub.s32 0, %v3255
        %v3257 = vrot.slane %v3219, %v3256
        %v3258 = vlaneseq
        %v3259 = vshrl.u32 %v3258, 7
        %v3260 = vsub.s32 1, %v3259
        %v3261 = vrot.slane %v3219, %v3260
        %v3262 = vlaneseq
        %v3263 = vshrl.u32 %v3262, 7
        %v3264 = vsub.s32 2, %v3263
        %v3265 = vrot.slane %v3219, %v3264
        %v3266 = vlaneseq
        %v3267 = vshrl.u32 %v3266, 7
        %v3268 = vsub.s32 3, %v3267
        %v3269 = vrot.slane %v3219, %v3268
        %v3270 = vlaneseq
        %v3271 = vshrl.u32 %v3270, 7
        %v3272 = vsub.s32 4, %v3271
        %v3273 = vrot.slane %v3219, %v3272
        %v3274 = vlaneseq
        %v3275 = vshrl.u32 %v3274, 7
        %v3276 = vsub.s32 5, %v3275
        %v3277 = vrot.slane %v3219, %v3276
        %v3278 = vlaneseq
        %v3279 = vshrl.u32 %v3278, 7
        %v3280 = vsub.s32 6, %v3279
        %v3281 = vrot.slane %v3219, %v3280
        %v3282 = vlaneseq
        %v3283 = vshrl.u32 %v3282, 7
        %v3284 = vsub.s32 7, %v3283
        %v3285 = vrot.slane %v3219, %v3284
        %v3430 = vunpack.c.l.b16 %v3090
        %v3431 = vunpack.c.h.b16 %v3090
        %v3432 = vunpack.c.l.b16 %v3091
        %v3433 = vunpack.c.h.b16 %v3091
        %v3434 = vunpack.c.l.b16 %v3092
        %v3435 = vunpack.c.h.b16 %v3092
        %v3436 = vunpack.c.l.b16 %v3093
        %v3437 = vunpack.c.h.b16 %v3093
        %v3438 = vunpack.c.l.b16 %v3094
        %v3439 = vunpack.c.h.b16 %v3094
        %v3440 = vunpack.c.l.b16 %v3095
        %v3441 = vunpack.c.h.b16 %v3095
        %v3442 = vunpack.c.l.b16 %v3096
        %v3443 = vunpack.c.h.b16 %v3096
        %v3444 = vunpack.c.l.b16 %v3097
        %v3445 = vunpack.c.h.b16 %v3097
        %v3446 = vunpack.c.l.b16 %v3098
        %v3447 = vunpack.c.h.b16 %v3098
        %v3448 = vunpack.c.l.b16 %v3099
        %v3449 = vunpack.c.h.b16 %v3099
        %v3450 = vunpack.c.l.b16 %v3100
        %v3451 = vunpack.c.h.b16 %v3100
        %v3452 = vunpack.c.l.b16 %v3101
        %v3453 = vunpack.c.h.b16 %v3101
        %v3454 = vunpack.c.l.b16 %v3102
        %v3455 = vunpack.c.h.b16 %v3102
        %v3456 = vunpack.c.l.b16 %v3103
        %v3457 = vunpack.c.h.b16 %v3103
        %v3458 = vunpack.c.l.b16 %v3104
        %v3459 = vunpack.c.h.b16 %v3104
        %v3460 = vunpack.c.l.b16 %v3105
        %v3461 = vunpack.c.h.b16 %v3105
        %v3462 = vunpack.c.l.b16 %v3106
        %v3463 = vunpack.c.h.b16 %v3106
        %v3464 = vunpack.c.l.b16 %v3107
        %v3465 = vunpack.c.h.b16 %v3107
        %v3466 = vunpack.c.l.b16 %v3108
        %v3467 = vunpack.c.h.b16 %v3108
        %v3468 = vunpack.c.l.b16 %v3109
        %v3469 = vunpack.c.h.b16 %v3109
        %v3470 = vunpack.c.l.b16 %v3110
        %v3471 = vunpack.c.h.b16 %v3110
        %v3472 = vunpack.c.l.b16 %v3111
        %v3473 = vunpack.c.h.b16 %v3111
        %v3474 = vunpack.c.l.b16 %v3112
        %v3475 = vunpack.c.h.b16 %v3112
        %v3476 = vunpack.c.l.b16 %v3113
        %v3477 = vunpack.c.h.b16 %v3113
        %v3478 = vunpack.c.l.b16 %v3114
        %v3479 = vunpack.c.h.b16 %v3114
        %v3480 = vunpack.c.l.b16 %v3115
        %v3481 = vunpack.c.h.b16 %v3115
        %v3482 = vunpack.c.l.b16 %v3116
        %v3483 = vunpack.c.h.b16 %v3116
        %v3484 = vunpack.c.l.b16 %v3117
        %v3485 = vunpack.c.h.b16 %v3117
        %v3486 = vunpack.c.l.b16 %v3118
        %v3487 = vunpack.c.h.b16 %v3118
        %v3488 = vunpack.c.l.b16 %v3119
        %v3489 = vunpack.c.h.b16 %v3119
        %v3490 = vunpack.c.l.b16 %v3120
        %v3491 = vunpack.c.h.b16 %v3120
        %v3492 = vunpack.c.l.b16 %v3121
        %v3493 = vunpack.c.h.b16 %v3121
        %v3494 = vunpack.c.l.b16 %v3122
        %v3495 = vunpack.c.h.b16 %v3122
        %v3496 = vunpack.c.l.b16 %v3123
        %v3497 = vunpack.c.h.b16 %v3123
        %v3498 = vunpack.c.l.b16 %v3124
        %v3499 = vunpack.c.h.b16 %v3124
        %v3500 = vunpack.c.l.b16 %v3125
        %v3501 = vunpack.c.h.b16 %v3125
        %v3502 = vunpack.c.l.b16 %v3126
        %v3503 = vunpack.c.h.b16 %v3126
        %v3504 = vunpack.c.l.b16 %v3127
        %v3505 = vunpack.c.h.b16 %v3127
        %v3506 = vunpack.c.l.b16 %v3128
        %v3507 = vunpack.c.h.b16 %v3128
        %v3508 = vunpack.c.l.b16 %v3129
        %v3509 = vunpack.c.h.b16 %v3129
        %v3510 = vunpack.c.l.b16 %v3130
        %v3511 = vunpack.c.h.b16 %v3130
        %v3512 = vunpack.c.l.b16 %v3131
        %v3513 = vunpack.c.h.b16 %v3131
        %v3514 = vunpack.c.l.b16 %v3132
        %v3515 = vunpack.c.h.b16 %v3132
        %v3516 = vunpack.c.l.b16 %v3133
        %v3517 = vunpack.c.h.b16 %v3133
        %v3518 = vunpack.c.l.b16 %v3134
        %v3519 = vunpack.c.h.b16 %v3134
        %v3520 = vunpack.c.l.b16 %v3135
        %v3521 = vunpack.c.h.b16 %v3135
        %v3522 = vunpack.c.l.b16 %v3136
        %v3523 = vunpack.c.h.b16 %v3136
        %v3524 = vunpack.c.l.b16 %v3137
        %v3525 = vunpack.c.h.b16 %v3137
        %v3526 = vunpack.c.l.b16 %v3138
        %v3527 = vunpack.c.h.b16 %v3138
        %v3528 = vunpack.c.l.b16 %v3139
        %v3529 = vunpack.c.h.b16 %v3139
        %v3530 = vunpack.c.l.b16 %v3140
        %v3531 = vunpack.c.h.b16 %v3140
        %v3532 = vunpack.c.l.b16 %v3141
        %v3533 = vunpack.c.h.b16 %v3141
        %v3534 = vunpack.c.l.b16 %v3142
        %v3535 = vunpack.c.h.b16 %v3142
        %v3536 = vunpack.c.l.b16 %v3143
        %v3537 = vunpack.c.h.b16 %v3143
        %v3538 = vunpack.c.l.b16 %v3144
        %v3539 = vunpack.c.h.b16 %v3144
        %v3540 = vunpack.c.l.b16 %v3145
        %v3541 = vunpack.c.h.b16 %v3145
        %v3542 = vunpack.c.l.b16 %v3146
        %v3543 = vunpack.c.h.b16 %v3146
        %v3544 = vunpack.c.l.b16 %v3147
        %v3545 = vunpack.c.h.b16 %v3147
        %v3546 = vunpack.c.l.b16 %v3148
        %v3547 = vunpack.c.h.b16 %v3148
        %v3548 = vunpack.c.l.b16 %v3149
        %v3549 = vunpack.c.h.b16 %v3149
        %v3550 = vunpack.c.l.b16 %v3150
        %v3551 = vunpack.c.h.b16 %v3150
        %v3552 = vunpack.c.l.b16 %v3151
        %v3553 = vunpack.c.h.b16 %v3151
        %v3554 = vunpack.c.l.b16 %v3152
        %v3555 = vunpack.c.h.b16 %v3152
        %v3556 = vunpack.c.l.b16 %v3153
        %v3557 = vunpack.c.h.b16 %v3153
        %v3558 = vunpack.c.l.b16 %v3154
        %v3559 = vunpack.c.h.b16 %v3154
        %v3560 = vunpack.c.l.b16 %v3155
        %v3561 = vunpack.c.h.b16 %v3155
        %v3562 = vunpack.c.l.b16 %v3156
        %v3563 = vunpack.c.h.b16 %v3156
        %v3564 = vunpack.c.l.b16 %v3157
        %v3565 = vunpack.c.h.b16 %v3157
        %v3566 = vunpack.c.l.b16 %v3158
        %v3567 = vunpack.c.h.b16 %v3158
        %v3568 = vunpack.c.l.b16 %v3159
        %v3569 = vunpack.c.h.b16 %v3159
        %v3570 = vunpack.c.l.b16 %v3160
        %v3571 = vunpack.c.h.b16 %v3160
        %v3572 = vunpack.c.l.b16 %v3161
        %v3573 = vunpack.c.h.b16 %v3161
        %v3574 = vunpack.c.l.b16 %v3162
        %v3575 = vunpack.c.h.b16 %v3162
        %v3576 = vunpack.c.l.b16 %v3163
        %v3577 = vunpack.c.h.b16 %v3163
        %v3578 = vunpack.c.l.b16 %v3164
        %v3579 = vunpack.c.h.b16 %v3164
        %v3580 = vunpack.c.l.b16 %v3165
        %v3581 = vunpack.c.h.b16 %v3165
        %v3582 = vunpack.c.l.b16 %v3166
        %v3583 = vunpack.c.h.b16 %v3166
        %v3584 = vunpack.c.l.b16 %v3167
        %v3585 = vunpack.c.h.b16 %v3167
        %v3586 = vunpack.c.l.b16 %v3168
        %v3587 = vunpack.c.h.b16 %v3168
        %v3588 = vunpack.c.l.b16 %v3169
        %v3589 = vunpack.c.h.b16 %v3169
        %v3590 = vunpack.c.l.b16 %v3170
        %v3591 = vunpack.c.h.b16 %v3170
        %v3592 = vunpack.c.l.b16 %v3171
        %v3593 = vunpack.c.h.b16 %v3171
        %v3594 = vunpack.c.l.b16 %v3172
        %v3595 = vunpack.c.h.b16 %v3172
        %v3596 = vunpack.c.l.b16 %v3173
        %v3597 = vunpack.c.h.b16 %v3173
        %v3598 = vunpack.c.l.b16 %v3174
        %v3599 = vunpack.c.h.b16 %v3174
        %v3600 = vunpack.c.l.b16 %v3175
        %v3601 = vunpack.c.h.b16 %v3175
        %v3602 = vunpack.c.l.b16 %v3176
        %v3603 = vunpack.c.h.b16 %v3176
        %v3604 = vunpack.c.l.b16 %v3177
        %v3605 = vunpack.c.h.b16 %v3177
        %v3606 = vunpack.c.l.b16 %v3178
        %v3607 = vunpack.c.h.b16 %v3178
        %v3608 = vunpack.c.l.b16 %v3179
        %v3609 = vunpack.c.h.b16 %v3179
        %v3610 = vunpack.c.l.b16 %v3180
        %v3611 = vunpack.c.h.b16 %v3180
        %v3612 = vunpack.c.l.b16 %v3181
        %v3613 = vunpack.c.h.b16 %v3181
        %v3614 = vunpack.c.l.b16 %v3182
        %v3615 = vunpack.c.h.b16 %v3182
        %v3616 = vunpack.c.l.b16 %v3183
        %v3617 = vunpack.c.h.b16 %v3183
        %v3618 = vunpack.c.l.b16 %v3184
        %v3619 = vunpack.c.h.b16 %v3184
        %v3620 = vunpack.c.l.b16 %v3185
        %v3621 = vunpack.c.h.b16 %v3185
        %v3622 = vunpack.c.l.b16 %v3186
        %v3623 = vunpack.c.h.b16 %v3186
        %v3624 = vunpack.c.l.b16 %v3187
        %v3625 = vunpack.c.h.b16 %v3187
        %v3626 = vunpack.c.l.b16 %v3188
        %v3627 = vunpack.c.h.b16 %v3188
        %v3628 = vunpack.c.l.b16 %v3189
        %v3629 = vunpack.c.h.b16 %v3189
        %v3630 = vunpack.c.l.b16 %v3190
        %v3631 = vunpack.c.h.b16 %v3190
        %v3632 = vunpack.c.l.b16 %v3191
        %v3633 = vunpack.c.h.b16 %v3191
        %v3634 = vunpack.c.l.b16 %v3192
        %v3635 = vunpack.c.h.b16 %v3192
        %v3636 = vunpack.c.l.b16 %v3193
        %v3637 = vunpack.c.h.b16 %v3193
        %v3638 = vunpack.c.l.b16 %v3194
        %v3639 = vunpack.c.h.b16 %v3194
        %v3640 = vunpack.c.l.b16 %v3195
        %v3641 = vunpack.c.h.b16 %v3195
        %v3642 = vunpack.c.l.b16 %v3196
        %v3643 = vunpack.c.h.b16 %v3196
        %v3644 = vunpack.c.l.b16 %v3197
        %v3645 = vunpack.c.h.b16 %v3197
        %v3646 = vunpack.c.l.b16 %v3198
        %v3647 = vunpack.c.h.b16 %v3198
        %v3648 = vunpack.c.l.b16 %v3199
        %v3649 = vunpack.c.h.b16 %v3199
        %v3650 = vunpack.c.l.b16 %v3200
        %v3651 = vunpack.c.h.b16 %v3200
        %v3652 = vunpack.c.l.b16 %v3201
        %v3653 = vunpack.c.h.b16 %v3201
        %v3654 = vunpack.c.l.b16 %v3202
        %v3655 = vunpack.c.h.b16 %v3202
        %v3656 = vunpack.c.l.b16 %v3203
        %v3657 = vunpack.c.h.b16 %v3203
        %v3658 = vunpack.c.l.b16 %v3204
        %v3659 = vunpack.c.h.b16 %v3204
        %v3660 = vunpack.c.l.b16 %v3205
        %v3661 = vunpack.c.h.b16 %v3205
        %v3662 = vunpack.c.l.b16 %v3206
        %v3663 = vunpack.c.h.b16 %v3206
        %v3664 = vunpack.c.l.b16 %v3207
        %v3665 = vunpack.c.h.b16 %v3207
        %v3666 = vunpack.c.l.b16 %v3208
        %v3667 = vunpack.c.h.b16 %v3208
        %v3668 = vunpack.c.l.b16 %v3209
        %v3669 = vunpack.c.h.b16 %v3209
        %v3670 = vunpack.c.l.b16 %v3210
        %v3671 = vunpack.c.h.b16 %v3210
        %v3672 = vunpack.c.l.b16 %v3211
        %v3673 = vunpack.c.h.b16 %v3211
        %v3674 = vunpack.c.l.b16 %v3212
        %v3675 = vunpack.c.h.b16 %v3212
        %v3676 = vunpack.c.l.b16 %v3213
        %v3677 = vunpack.c.h.b16 %v3213
        %v3678 = vunpack.c.l.b16 %v3214
        %v3679 = vunpack.c.h.b16 %v3214
        %v3680 = vunpack.c.l.b16 %v3215
        %v3681 = vunpack.c.h.b16 %v3215
        %v3682 = vunpack.c.l.b16 %v3216
        %v3683 = vunpack.c.h.b16 %v3216
        %v3684 = vunpack.c.l.b16 %v3217
        %v3685 = vunpack.c.h.b16 %v3217
        %v3686 = vpack.c.b16 %v3446, %v3430
        %v3687 = vpack.c.b16 %v3447, %v3431
        %v3688 = vpack.c.b16 %v3448, %v3432
        %v3689 = vpack.c.b16 %v3449, %v3433
        %v3690 = vpack.c.b16 %v3450, %v3434
        %v3691 = vpack.c.b16 %v3451, %v3435
        %v3692 = vpack.c.b16 %v3452, %v3436
        %v3693 = vpack.c.b16 %v3453, %v3437
        %v3694 = vpack.c.b16 %v3454, %v3438
        %v3695 = vpack.c.b16 %v3455, %v3439
        %v3696 = vpack.c.b16 %v3456, %v3440
        %v3697 = vpack.c.b16 %v3457, %v3441
        %v3698 = vpack.c.b16 %v3458, %v3442
        %v3699 = vpack.c.b16 %v3459, %v3443
        %v3700 = vpack.c.b16 %v3460, %v3444
        %v3701 = vpack.c.b16 %v3461, %v3445
        %v3702 = vpack.c.b16 %v3478, %v3462
        %v3703 = vpack.c.b16 %v3479, %v3463
        %v3704 = vpack.c.b16 %v3480, %v3464
        %v3705 = vpack.c.b16 %v3481, %v3465
        %v3706 = vpack.c.b16 %v3482, %v3466
        %v3707 = vpack.c.b16 %v3483, %v3467
        %v3708 = vpack.c.b16 %v3484, %v3468
        %v3709 = vpack.c.b16 %v3485, %v3469
        %v3710 = vpack.c.b16 %v3486, %v3470
        %v3711 = vpack.c.b16 %v3487, %v3471
        %v3712 = vpack.c.b16 %v3488, %v3472
        %v3713 = vpack.c.b16 %v3489, %v3473
        %v3714 = vpack.c.b16 %v3490, %v3474
        %v3715 = vpack.c.b16 %v3491, %v3475
        %v3716 = vpack.c.b16 %v3492, %v3476
        %v3717 = vpack.c.b16 %v3493, %v3477
        %v3718 = vpack.c.b16 %v3510, %v3494
        %v3719 = vpack.c.b16 %v3511, %v3495
        %v3720 = vpack.c.b16 %v3512, %v3496
        %v3721 = vpack.c.b16 %v3513, %v3497
        %v3722 = vpack.c.b16 %v3514, %v3498
        %v3723 = vpack.c.b16 %v3515, %v3499
        %v3724 = vpack.c.b16 %v3516, %v3500
        %v3725 = vpack.c.b16 %v3517, %v3501
        %v3726 = vpack.c.b16 %v3518, %v3502
        %v3727 = vpack.c.b16 %v3519, %v3503
        %v3728 = vpack.c.b16 %v3520, %v3504
        %v3729 = vpack.c.b16 %v3521, %v3505
        %v3730 = vpack.c.b16 %v3522, %v3506
        %v3731 = vpack.c.b16 %v3523, %v3507
        %v3732 = vpack.c.b16 %v3524, %v3508
        %v3733 = vpack.c.b16 %v3525, %v3509
        %v3734 = vpack.c.b16 %v3542, %v3526
        %v3735 = vpack.c.b16 %v3543, %v3527
        %v3736 = vpack.c.b16 %v3544, %v3528
        %v3737 = vpack.c.b16 %v3545, %v3529
        %v3738 = vpack.c.b16 %v3546, %v3530
        %v3739 = vpack.c.b16 %v3547, %v3531
        %v3740 = vpack.c.b16 %v3548, %v3532
        %v3741 = vpack.c.b16 %v3549, %v3533
        %v3742 = vpack.c.b16 %v3550, %v3534
        %v3743 = vpack.c.b16 %v3551, %v3535
        %v3744 = vpack.c.b16 %v3552, %v3536
        %v3745 = vpack.c.b16 %v3553, %v3537
        %v3746 = vpack.c.b16 %v3554, %v3538
        %v3747 = vpack.c.b16 %v3555, %v3539
        %v3748 = vpack.c.b16 %v3556, %v3540
        %v3749 = vpack.c.b16 %v3557, %v3541
        %v3750 = vpack.c.b16 %v3574, %v3558
        %v3751 = vpack.c.b16 %v3575, %v3559
        %v3752 = vpack.c.b16 %v3576, %v3560
        %v3753 = vpack.c.b16 %v3577, %v3561
        %v3754 = vpack.c.b16 %v3578, %v3562
        %v3755 = vpack.c.b16 %v3579, %v3563
        %v3756 = vpack.c.b16 %v3580, %v3564
        %v3757 = vpack.c.b16 %v3581, %v3565
        %v3758 = vpack.c.b16 %v3582, %v3566
        %v3759 = vpack.c.b16 %v3583, %v3567
        %v3760 = vpack.c.b16 %v3584, %v3568
        %v3761 = vpack.c.b16 %v3585, %v3569
        %v3762 = vpack.c.b16 %v3586, %v3570
        %v3763 = vpack.c.b16 %v3587, %v3571
        %v3764 = vpack.c.b16 %v3588, %v3572
        %v3765 = vpack.c.b16 %v3589, %v3573
        %v3766 = vpack.c.b16 %v3606, %v3590
        %v3767 = vpack.c.b16 %v3607, %v3591
        %v3768 = vpack.c.b16 %v3608, %v3592
        %v3769 = vpack.c.b16 %v3609, %v3593
        %v3770 = vpack.c.b16 %v3610, %v3594
        %v3771 = vpack.c.b16 %v3611, %v3595
        %v3772 = vpack.c.b16 %v3612, %v3596
        %v3773 = vpack.c.b16 %v3613, %v3597
        %v3774 = vpack.c.b16 %v3614, %v3598
        %v3775 = vpack.c.b16 %v3615, %v3599
        %v3776 = vpack.c.b16 %v3616, %v3600
        %v3777 = vpack.c.b16 %v3617, %v3601
        %v3778 = vpack.c.b16 %v3618, %v3602
        %v3779 = vpack.c.b16 %v3619, %v3603
        %v3780 = vpack.c.b16 %v3620, %v3604
        %v3781 = vpack.c.b16 %v3621, %v3605
        %v3782 = vpack.c.b16 %v3638, %v3622
        %v3783 = vpack.c.b16 %v3639, %v3623
        %v3784 = vpack.c.b16 %v3640, %v3624
        %v3785 = vpack.c.b16 %v3641, %v3625
        %v3786 = vpack.c.b16 %v3642, %v3626
        %v3787 = vpack.c.b16 %v3643, %v3627
        %v3788 = vpack.c.b16 %v3644, %v3628
        %v3789 = vpack.c.b16 %v3645, %v3629
        %v3790 = vpack.c.b16 %v3646, %v3630
        %v3791 = vpack.c.b16 %v3647, %v3631
        %v3792 = vpack.c.b16 %v3648, %v3632
        %v3793 = vpack.c.b16 %v3649, %v3633
        %v3794 = vpack.c.b16 %v3650, %v3634
        %v3795 = vpack.c.b16 %v3651, %v3635
        %v3796 = vpack.c.b16 %v3652, %v3636
        %v3797 = vpack.c.b16 %v3653, %v3637
        %v3798 = vpack.c.b16 %v3670, %v3654
        %v3799 = vpack.c.b16 %v3671, %v3655
        %v3800 = vpack.c.b16 %v3672, %v3656
        %v3801 = vpack.c.b16 %v3673, %v3657
        %v3802 = vpack.c.b16 %v3674, %v3658
        %v3803 = vpack.c.b16 %v3675, %v3659
        %v3804 = vpack.c.b16 %v3676, %v3660
        %v3805 = vpack.c.b16 %v3677, %v3661
        %v3806 = vpack.c.b16 %v3678, %v3662
        %v3807 = vpack.c.b16 %v3679, %v3663
        %v3808 = vpack.c.b16 %v3680, %v3664
        %v3809 = vpack.c.b16 %v3681, %v3665
        %v3810 = vpack.c.b16 %v3682, %v3666
        %v3811 = vpack.c.b16 %v3683, %v3667
        %v3812 = vpack.c.b16 %v3684, %v3668
        %v3813 = vpack.c.b16 %v3685, %v3669
        %3942 = vmatprep.subr.bf16.mxu0 %v3687
        %3943 = vmatpush1.bf16.msra.mxu0 %v3686
        %3944 = vmatprep.subr.bf16.mxu0 %v3703
        %3945 = vmatpush1.bf16.msra.mxu0 %v3702
        %3946 = vmatprep.subr.bf16.mxu0 %v3719
        %3947 = vmatpush1.bf16.msra.mxu0 %v3718
        %3948 = vmatprep.subr.bf16.mxu0 %v3735
        %3949 = vmatpush1.bf16.msra.mxu0 %v3734
        %3950 = vmatprep.subr.bf16.mxu0 %v3751
        %3951 = vmatpush1.bf16.msra.mxu0 %v3750
        %3952 = vmatprep.subr.bf16.mxu0 %v3767
        %3953 = vmatpush1.bf16.msra.mxu0 %v3766
        %3954 = vmatprep.subr.bf16.mxu0 %v3783
        %3955 = vmatpush1.bf16.msra.mxu0 %v3782
        %3956 = vmatprep.subr.bf16.mxu0 %v3799
        %3957 = vmatpush1.bf16.msra.mxu0 %v3798
        %3958 = vmatprep.subr.bf16.mxu0 0
        %3959 = vmatpush1.bf16.msra.mxu0 0
        %3960 = vmatprep.subr.bf16.mxu0 0
        %3961 = vmatpush1.bf16.msra.mxu0 0
        %3962 = vmatprep.subr.bf16.mxu0 0
        %3963 = vmatpush1.bf16.msra.mxu0 0
        %3964 = vmatprep.subr.bf16.mxu0 0
        %3965 = vmatpush1.bf16.msra.mxu0 0
        %3966 = vmatprep.subr.bf16.mxu0 0
        %3967 = vmatpush1.bf16.msra.mxu0 0
        %3968 = vmatprep.subr.bf16.mxu0 0
        %3969 = vmatpush1.bf16.msra.mxu0 0
        %3970 = vmatprep.subr.bf16.mxu0 0
        %3971 = vmatpush1.bf16.msra.mxu0 0
        %3972 = vmatprep.subr.bf16.mxu0 0
        %3973 = vmatpush1.bf16.msra.mxu0 0
        %3974 = vmatprep.mubr.bf16.mxu0 0
        %3975 = vmatmul.mubr.bf16.gmra.mrb[0].mxu0 %v3089
        %v3976 = vpop.f32.mrb[0].mxu0
        %v3977 = vadd.f32 %v3225, %v3976
        %v3978 = vpop.f32.mrb[0].mxu0
        %v3979 = vadd.f32 %v3229, %v3978
        %v3980 = vpop.f32.mrb[0].mxu0
        %v3981 = vpop.f32.mrb[0].mxu0
        %3982 = vdwg.mxu0
        %3983 = vmatprep.subr.bf16.mxu0 %v3689
        %3984 = vmatpush1.bf16.msra.mxu0 %v3688
        %3985 = vmatprep.subr.bf16.mxu0 %v3705
        %3986 = vmatpush1.bf16.msra.mxu0 %v3704
        %3987 = vmatprep.subr.bf16.mxu0 %v3721
        %3988 = vmatpush1.bf16.msra.mxu0 %v3720
        %3989 = vmatprep.subr.bf16.mxu0 %v3737
        %3990 = vmatpush1.bf16.msra.mxu0 %v3736
        %3991 = vmatprep.subr.bf16.mxu0 %v3753
        %3992 = vmatpush1.bf16.msra.mxu0 %v3752
        %3993 = vmatprep.subr.bf16.mxu0 %v3769
        %3994 = vmatpush1.bf16.msra.mxu0 %v3768
        %3995 = vmatprep.subr.bf16.mxu0 %v3785
        %3996 = vmatpush1.bf16.msra.mxu0 %v3784
        %3997 = vmatprep.subr.bf16.mxu0 %v3801
        %3998 = vmatpush1.bf16.msra.mxu0 %v3800
        %3999 = vmatprep.subr.bf16.mxu0 0
        %4000 = vmatpush1.bf16.msra.mxu0 0
        %4001 = vmatprep.subr.bf16.mxu0 0
        %4002 = vmatpush1.bf16.msra.mxu0 0
        %4003 = vmatprep.subr.bf16.mxu0 0
        %4004 = vmatpush1.bf16.msra.mxu0 0
        %4005 = vmatprep.subr.bf16.mxu0 0
        %4006 = vmatpush1.bf16.msra.mxu0 0
        %4007 = vmatprep.subr.bf16.mxu0 0
        %4008 = vmatpush1.bf16.msra.mxu0 0
        %4009 = vmatprep.subr.bf16.mxu0 0
        %4010 = vmatpush1.bf16.msra.mxu0 0
        %4011 = vmatprep.subr.bf16.mxu0 0
        %4012 = vmatpush1.bf16.msra.mxu0 0
        %4013 = vmatprep.subr.bf16.mxu0 0
        %4014 = vmatpush1.bf16.msra.mxu0 0
        %4015 = vmatprep.mubr.bf16.mxu0 0
        %4016 = vmatmul.mubr.bf16.gmra.mrb[0].mxu0 %v3089
        %v4017 = vpop.f32.mrb[0].mxu0
        %v4018 = vadd.f32 %v3233, %v4017
        %v4019 = vpop.f32.mrb[0].mxu0
        %v4020 = vadd.f32 %v3237, %v4019
        %v4021 = vpop.f32.mrb[0].mxu0
        %v4022 = vpop.f32.mrb[0].mxu0
        %4023 = vdwg.mxu0
        %4024 = vmatprep.subr.bf16.mxu0 %v3691
        %4025 = vmatpush1.bf16.msra.mxu0 %v3690
        %4026 = vmatprep.subr.bf16.mxu0 %v3707
        %4027 = vmatpush1.bf16.msra.mxu0 %v3706
        %4028 = vmatprep.subr.bf16.mxu0 %v3723
        %4029 = vmatpush1.bf16.msra.mxu0 %v3722
        %4030 = vmatprep.subr.bf16.mxu0 %v3739
        %4031 = vmatpush1.bf16.msra.mxu0 %v3738
        %4032 = vmatprep.subr.bf16.mxu0 %v3755
        %4033 = vmatpush1.bf16.msra.mxu0 %v3754
        %4034 = vmatprep.subr.bf16.mxu0 %v3771
        %4035 = vmatpush1.bf16.msra.mxu0 %v3770
        %4036 = vmatprep.subr.bf16.mxu0 %v3787
        %4037 = vmatpush1.bf16.msra.mxu0 %v3786
        %4038 = vmatprep.subr.bf16.mxu0 %v3803
        %4039 = vmatpush1.bf16.msra.mxu0 %v3802
        %4040 = vmatprep.subr.bf16.mxu0 0
        %4041 = vmatpush1.bf16.msra.mxu0 0
        %4042 = vmatprep.subr.bf16.mxu0 0
        %4043 = vmatpush1.bf16.msra.mxu0 0
        %4044 = vmatprep.subr.bf16.mxu0 0
        %4045 = vmatpush1.bf16.msra.mxu0 0
        %4046 = vmatprep.subr.bf16.mxu0 0
        %4047 = vmatpush1.bf16.msra.mxu0 0
        %4048 = vmatprep.subr.bf16.mxu0 0
        %4049 = vmatpush1.bf16.msra.mxu0 0
        %4050 = vmatprep.subr.bf16.mxu0 0
        %4051 = vmatpush1.bf16.msra.mxu0 0
        %4052 = vmatprep.subr.bf16.mxu0 0
        %4053 = vmatpush1.bf16.msra.mxu0 0
        %4054 = vmatprep.subr.bf16.mxu0 0
        %4055 = vmatpush1.bf16.msra.mxu0 0
        %4056 = vmatprep.mubr.bf16.mxu0 0
        %4057 = vmatmul.mubr.bf16.gmra.mrb[0].mxu0 %v3089
        %v4058 = vpop.f32.mrb[0].mxu0
        %v4059 = vadd.f32 %v3241, %v4058
        %v4060 = vpop.f32.mrb[0].mxu0
        %v4061 = vadd.f32 %v3245, %v4060
        %v4062 = vpop.f32.mrb[0].mxu0
        %v4063 = vpop.f32.mrb[0].mxu0
        %4064 = vdwg.mxu0
        %4065 = vmatprep.subr.bf16.mxu0 %v3693
        %4066 = vmatpush1.bf16.msra.mxu0 %v3692
        %4067 = vmatprep.subr.bf16.mxu0 %v3709
        %4068 = vmatpush1.bf16.msra.mxu0 %v3708
        %4069 = vmatprep.subr.bf16.mxu0 %v3725
        %4070 = vmatpush1.bf16.msra.mxu0 %v3724
        %4071 = vmatprep.subr.bf16.mxu0 %v3741
        %4072 = vmatpush1.bf16.msra.mxu0 %v3740
        %4073 = vmatprep.subr.bf16.mxu0 %v3757
        %4074 = vmatpush1.bf16.msra.mxu0 %v3756
        %4075 = vmatprep.subr.bf16.mxu0 %v3773
        %4076 = vmatpush1.bf16.msra.mxu0 %v3772
        %4077 = vmatprep.subr.bf16.mxu0 %v3789
        %4078 = vmatpush1.bf16.msra.mxu0 %v3788
        %4079 = vmatprep.subr.bf16.mxu0 %v3805
        %4080 = vmatpush1.bf16.msra.mxu0 %v3804
        %4081 = vmatprep.subr.bf16.mxu0 0
        %4082 = vmatpush1.bf16.msra.mxu0 0
        %4083 = vmatprep.subr.bf16.mxu0 0
        %4084 = vmatpush1.bf16.msra.mxu0 0
        %4085 = vmatprep.subr.bf16.mxu0 0
        %4086 = vmatpush1.bf16.msra.mxu0 0
        %4087 = vmatprep.subr.bf16.mxu0 0
        %4088 = vmatpush1.bf16.msra.mxu0 0
        %4089 = vmatprep.subr.bf16.mxu0 0
        %4090 = vmatpush1.bf16.msra.mxu0 0
        %4091 = vmatprep.subr.bf16.mxu0 0
        %4092 = vmatpush1.bf16.msra.mxu0 0
        %4093 = vmatprep.subr.bf16.mxu0 0
        %4094 = vmatpush1.bf16.msra.mxu0 0
        %4095 = vmatprep.subr.bf16.mxu0 0
        %4096 = vmatpush1.bf16.msra.mxu0 0
        %4097 = vmatprep.mubr.bf16.mxu0 0
        %4098 = vmatmul.mubr.bf16.gmra.mrb[0].mxu0 %v3089
        %v4099 = vpop.f32.mrb[0].mxu0
        %v4100 = vadd.f32 %v3249, %v4099
        %v4101 = vpop.f32.mrb[0].mxu0
        %v4102 = vadd.f32 %v3253, %v4101
        %v4103 = vpop.f32.mrb[0].mxu0
        %v4104 = vpop.f32.mrb[0].mxu0
        %4105 = vdwg.mxu0
        %4106 = vmatprep.subr.bf16.mxu0 %v3695
        %4107 = vmatpush1.bf16.msra.mxu0 %v3694
        %4108 = vmatprep.subr.bf16.mxu0 %v3711
        %4109 = vmatpush1.bf16.msra.mxu0 %v3710
        %4110 = vmatprep.subr.bf16.mxu0 %v3727
        %4111 = vmatpush1.bf16.msra.mxu0 %v3726
        %4112 = vmatprep.subr.bf16.mxu0 %v3743
        %4113 = vmatpush1.bf16.msra.mxu0 %v3742
        %4114 = vmatprep.subr.bf16.mxu0 %v3759
        %4115 = vmatpush1.bf16.msra.mxu0 %v3758
        %4116 = vmatprep.subr.bf16.mxu0 %v3775
        %4117 = vmatpush1.bf16.msra.mxu0 %v3774
        %4118 = vmatprep.subr.bf16.mxu0 %v3791
        %4119 = vmatpush1.bf16.msra.mxu0 %v3790
        %4120 = vmatprep.subr.bf16.mxu0 %v3807
        %4121 = vmatpush1.bf16.msra.mxu0 %v3806
        %4122 = vmatprep.subr.bf16.mxu0 0
        %4123 = vmatpush1.bf16.msra.mxu0 0
        %4124 = vmatprep.subr.bf16.mxu0 0
        %4125 = vmatpush1.bf16.msra.mxu0 0
        %4126 = vmatprep.subr.bf16.mxu0 0
        %4127 = vmatpush1.bf16.msra.mxu0 0
        %4128 = vmatprep.subr.bf16.mxu0 0
        %4129 = vmatpush1.bf16.msra.mxu0 0
        %4130 = vmatprep.subr.bf16.mxu0 0
        %4131 = vmatpush1.bf16.msra.mxu0 0
        %4132 = vmatprep.subr.bf16.mxu0 0
        %4133 = vmatpush1.bf16.msra.mxu0 0
        %4134 = vmatprep.subr.bf16.mxu0 0
        %4135 = vmatpush1.bf16.msra.mxu0 0
        %4136 = vmatprep.subr.bf16.mxu0 0
        %4137 = vmatpush1.bf16.msra.mxu0 0
        %4138 = vmatprep.mubr.bf16.mxu0 0
        %4139 = vmatmul.mubr.bf16.gmra.mrb[0].mxu0 %v3089
        %v4140 = vpop.f32.mrb[0].mxu0
        %v4141 = vadd.f32 %v3257, %v4140
        %v4142 = vpop.f32.mrb[0].mxu0
        %v4143 = vadd.f32 %v3261, %v4142
        %v4144 = vpop.f32.mrb[0].mxu0
        %v4145 = vpop.f32.mrb[0].mxu0
        %4146 = vdwg.mxu0
        %4147 = vmatprep.subr.bf16.mxu0 %v3697
        %4148 = vmatpush1.bf16.msra.mxu0 %v3696
        %4149 = vmatprep.subr.bf16.mxu0 %v3713
        %4150 = vmatpush1.bf16.msra.mxu0 %v3712
        %4151 = vmatprep.subr.bf16.mxu0 %v3729
        %4152 = vmatpush1.bf16.msra.mxu0 %v3728
        %4153 = vmatprep.subr.bf16.mxu0 %v3745
        %4154 = vmatpush1.bf16.msra.mxu0 %v3744
        %4155 = vmatprep.subr.bf16.mxu0 %v3761
        %4156 = vmatpush1.bf16.msra.mxu0 %v3760
        %4157 = vmatprep.subr.bf16.mxu0 %v3777
        %4158 = vmatpush1.bf16.msra.mxu0 %v3776
        %4159 = vmatprep.subr.bf16.mxu0 %v3793
        %4160 = vmatpush1.bf16.msra.mxu0 %v3792
        %4161 = vmatprep.subr.bf16.mxu0 %v3809
        %4162 = vmatpush1.bf16.msra.mxu0 %v3808
        %4163 = vmatprep.subr.bf16.mxu0 0
        %4164 = vmatpush1.bf16.msra.mxu0 0
        %4165 = vmatprep.subr.bf16.mxu0 0
        %4166 = vmatpush1.bf16.msra.mxu0 0
        %4167 = vmatprep.subr.bf16.mxu0 0
        %4168 = vmatpush1.bf16.msra.mxu0 0
        %4169 = vmatprep.subr.bf16.mxu0 0
        %4170 = vmatpush1.bf16.msra.mxu0 0
        %4171 = vmatprep.subr.bf16.mxu0 0
        %4172 = vmatpush1.bf16.msra.mxu0 0
        %4173 = vmatprep.subr.bf16.mxu0 0
        %4174 = vmatpush1.bf16.msra.mxu0 0
        %4175 = vmatprep.subr.bf16.mxu0 0
        %4176 = vmatpush1.bf16.msra.mxu0 0
        %4177 = vmatprep.subr.bf16.mxu0 0
        %4178 = vmatpush1.bf16.msra.mxu0 0
        %4179 = vmatprep.mubr.bf16.mxu0 0
        %4180 = vmatmul.mubr.bf16.gmra.mrb[0].mxu0 %v3089
        %v4181 = vpop.f32.mrb[0].mxu0
        %v4182 = vadd.f32 %v3265, %v4181
        %v4183 = vpop.f32.mrb[0].mxu0
        %v4184 = vadd.f32 %v3269, %v4183
        %v4185 = vpop.f32.mrb[0].mxu0
        %v4186 = vpop.f32.mrb[0].mxu0
        %4187 = vdwg.mxu0
        %4188 = vmatprep.subr.bf16.mxu0 %v3699
        %4189 = vmatpush1.bf16.msra.mxu0 %v3698
        %4190 = vmatprep.subr.bf16.mxu0 %v3715
        %4191 = vmatpush1.bf16.msra.mxu0 %v3714
        %4192 = vmatprep.subr.bf16.mxu0 %v3731
        %4193 = vmatpush1.bf16.msra.mxu0 %v3730
        %4194 = vmatprep.subr.bf16.mxu0 %v3747
        %4195 = vmatpush1.bf16.msra.mxu0 %v3746
        %4196 = vmatprep.subr.bf16.mxu0 %v3763
        %4197 = vmatpush1.bf16.msra.mxu0 %v3762
        %4198 = vmatprep.subr.bf16.mxu0 %v3779
        %4199 = vmatpush1.bf16.msra.mxu0 %v3778
        %4200 = vmatprep.subr.bf16.mxu0 %v3795
        %4201 = vmatpush1.bf16.msra.mxu0 %v3794
        %4202 = vmatprep.subr.bf16.mxu0 %v3811
        %4203 = vmatpush1.bf16.msra.mxu0 %v3810
        %4204 = vmatprep.subr.bf16.mxu0 0
        %4205 = vmatpush1.bf16.msra.mxu0 0
        %4206 = vmatprep.subr.bf16.mxu0 0
        %4207 = vmatpush1.bf16.msra.mxu0 0
        %4208 = vmatprep.subr.bf16.mxu0 0
        %4209 = vmatpush1.bf16.msra.mxu0 0
        %4210 = vmatprep.subr.bf16.mxu0 0
        %4211 = vmatpush1.bf16.msra.mxu0 0
        %4212 = vmatprep.subr.bf16.mxu0 0
        %4213 = vmatpush1.bf16.msra.mxu0 0
        %4214 = vmatprep.subr.bf16.mxu0 0
        %4215 = vmatpush1.bf16.msra.mxu0 0
        %4216 = vmatprep.subr.bf16.mxu0 0
        %4217 = vmatpush1.bf16.msra.mxu0 0
        %4218 = vmatprep.subr.bf16.mxu0 0
        %4219 = vmatpush1.bf16.msra.mxu0 0
        %4220 = vmatprep.mubr.bf16.mxu0 0
        %4221 = vmatmul.mubr.bf16.gmra.mrb[0].mxu0 %v3089
        %v4222 = vpop.f32.mrb[0].mxu0
        %v4223 = vadd.f32 %v3273, %v4222
        %v4224 = vpop.f32.mrb[0].mxu0
        %v4225 = vadd.f32 %v3277, %v4224
        %v4226 = vpop.f32.mrb[0].mxu0
        %v4227 = vpop.f32.mrb[0].mxu0
        %4228 = vdwg.mxu0
        %4229 = vmatprep.subr.bf16.mxu0 %v3701
        %4230 = vmatpush1.bf16.msra.mxu0 %v3700
        %4231 = vmatprep.subr.bf16.mxu0 %v3717
        %4232 = vmatpush1.bf16.msra.mxu0 %v3716
        %4233 = vmatprep.subr.bf16.mxu0 %v3733
        %4234 = vmatpush1.bf16.msra.mxu0 %v3732
        %4235 = vmatprep.subr.bf16.mxu0 %v3749
        %4236 = vmatpush1.bf16.msra.mxu0 %v3748
        %4237 = vmatprep.subr.bf16.mxu0 %v3765
        %4238 = vmatpush1.bf16.msra.mxu0 %v3764
        %4239 = vmatprep.subr.bf16.mxu0 %v3781
        %4240 = vmatpush1.bf16.msra.mxu0 %v3780
        %4241 = vmatprep.subr.bf16.mxu0 %v3797
        %4242 = vmatpush1.bf16.msra.mxu0 %v3796
        %4243 = vmatprep.subr.bf16.mxu0 %v3813
        %4244 = vmatpush1.bf16.msra.mxu0 %v3812
        %4245 = vmatprep.subr.bf16.mxu0 0
        %4246 = vmatpush1.bf16.msra.mxu0 0
        %4247 = vmatprep.subr.bf16.mxu0 0
        %4248 = vmatpush1.bf16.msra.mxu0 0
        %4249 = vmatprep.subr.bf16.mxu0 0
        %4250 = vmatpush1.bf16.msra.mxu0 0
        %4251 = vmatprep.subr.bf16.mxu0 0
        %4252 = vmatpush1.bf16.msra.mxu0 0
        %4253 = vmatprep.subr.bf16.mxu0 0
        %4254 = vmatpush1.bf16.msra.mxu0 0
        %4255 = vmatprep.subr.bf16.mxu0 0
        %4256 = vmatpush1.bf16.msra.mxu0 0
        %4257 = vmatprep.subr.bf16.mxu0 0
        %4258 = vmatpush1.bf16.msra.mxu0 0
        %4259 = vmatprep.subr.bf16.mxu0 0
        %4260 = vmatpush1.bf16.msra.mxu0 0
        %4261 = vmatprep.mubr.bf16.mxu0 0
        %4262 = vmatmul.mubr.bf16.gmra.mrb[0].mxu0 %v3089
        %v4263 = vpop.f32.mrb[0].mxu0
        %v4264 = vadd.f32 %v3281, %v4263
        %v4265 = vpop.f32.mrb[0].mxu0
        %v4266 = vadd.f32 %v3285, %v4265
        %v4267 = vpop.f32.mrb[0].mxu0
        %v4268 = vpop.f32.mrb[0].mxu0
        %4269 = vdwg.mxu0
        %v4270 = vmax.f32 %v3977, 0.0
        %v4271 = vmax.f32 %v3979, 0.0
        %v4272 = vmax.f32 %v4018, 0.0
        %v4273 = vmax.f32 %v4020, 0.0
        %v4274 = vmax.f32 %v4059, 0.0
        %v4275 = vmax.f32 %v4061, 0.0
        %v4276 = vmax.f32 %v4100, 0.0
        %v4277 = vmax.f32 %v4102, 0.0
        %v4278 = vmax.f32 %v4141, 0.0
        %v4279 = vmax.f32 %v4143, 0.0
        %v4280 = vmax.f32 %v4182, 0.0
        %v4281 = vmax.f32 %v4184, 0.0
        %v4282 = vmax.f32 %v4223, 0.0
        %v4283 = vmax.f32 %v4225, 0.0
        %v4284 = vmax.f32 %v4264, 0.0
        %v4285 = vmax.f32 %v4266, 0.0
        %v4286 = vpack.c.bf16 %v4270, %v4270
        %v4287 = vpack.c.bf16 %v4271, %v4271
        %v4288 = vpack.c.bf16 %v4272, %v4272
        %v4289 = vpack.c.bf16 %v4273, %v4273
        %v4290 = vpack.c.bf16 %v4274, %v4274
        %v4291 = vpack.c.bf16 %v4275, %v4275
        %v4292 = vpack.c.bf16 %v4276, %v4276
        %v4293 = vpack.c.bf16 %v4277, %v4277
        %v4294 = vpack.c.bf16 %v4278, %v4278
        %v4295 = vpack.c.bf16 %v4279, %v4279
        %v4296 = vpack.c.bf16 %v4280, %v4280
        %v4297 = vpack.c.bf16 %v4281, %v4281
        %v4298 = vpack.c.bf16 %v4282, %v4282
        %v4299 = vpack.c.bf16 %v4283, %v4283
        %v4300 = vpack.c.bf16 %v4284, %v4284
        %v4301 = vpack.c.bf16 %v4285, %v4285
        %v4302 = vld [vmem:[%s1134] sm:$0xf]
        %v4303 = vld [vmem:[%s1134 + $0x4] sm:$0xf]
        %v4304 = vld [vmem:[%s1134 + $0x8] sm:$0xf]
        %v4305 = vld [vmem:[%s1134 + $0xc] sm:$0xf]
        %v4306 = vld [vmem:[%s1134 + $0x10] sm:$0xf]
        %v4307 = vld [vmem:[%s1134 + $0x14] sm:$0xf]
        %v4308 = vld [vmem:[%s1134 + $0x18] sm:$0xf]
        %v4309 = vld [vmem:[%s1134 + $0x1c] sm:$0xf]
        %v4310 = vld [vmem:[%s1134 + $0x20] sm:$0xf]
        %v4311 = vld [vmem:[%s1134 + $0x24] sm:$0xf]
        %v4312 = vld [vmem:[%s1134 + $0x28] sm:$0xf]
        %v4313 = vld [vmem:[%s1134 + $0x2c] sm:$0xf]
        %v4314 = vld [vmem:[%s1134 + $0x30] sm:$0xf]
        %v4315 = vld [vmem:[%s1134 + $0x34] sm:$0xf]
        %v4316 = vld [vmem:[%s1134 + $0x38] sm:$0xf]
        %v4317 = vld [vmem:[%s1134 + $0x3c] sm:$0xf]
        %v4318 = vld [vmem:[%s1134 + $0x40] sm:$0xf]
        %v4319 = vld [vmem:[%s1134 + $0x44] sm:$0xf]
        %v4320 = vld [vmem:[%s1134 + $0x48] sm:$0xf]
        %v4321 = vld [vmem:[%s1134 + $0x4c] sm:$0xf]
        %v4322 = vld [vmem:[%s1134 + $0x50] sm:$0xf]
        %v4323 = vld [vmem:[%s1134 + $0x54] sm:$0xf]
        %v4324 = vld [vmem:[%s1134 + $0x58] sm:$0xf]
        %v4325 = vld [vmem:[%s1134 + $0x5c] sm:$0xf]
        %v4326 = vld [vmem:[%s1134 + $0x60] sm:$0xf]
        %v4327 = vld [vmem:[%s1134 + $0x64] sm:$0xf]
        %v4328 = vld [vmem:[%s1134 + $0x68] sm:$0xf]
        %v4329 = vld [vmem:[%s1134 + $0x6c] sm:$0xf]
        %v4330 = vld [vmem:[%s1134 + $0x70] sm:$0xf]
        %v4331 = vld [vmem:[%s1134 + $0x74] sm:$0xf]
        %v4332 = vld [vmem:[%s1134 + $0x78] sm:$0xf]
        %v4333 = vld [vmem:[%s1134 + $0x7c] sm:$0xf]
        %v4334 = vld [vmem:[%s1134 + $0x80] sm:$0xf]
        %v4335 = vld [vmem:[%s1134 + $0x84] sm:$0xf]
        %v4336 = vld [vmem:[%s1134 + $0x88] sm:$0xf]
        %v4337 = vld [vmem:[%s1134 + $0x8c] sm:$0xf]
        %v4338 = vld [vmem:[%s1134 + $0x90] sm:$0xf]
        %v4339 = vld [vmem:[%s1134 + $0x94] sm:$0xf]
        %v4340 = vld [vmem:[%s1134 + $0x98] sm:$0xf]
        %v4341 = vld [vmem:[%s1134 + $0x9c] sm:$0xf]
        %v4342 = vld [vmem:[%s1134 + $0xa0] sm:$0xf]
        %v4343 = vld [vmem:[%s1134 + $0xa4] sm:$0xf]
        %v4344 = vld [vmem:[%s1134 + $0xa8] sm:$0xf]
        %v4345 = vld [vmem:[%s1134 + $0xac] sm:$0xf]
        %v4346 = vld [vmem:[%s1134 + $0xb0] sm:$0xf]
        %v4347 = vld [vmem:[%s1134 + $0xb4] sm:$0xf]
        %v4348 = vld [vmem:[%s1134 + $0xb8] sm:$0xf]
        %v4349 = vld [vmem:[%s1134 + $0xbc] sm:$0xf]
        %v4350 = vld [vmem:[%s1134 + $0xc0] sm:$0xf]
        %v4351 = vld [vmem:[%s1134 + $0xc4] sm:$0xf]
        %v4352 = vld [vmem:[%s1134 + $0xc8] sm:$0xf]
        %v4353 = vld [vmem:[%s1134 + $0xcc] sm:$0xf]
        %v4354 = vld [vmem:[%s1134 + $0xd0] sm:$0xf]
        %v4355 = vld [vmem:[%s1134 + $0xd4] sm:$0xf]
        %v4356 = vld [vmem:[%s1134 + $0xd8] sm:$0xf]
        %v4357 = vld [vmem:[%s1134 + $0xdc] sm:$0xf]
        %v4358 = vld [vmem:[%s1134 + $0xe0] sm:$0xf]
        %v4359 = vld [vmem:[%s1134 + $0xe4] sm:$0xf]
        %v4360 = vld [vmem:[%s1134 + $0xe8] sm:$0xf]
        %v4361 = vld [vmem:[%s1134 + $0xec] sm:$0xf]
        %v4362 = vld [vmem:[%s1134 + $0xf0] sm:$0xf]
        %v4363 = vld [vmem:[%s1134 + $0xf4] sm:$0xf]
        %v4364 = vld [vmem:[%s1134 + $0xf8] sm:$0xf]
        %v4365 = vld [vmem:[%s1134 + $0xfc] sm:$0xf]
        %v4366 = vld [vmem:[%s1134 + $0x100] sm:$0xf]
        %v4367 = vld [vmem:[%s1134 + $0x104] sm:$0xf]
        %v4368 = vld [vmem:[%s1134 + $0x108] sm:$0xf]
        %v4369 = vld [vmem:[%s1134 + $0x10c] sm:$0xf]
        %v4370 = vld [vmem:[%s1134 + $0x110] sm:$0xf]
        %v4371 = vld [vmem:[%s1134 + $0x114] sm:$0xf]
        %v4372 = vld [vmem:[%s1134 + $0x118] sm:$0xf]
        %v4373 = vld [vmem:[%s1134 + $0x11c] sm:$0xf]
        %v4374 = vld [vmem:[%s1134 + $0x120] sm:$0xf]
        %v4375 = vld [vmem:[%s1134 + $0x124] sm:$0xf]
        %v4376 = vld [vmem:[%s1134 + $0x128] sm:$0xf]
        %v4377 = vld [vmem:[%s1134 + $0x12c] sm:$0xf]
        %v4378 = vld [vmem:[%s1134 + $0x130] sm:$0xf]
        %v4379 = vld [vmem:[%s1134 + $0x134] sm:$0xf]
        %v4380 = vld [vmem:[%s1134 + $0x138] sm:$0xf]
        %v4381 = vld [vmem:[%s1134 + $0x13c] sm:$0xf]
        %v4382 = vld [vmem:[%s1134 + $0x140] sm:$0xf]
        %v4383 = vld [vmem:[%s1134 + $0x144] sm:$0xf]
        %v4384 = vld [vmem:[%s1134 + $0x148] sm:$0xf]
        %v4385 = vld [vmem:[%s1134 + $0x14c] sm:$0xf]
        %v4386 = vld [vmem:[%s1134 + $0x150] sm:$0xf]
        %v4387 = vld [vmem:[%s1134 + $0x154] sm:$0xf]
        %v4388 = vld [vmem:[%s1134 + $0x158] sm:$0xf]
        %v4389 = vld [vmem:[%s1134 + $0x15c] sm:$0xf]
        %v4390 = vld [vmem:[%s1134 + $0x160] sm:$0xf]
        %v4391 = vld [vmem:[%s1134 + $0x164] sm:$0xf]
        %v4392 = vld [vmem:[%s1134 + $0x168] sm:$0xf]
        %v4393 = vld [vmem:[%s1134 + $0x16c] sm:$0xf]
        %v4394 = vld [vmem:[%s1134 + $0x170] sm:$0xf]
        %v4395 = vld [vmem:[%s1134 + $0x174] sm:$0xf]
        %v4396 = vld [vmem:[%s1134 + $0x178] sm:$0xf]
        %v4397 = vld [vmem:[%s1134 + $0x17c] sm:$0xf]
        %v4398 = vld [vmem:[%s1134 + $0x180] sm:$0xf]
        %v4399 = vld [vmem:[%s1134 + $0x184] sm:$0xf]
        %v4400 = vld [vmem:[%s1134 + $0x188] sm:$0xf]
        %v4401 = vld [vmem:[%s1134 + $0x18c] sm:$0xf]
        %v4402 = vld [vmem:[%s1134 + $0x190] sm:$0xf]
        %v4403 = vld [vmem:[%s1134 + $0x194] sm:$0xf]
        %v4404 = vld [vmem:[%s1134 + $0x198] sm:$0xf]
        %v4405 = vld [vmem:[%s1134 + $0x19c] sm:$0xf]
        %v4406 = vld [vmem:[%s1134 + $0x1a0] sm:$0xf]
        %v4407 = vld [vmem:[%s1134 + $0x1a4] sm:$0xf]
        %v4408 = vld [vmem:[%s1134 + $0x1a8] sm:$0xf]
        %v4409 = vld [vmem:[%s1134 + $0x1ac] sm:$0xf]
        %v4410 = vld [vmem:[%s1134 + $0x1b0] sm:$0xf]
        %v4411 = vld [vmem:[%s1134 + $0x1b4] sm:$0xf]
        %v4412 = vld [vmem:[%s1134 + $0x1b8] sm:$0xf]
        %v4413 = vld [vmem:[%s1134 + $0x1bc] sm:$0xf]
        %v4414 = vld [vmem:[%s1134 + $0x1c0] sm:$0xf]
        %v4415 = vld [vmem:[%s1134 + $0x1c4] sm:$0xf]
        %v4416 = vld [vmem:[%s1134 + $0x1c8] sm:$0xf]
        %v4417 = vld [vmem:[%s1134 + $0x1cc] sm:$0xf]
        %v4418 = vld [vmem:[%s1134 + $0x1d0] sm:$0xf]
        %v4419 = vld [vmem:[%s1134 + $0x1d4] sm:$0xf]
        %v4420 = vld [vmem:[%s1134 + $0x1d8] sm:$0xf]
        %v4421 = vld [vmem:[%s1134 + $0x1dc] sm:$0xf]
        %v4422 = vld [vmem:[%s1134 + $0x1e0] sm:$0xf]
        %v4423 = vld [vmem:[%s1134 + $0x1e4] sm:$0xf]
        %v4424 = vld [vmem:[%s1134 + $0x1e8] sm:$0xf]
        %v4425 = vld [vmem:[%s1134 + $0x1ec] sm:$0xf]
        %v4426 = vld [vmem:[%s1134 + $0x1f0] sm:$0xf]
        %v4427 = vld [vmem:[%s1134 + $0x1f4] sm:$0xf]
        %v4428 = vld [vmem:[%s1134 + $0x1f8] sm:$0xf]
        %v4429 = vld [vmem:[%s1134 + $0x1fc] sm:$0xf]
        %v4430 = vld [vmem:[%s1134 + $0x200] sm:$0xf]
        %v4431 = vld [vmem:[%s1134 + $0x204] sm:$0xf]
        %v4432 = vld [vmem:[%s1134 + $0x208] sm:$0xf]
        %v4433 = vld [vmem:[%s1134 + $0x20c] sm:$0xf]
        %v4434 = vld [vmem:[%s1134 + $0x210] sm:$0xf]
        %v4435 = vld [vmem:[%s1134 + $0x214] sm:$0xf]
        %v4436 = vld [vmem:[%s1134 + $0x218] sm:$0xf]
        %v4437 = vld [vmem:[%s1134 + $0x21c] sm:$0xf]
        %v4438 = vld [vmem:[%s1134 + $0x220] sm:$0xf]
        %v4439 = vld [vmem:[%s1134 + $0x224] sm:$0xf]
        %v4440 = vld [vmem:[%s1134 + $0x228] sm:$0xf]
        %v4441 = vld [vmem:[%s1134 + $0x22c] sm:$0xf]
        %v4442 = vld [vmem:[%s1134 + $0x230] sm:$0xf]
        %v4443 = vld [vmem:[%s1134 + $0x234] sm:$0xf]
        %v4444 = vld [vmem:[%s1134 + $0x238] sm:$0xf]
        %v4445 = vld [vmem:[%s1134 + $0x23c] sm:$0xf]
        %v4446 = vld [vmem:[%s1134 + $0x240] sm:$0xf]
        %v4447 = vld [vmem:[%s1134 + $0x244] sm:$0xf]
        %v4448 = vld [vmem:[%s1134 + $0x248] sm:$0xf]
        %v4449 = vld [vmem:[%s1134 + $0x24c] sm:$0xf]
        %v4450 = vld [vmem:[%s1134 + $0x250] sm:$0xf]
        %v4451 = vld [vmem:[%s1134 + $0x254] sm:$0xf]
        %v4452 = vld [vmem:[%s1134 + $0x258] sm:$0xf]
        %v4453 = vld [vmem:[%s1134 + $0x25c] sm:$0xf]
        %v4454 = vld [vmem:[%s1134 + $0x260] sm:$0xf]
        %v4455 = vld [vmem:[%s1134 + $0x264] sm:$0xf]
        %v4456 = vld [vmem:[%s1134 + $0x268] sm:$0xf]
        %v4457 = vld [vmem:[%s1134 + $0x26c] sm:$0xf]
        %v4458 = vld [vmem:[%s1134 + $0x270] sm:$0xf]
        %v4459 = vld [vmem:[%s1134 + $0x274] sm:$0xf]
        %v4460 = vld [vmem:[%s1134 + $0x278] sm:$0xf]
        %v4461 = vld [vmem:[%s1134 + $0x27c] sm:$0xf]
        %v4462 = vld [vmem:[%s1134 + $0x280] sm:$0xf]
        %v4463 = vld [vmem:[%s1134 + $0x284] sm:$0xf]
        %v4464 = vld [vmem:[%s1134 + $0x288] sm:$0xf]
        %v4465 = vld [vmem:[%s1134 + $0x28c] sm:$0xf]
        %v4466 = vld [vmem:[%s1134 + $0x290] sm:$0xf]
        %v4467 = vld [vmem:[%s1134 + $0x294] sm:$0xf]
        %v4468 = vld [vmem:[%s1134 + $0x298] sm:$0xf]
        %v4469 = vld [vmem:[%s1134 + $0x29c] sm:$0xf]
        %v4470 = vld [vmem:[%s1134 + $0x2a0] sm:$0xf]
        %v4471 = vld [vmem:[%s1134 + $0x2a4] sm:$0xf]
        %v4472 = vld [vmem:[%s1134 + $0x2a8] sm:$0xf]
        %v4473 = vld [vmem:[%s1134 + $0x2ac] sm:$0xf]
        %v4474 = vld [vmem:[%s1134 + $0x2b0] sm:$0xf]
        %v4475 = vld [vmem:[%s1134 + $0x2b4] sm:$0xf]
        %v4476 = vld [vmem:[%s1134 + $0x2b8] sm:$0xf]
        %v4477 = vld [vmem:[%s1134 + $0x2bc] sm:$0xf]
        %v4478 = vld [vmem:[%s1134 + $0x2c0] sm:$0xf]
        %v4479 = vld [vmem:[%s1134 + $0x2c4] sm:$0xf]
        %v4480 = vld [vmem:[%s1134 + $0x2c8] sm:$0xf]
        %v4481 = vld [vmem:[%s1134 + $0x2cc] sm:$0xf]
        %v4482 = vld [vmem:[%s1134 + $0x2d0] sm:$0xf]
        %v4483 = vld [vmem:[%s1134 + $0x2d4] sm:$0xf]
        %v4484 = vld [vmem:[%s1134 + $0x2d8] sm:$0xf]
        %v4485 = vld [vmem:[%s1134 + $0x2dc] sm:$0xf]
        %v4486 = vld [vmem:[%s1134 + $0x2e0] sm:$0xf]
        %v4487 = vld [vmem:[%s1134 + $0x2e4] sm:$0xf]
        %v4488 = vld [vmem:[%s1134 + $0x2e8] sm:$0xf]
        %v4489 = vld [vmem:[%s1134 + $0x2ec] sm:$0xf]
        %v4490 = vld [vmem:[%s1134 + $0x2f0] sm:$0xf]
        %v4491 = vld [vmem:[%s1134 + $0x2f4] sm:$0xf]
        %v4492 = vld [vmem:[%s1134 + $0x2f8] sm:$0xf]
        %v4493 = vld [vmem:[%s1134 + $0x2fc] sm:$0xf]
        %v4494 = vld [vmem:[%s1134 + $0x300] sm:$0xf]
        %v4495 = vld [vmem:[%s1134 + $0x304] sm:$0xf]
        %v4496 = vld [vmem:[%s1134 + $0x308] sm:$0xf]
        %v4497 = vld [vmem:[%s1134 + $0x30c] sm:$0xf]
        %v4498 = vld [vmem:[%s1134 + $0x310] sm:$0xf]
        %v4499 = vld [vmem:[%s1134 + $0x314] sm:$0xf]
        %v4500 = vld [vmem:[%s1134 + $0x318] sm:$0xf]
        %v4501 = vld [vmem:[%s1134 + $0x31c] sm:$0xf]
        %v4502 = vld [vmem:[%s1134 + $0x320] sm:$0xf]
        %v4503 = vld [vmem:[%s1134 + $0x324] sm:$0xf]
        %v4504 = vld [vmem:[%s1134 + $0x328] sm:$0xf]
        %v4505 = vld [vmem:[%s1134 + $0x32c] sm:$0xf]
        %v4506 = vld [vmem:[%s1134 + $0x330] sm:$0xf]
        %v4507 = vld [vmem:[%s1134 + $0x334] sm:$0xf]
        %v4508 = vld [vmem:[%s1134 + $0x338] sm:$0xf]
        %v4509 = vld [vmem:[%s1134 + $0x33c] sm:$0xf]
        %v4510 = vld [vmem:[%s1134 + $0x340] sm:$0xf]
        %v4511 = vld [vmem:[%s1134 + $0x344] sm:$0xf]
        %v4512 = vld [vmem:[%s1134 + $0x348] sm:$0xf]
        %v4513 = vld [vmem:[%s1134 + $0x34c] sm:$0xf]
        %v4514 = vld [vmem:[%s1134 + $0x350] sm:$0xf]
        %v4515 = vld [vmem:[%s1134 + $0x354] sm:$0xf]
        %v4516 = vld [vmem:[%s1134 + $0x358] sm:$0xf]
        %v4517 = vld [vmem:[%s1134 + $0x35c] sm:$0xf]
        %v4518 = vld [vmem:[%s1134 + $0x360] sm:$0xf]
        %v4519 = vld [vmem:[%s1134 + $0x364] sm:$0xf]
        %v4520 = vld [vmem:[%s1134 + $0x368] sm:$0xf]
        %v4521 = vld [vmem:[%s1134 + $0x36c] sm:$0xf]
        %v4522 = vld [vmem:[%s1134 + $0x370] sm:$0xf]
        %v4523 = vld [vmem:[%s1134 + $0x374] sm:$0xf]
        %v4524 = vld [vmem:[%s1134 + $0x378] sm:$0xf]
        %v4525 = vld [vmem:[%s1134 + $0x37c] sm:$0xf]
        %v4526 = vld [vmem:[%s1134 + $0x380] sm:$0xf]
        %v4527 = vld [vmem:[%s1134 + $0x384] sm:$0xf]
        %v4528 = vld [vmem:[%s1134 + $0x388] sm:$0xf]
        %v4529 = vld [vmem:[%s1134 + $0x38c] sm:$0xf]
        %v4530 = vld [vmem:[%s1134 + $0x390] sm:$0xf]
        %v4531 = vld [vmem:[%s1134 + $0x394] sm:$0xf]
        %v4532 = vld [vmem:[%s1134 + $0x398] sm:$0xf]
        %v4533 = vld [vmem:[%s1134 + $0x39c] sm:$0xf]
        %v4534 = vld [vmem:[%s1134 + $0x3a0] sm:$0xf]
        %v4535 = vld [vmem:[%s1134 + $0x3a4] sm:$0xf]
        %v4536 = vld [vmem:[%s1134 + $0x3a8] sm:$0xf]
        %v4537 = vld [vmem:[%s1134 + $0x3ac] sm:$0xf]
        %v4538 = vld [vmem:[%s1134 + $0x3b0] sm:$0xf]
        %v4539 = vld [vmem:[%s1134 + $0x3b4] sm:$0xf]
        %v4540 = vld [vmem:[%s1134 + $0x3b8] sm:$0xf]
        %v4541 = vld [vmem:[%s1134 + $0x3bc] sm:$0xf]
        %v4542 = vld [vmem:[%s1134 + $0x3c0] sm:$0xf]
        %v4543 = vld [vmem:[%s1134 + $0x3c4] sm:$0xf]
        %v4544 = vld [vmem:[%s1134 + $0x3c8] sm:$0xf]
        %v4545 = vld [vmem:[%s1134 + $0x3cc] sm:$0xf]
        %v4546 = vld [vmem:[%s1134 + $0x3d0] sm:$0xf]
        %v4547 = vld [vmem:[%s1134 + $0x3d4] sm:$0xf]
        %v4548 = vld [vmem:[%s1134 + $0x3d8] sm:$0xf]
        %v4549 = vld [vmem:[%s1134 + $0x3dc] sm:$0xf]
        %v4550 = vld [vmem:[%s1134 + $0x3e0] sm:$0xf]
        %v4551 = vld [vmem:[%s1134 + $0x3e4] sm:$0xf]
        %v4552 = vld [vmem:[%s1134 + $0x3e8] sm:$0xf]
        %v4553 = vld [vmem:[%s1134 + $0x3ec] sm:$0xf]
        %v4554 = vld [vmem:[%s1134 + $0x3f0] sm:$0xf]
        %v4555 = vld [vmem:[%s1134 + $0x3f4] sm:$0xf]
        %v4556 = vld [vmem:[%s1134 + $0x3f8] sm:$0xf]
        %v4557 = vld [vmem:[%s1134 + $0x3fc] sm:$0xf]
        %v4558 = vld [vmem:[%s1142] sm:$0x1]
        %v4560 = vlaneseq
        %v4561 = vshrl.u32 %v4560, 7
        %v4562 = vsub.s32 0, %v4561
        %v4563 = vrot.slane %v4558, %v4562
        %v4821 = vunpack.c.l.b16 %v4302
        %v4822 = vunpack.c.l.b16 %v4303
        %v4823 = vunpack.c.l.b16 %v4304
        %v4824 = vunpack.c.l.b16 %v4305
        %v4825 = vunpack.c.l.b16 %v4306
        %v4826 = vunpack.c.l.b16 %v4307
        %v4827 = vunpack.c.l.b16 %v4308
        %v4828 = vunpack.c.l.b16 %v4309
        %v4829 = vunpack.c.l.b16 %v4310
        %v4830 = vunpack.c.l.b16 %v4311
        %v4831 = vunpack.c.l.b16 %v4312
        %v4832 = vunpack.c.l.b16 %v4313
        %v4833 = vunpack.c.l.b16 %v4314
        %v4834 = vunpack.c.l.b16 %v4315
        %v4835 = vunpack.c.l.b16 %v4316
        %v4836 = vunpack.c.l.b16 %v4317
        %v4837 = vunpack.c.l.b16 %v4318
        %v4838 = vunpack.c.l.b16 %v4319
        %v4839 = vunpack.c.l.b16 %v4320
        %v4840 = vunpack.c.l.b16 %v4321
        %v4841 = vunpack.c.l.b16 %v4322
        %v4842 = vunpack.c.l.b16 %v4323
        %v4843 = vunpack.c.l.b16 %v4324
        %v4844 = vunpack.c.l.b16 %v4325
        %v4845 = vunpack.c.l.b16 %v4326
        %v4846 = vunpack.c.l.b16 %v4327
        %v4847 = vunpack.c.l.b16 %v4328
        %v4848 = vunpack.c.l.b16 %v4329
        %v4849 = vunpack.c.l.b16 %v4330
        %v4850 = vunpack.c.l.b16 %v4331
        %v4851 = vunpack.c.l.b16 %v4332
        %v4852 = vunpack.c.l.b16 %v4333
        %v4853 = vunpack.c.l.b16 %v4334
        %v4854 = vunpack.c.l.b16 %v4335
        %v4855 = vunpack.c.l.b16 %v4336
        %v4856 = vunpack.c.l.b16 %v4337
        %v4857 = vunpack.c.l.b16 %v4338
        %v4858 = vunpack.c.l.b16 %v4339
        %v4859 = vunpack.c.l.b16 %v4340
        %v4860 = vunpack.c.l.b16 %v4341
        %v4861 = vunpack.c.l.b16 %v4342
        %v4862 = vunpack.c.l.b16 %v4343
        %v4863 = vunpack.c.l.b16 %v4344
        %v4864 = vunpack.c.l.b16 %v4345
        %v4865 = vunpack.c.l.b16 %v4346
        %v4866 = vunpack.c.l.b16 %v4347
        %v4867 = vunpack.c.l.b16 %v4348
        %v4868 = vunpack.c.l.b16 %v4349
        %v4869 = vunpack.c.l.b16 %v4350
        %v4870 = vunpack.c.l.b16 %v4351
        %v4871 = vunpack.c.l.b16 %v4352
        %v4872 = vunpack.c.l.b16 %v4353
        %v4873 = vunpack.c.l.b16 %v4354
        %v4874 = vunpack.c.l.b16 %v4355
        %v4875 = vunpack.c.l.b16 %v4356
        %v4876 = vunpack.c.l.b16 %v4357
        %v4877 = vunpack.c.l.b16 %v4358
        %v4878 = vunpack.c.l.b16 %v4359
        %v4879 = vunpack.c.l.b16 %v4360
        %v4880 = vunpack.c.l.b16 %v4361
        %v4881 = vunpack.c.l.b16 %v4362
        %v4882 = vunpack.c.l.b16 %v4363
        %v4883 = vunpack.c.l.b16 %v4364
        %v4884 = vunpack.c.l.b16 %v4365
        %v4885 = vunpack.c.l.b16 %v4366
        %v4886 = vunpack.c.l.b16 %v4367
        %v4887 = vunpack.c.l.b16 %v4368
        %v4888 = vunpack.c.l.b16 %v4369
        %v4889 = vunpack.c.l.b16 %v4370
        %v4890 = vunpack.c.l.b16 %v4371
        %v4891 = vunpack.c.l.b16 %v4372
        %v4892 = vunpack.c.l.b16 %v4373
        %v4893 = vunpack.c.l.b16 %v4374
        %v4894 = vunpack.c.l.b16 %v4375
        %v4895 = vunpack.c.l.b16 %v4376
        %v4896 = vunpack.c.l.b16 %v4377
        %v4897 = vunpack.c.l.b16 %v4378
        %v4898 = vunpack.c.l.b16 %v4379
        %v4899 = vunpack.c.l.b16 %v4380
        %v4900 = vunpack.c.l.b16 %v4381
        %v4901 = vunpack.c.l.b16 %v4382
        %v4902 = vunpack.c.l.b16 %v4383
        %v4903 = vunpack.c.l.b16 %v4384
        %v4904 = vunpack.c.l.b16 %v4385
        %v4905 = vunpack.c.l.b16 %v4386
        %v4906 = vunpack.c.l.b16 %v4387
        %v4907 = vunpack.c.l.b16 %v4388
        %v4908 = vunpack.c.l.b16 %v4389
        %v4909 = vunpack.c.l.b16 %v4390
        %v4910 = vunpack.c.l.b16 %v4391
        %v4911 = vunpack.c.l.b16 %v4392
        %v4912 = vunpack.c.l.b16 %v4393
        %v4913 = vunpack.c.l.b16 %v4394
        %v4914 = vunpack.c.l.b16 %v4395
        %v4915 = vunpack.c.l.b16 %v4396
        %v4916 = vunpack.c.l.b16 %v4397
        %v4917 = vunpack.c.l.b16 %v4398
        %v4918 = vunpack.c.l.b16 %v4399
        %v4919 = vunpack.c.l.b16 %v4400
        %v4920 = vunpack.c.l.b16 %v4401
        %v4921 = vunpack.c.l.b16 %v4402
        %v4922 = vunpack.c.l.b16 %v4403
        %v4923 = vunpack.c.l.b16 %v4404
        %v4924 = vunpack.c.l.b16 %v4405
        %v4925 = vunpack.c.l.b16 %v4406
        %v4926 = vunpack.c.l.b16 %v4407
        %v4927 = vunpack.c.l.b16 %v4408
        %v4928 = vunpack.c.l.b16 %v4409
        %v4929 = vunpack.c.l.b16 %v4410
        %v4930 = vunpack.c.l.b16 %v4411
        %v4931 = vunpack.c.l.b16 %v4412
        %v4932 = vunpack.c.l.b16 %v4413
        %v4933 = vunpack.c.l.b16 %v4414
        %v4934 = vunpack.c.l.b16 %v4415
        %v4935 = vunpack.c.l.b16 %v4416
        %v4936 = vunpack.c.l.b16 %v4417
        %v4937 = vunpack.c.l.b16 %v4418
        %v4938 = vunpack.c.l.b16 %v4419
        %v4939 = vunpack.c.l.b16 %v4420
        %v4940 = vunpack.c.l.b16 %v4421
        %v4941 = vunpack.c.l.b16 %v4422
        %v4942 = vunpack.c.l.b16 %v4423
        %v4943 = vunpack.c.l.b16 %v4424
        %v4944 = vunpack.c.l.b16 %v4425
        %v4945 = vunpack.c.l.b16 %v4426
        %v4946 = vunpack.c.l.b16 %v4427
        %v4947 = vunpack.c.l.b16 %v4428
        %v4948 = vunpack.c.l.b16 %v4429
        %v4949 = vunpack.c.l.b16 %v4430
        %v4950 = vunpack.c.l.b16 %v4431
        %v4951 = vunpack.c.l.b16 %v4432
        %v4952 = vunpack.c.l.b16 %v4433
        %v4953 = vunpack.c.l.b16 %v4434
        %v4954 = vunpack.c.l.b16 %v4435
        %v4955 = vunpack.c.l.b16 %v4436
        %v4956 = vunpack.c.l.b16 %v4437
        %v4957 = vunpack.c.l.b16 %v4438
        %v4958 = vunpack.c.l.b16 %v4439
        %v4959 = vunpack.c.l.b16 %v4440
        %v4960 = vunpack.c.l.b16 %v4441
        %v4961 = vunpack.c.l.b16 %v4442
        %v4962 = vunpack.c.l.b16 %v4443
        %v4963 = vunpack.c.l.b16 %v4444
        %v4964 = vunpack.c.l.b16 %v4445
        %v4965 = vunpack.c.l.b16 %v4446
        %v4966 = vunpack.c.l.b16 %v4447
        %v4967 = vunpack.c.l.b16 %v4448
        %v4968 = vunpack.c.l.b16 %v4449
        %v4969 = vunpack.c.l.b16 %v4450
        %v4970 = vunpack.c.l.b16 %v4451
        %v4971 = vunpack.c.l.b16 %v4452
        %v4972 = vunpack.c.l.b16 %v4453
        %v4973 = vunpack.c.l.b16 %v4454
        %v4974 = vunpack.c.l.b16 %v4455
        %v4975 = vunpack.c.l.b16 %v4456
        %v4976 = vunpack.c.l.b16 %v4457
        %v4977 = vunpack.c.l.b16 %v4458
        %v4978 = vunpack.c.l.b16 %v4459
        %v4979 = vunpack.c.l.b16 %v4460
        %v4980 = vunpack.c.l.b16 %v4461
        %v4981 = vunpack.c.l.b16 %v4462
        %v4982 = vunpack.c.l.b16 %v4463
        %v4983 = vunpack.c.l.b16 %v4464
        %v4984 = vunpack.c.l.b16 %v4465
        %v4985 = vunpack.c.l.b16 %v4466
        %v4986 = vunpack.c.l.b16 %v4467
        %v4987 = vunpack.c.l.b16 %v4468
        %v4988 = vunpack.c.l.b16 %v4469
        %v4989 = vunpack.c.l.b16 %v4470
        %v4990 = vunpack.c.l.b16 %v4471
        %v4991 = vunpack.c.l.b16 %v4472
        %v4992 = vunpack.c.l.b16 %v4473
        %v4993 = vunpack.c.l.b16 %v4474
        %v4994 = vunpack.c.l.b16 %v4475
        %v4995 = vunpack.c.l.b16 %v4476
        %v4996 = vunpack.c.l.b16 %v4477
        %v4997 = vunpack.c.l.b16 %v4478
        %v4998 = vunpack.c.l.b16 %v4479
        %v4999 = vunpack.c.l.b16 %v4480
        %v5000 = vunpack.c.l.b16 %v4481
        %v5001 = vunpack.c.l.b16 %v4482
        %v5002 = vunpack.c.l.b16 %v4483
        %v5003 = vunpack.c.l.b16 %v4484
        %v5004 = vunpack.c.l.b16 %v4485
        %v5005 = vunpack.c.l.b16 %v4486
        %v5006 = vunpack.c.l.b16 %v4487
        %v5007 = vunpack.c.l.b16 %v4488
        %v5008 = vunpack.c.l.b16 %v4489
        %v5009 = vunpack.c.l.b16 %v4490
        %v5010 = vunpack.c.l.b16 %v4491
        %v5011 = vunpack.c.l.b16 %v4492
        %v5012 = vunpack.c.l.b16 %v4493
        %v5013 = vunpack.c.l.b16 %v4494
        %v5014 = vunpack.c.l.b16 %v4495
        %v5015 = vunpack.c.l.b16 %v4496
        %v5016 = vunpack.c.l.b16 %v4497
        %v5017 = vunpack.c.l.b16 %v4498
        %v5018 = vunpack.c.l.b16 %v4499
        %v5019 = vunpack.c.l.b16 %v4500
        %v5020 = vunpack.c.l.b16 %v4501
        %v5021 = vunpack.c.l.b16 %v4502
        %v5022 = vunpack.c.l.b16 %v4503
        %v5023 = vunpack.c.l.b16 %v4504
        %v5024 = vunpack.c.l.b16 %v4505
        %v5025 = vunpack.c.l.b16 %v4506
        %v5026 = vunpack.c.l.b16 %v4507
        %v5027 = vunpack.c.l.b16 %v4508
        %v5028 = vunpack.c.l.b16 %v4509
        %v5029 = vunpack.c.l.b16 %v4510
        %v5030 = vunpack.c.l.b16 %v4511
        %v5031 = vunpack.c.l.b16 %v4512
        %v5032 = vunpack.c.l.b16 %v4513
        %v5033 = vunpack.c.l.b16 %v4514
        %v5034 = vunpack.c.l.b16 %v4515
        %v5035 = vunpack.c.l.b16 %v4516
        %v5036 = vunpack.c.l.b16 %v4517
        %v5037 = vunpack.c.l.b16 %v4518
        %v5038 = vunpack.c.l.b16 %v4519
        %v5039 = vunpack.c.l.b16 %v4520
        %v5040 = vunpack.c.l.b16 %v4521
        %v5041 = vunpack.c.l.b16 %v4522
        %v5042 = vunpack.c.l.b16 %v4523
        %v5043 = vunpack.c.l.b16 %v4524
        %v5044 = vunpack.c.l.b16 %v4525
        %v5045 = vunpack.c.l.b16 %v4526
        %v5046 = vunpack.c.l.b16 %v4527
        %v5047 = vunpack.c.l.b16 %v4528
        %v5048 = vunpack.c.l.b16 %v4529
        %v5049 = vunpack.c.l.b16 %v4530
        %v5050 = vunpack.c.l.b16 %v4531
        %v5051 = vunpack.c.l.b16 %v4532
        %v5052 = vunpack.c.l.b16 %v4533
        %v5053 = vunpack.c.l.b16 %v4534
        %v5054 = vunpack.c.l.b16 %v4535
        %v5055 = vunpack.c.l.b16 %v4536
        %v5056 = vunpack.c.l.b16 %v4537
        %v5057 = vunpack.c.l.b16 %v4538
        %v5058 = vunpack.c.l.b16 %v4539
        %v5059 = vunpack.c.l.b16 %v4540
        %v5060 = vunpack.c.l.b16 %v4541
        %v5061 = vunpack.c.l.b16 %v4542
        %v5062 = vunpack.c.l.b16 %v4543
        %v5063 = vunpack.c.l.b16 %v4544
        %v5064 = vunpack.c.l.b16 %v4545
        %v5065 = vunpack.c.l.b16 %v4546
        %v5066 = vunpack.c.l.b16 %v4547
        %v5067 = vunpack.c.l.b16 %v4548
        %v5068 = vunpack.c.l.b16 %v4549
        %v5069 = vunpack.c.l.b16 %v4550
        %v5070 = vunpack.c.l.b16 %v4551
        %v5071 = vunpack.c.l.b16 %v4552
        %v5072 = vunpack.c.l.b16 %v4553
        %v5073 = vunpack.c.l.b16 %v4554
        %v5074 = vunpack.c.l.b16 %v4555
        %v5075 = vunpack.c.l.b16 %v4556
        %v5076 = vunpack.c.l.b16 %v4557
        %v5077 = vpack.c.b16 %v4822, %v4821
        %v5078 = vpack.c.b16 %v4824, %v4823
        %v5079 = vpack.c.b16 %v4826, %v4825
        %v5080 = vpack.c.b16 %v4828, %v4827
        %v5081 = vpack.c.b16 %v4830, %v4829
        %v5082 = vpack.c.b16 %v4832, %v4831
        %v5083 = vpack.c.b16 %v4834, %v4833
        %v5084 = vpack.c.b16 %v4836, %v4835
        %v5085 = vpack.c.b16 %v4838, %v4837
        %v5086 = vpack.c.b16 %v4840, %v4839
        %v5087 = vpack.c.b16 %v4842, %v4841
        %v5088 = vpack.c.b16 %v4844, %v4843
        %v5089 = vpack.c.b16 %v4846, %v4845
        %v5090 = vpack.c.b16 %v4848, %v4847
        %v5091 = vpack.c.b16 %v4850, %v4849
        %v5092 = vpack.c.b16 %v4852, %v4851
        %v5093 = vpack.c.b16 %v4854, %v4853
        %v5094 = vpack.c.b16 %v4856, %v4855
        %v5095 = vpack.c.b16 %v4858, %v4857
        %v5096 = vpack.c.b16 %v4860, %v4859
        %v5097 = vpack.c.b16 %v4862, %v4861
        %v5098 = vpack.c.b16 %v4864, %v4863
        %v5099 = vpack.c.b16 %v4866, %v4865
        %v5100 = vpack.c.b16 %v4868, %v4867
        %v5101 = vpack.c.b16 %v4870, %v4869
        %v5102 = vpack.c.b16 %v4872, %v4871
        %v5103 = vpack.c.b16 %v4874, %v4873
        %v5104 = vpack.c.b16 %v4876, %v4875
        %v5105 = vpack.c.b16 %v4878, %v4877
        %v5106 = vpack.c.b16 %v4880, %v4879
        %v5107 = vpack.c.b16 %v4882, %v4881
        %v5108 = vpack.c.b16 %v4884, %v4883
        %v5109 = vpack.c.b16 %v4886, %v4885
        %v5110 = vpack.c.b16 %v4888, %v4887
        %v5111 = vpack.c.b16 %v4890, %v4889
        %v5112 = vpack.c.b16 %v4892, %v4891
        %v5113 = vpack.c.b16 %v4894, %v4893
        %v5114 = vpack.c.b16 %v4896, %v4895
        %v5115 = vpack.c.b16 %v4898, %v4897
        %v5116 = vpack.c.b16 %v4900, %v4899
        %v5117 = vpack.c.b16 %v4902, %v4901
        %v5118 = vpack.c.b16 %v4904, %v4903
        %v5119 = vpack.c.b16 %v4906, %v4905
        %v5120 = vpack.c.b16 %v4908, %v4907
        %v5121 = vpack.c.b16 %v4910, %v4909
        %v5122 = vpack.c.b16 %v4912, %v4911
        %v5123 = vpack.c.b16 %v4914, %v4913
        %v5124 = vpack.c.b16 %v4916, %v4915
        %v5125 = vpack.c.b16 %v4918, %v4917
        %v5126 = vpack.c.b16 %v4920, %v4919
        %v5127 = vpack.c.b16 %v4922, %v4921
        %v5128 = vpack.c.b16 %v4924, %v4923
        %v5129 = vpack.c.b16 %v4926, %v4925
        %v5130 = vpack.c.b16 %v4928, %v4927
        %v5131 = vpack.c.b16 %v4930, %v4929
        %v5132 = vpack.c.b16 %v4932, %v4931
        %v5133 = vpack.c.b16 %v4934, %v4933
        %v5134 = vpack.c.b16 %v4936, %v4935
        %v5135 = vpack.c.b16 %v4938, %v4937
        %v5136 = vpack.c.b16 %v4940, %v4939
        %v5137 = vpack.c.b16 %v4942, %v4941
        %v5138 = vpack.c.b16 %v4944, %v4943
        %v5139 = vpack.c.b16 %v4946, %v4945
        %v5140 = vpack.c.b16 %v4948, %v4947
        %v5141 = vpack.c.b16 %v4950, %v4949
        %v5142 = vpack.c.b16 %v4952, %v4951
        %v5143 = vpack.c.b16 %v4954, %v4953
        %v5144 = vpack.c.b16 %v4956, %v4955
        %v5145 = vpack.c.b16 %v4958, %v4957
        %v5146 = vpack.c.b16 %v4960, %v4959
        %v5147 = vpack.c.b16 %v4962, %v4961
        %v5148 = vpack.c.b16 %v4964, %v4963
        %v5149 = vpack.c.b16 %v4966, %v4965
        %v5150 = vpack.c.b16 %v4968, %v4967
        %v5151 = vpack.c.b16 %v4970, %v4969
        %v5152 = vpack.c.b16 %v4972, %v4971
        %v5153 = vpack.c.b16 %v4974, %v4973
        %v5154 = vpack.c.b16 %v4976, %v4975
        %v5155 = vpack.c.b16 %v4978, %v4977
        %v5156 = vpack.c.b16 %v4980, %v4979
        %v5157 = vpack.c.b16 %v4982, %v4981
        %v5158 = vpack.c.b16 %v4984, %v4983
        %v5159 = vpack.c.b16 %v4986, %v4985
        %v5160 = vpack.c.b16 %v4988, %v4987
        %v5161 = vpack.c.b16 %v4990, %v4989
        %v5162 = vpack.c.b16 %v4992, %v4991
        %v5163 = vpack.c.b16 %v4994, %v4993
        %v5164 = vpack.c.b16 %v4996, %v4995
        %v5165 = vpack.c.b16 %v4998, %v4997
        %v5166 = vpack.c.b16 %v5000, %v4999
        %v5167 = vpack.c.b16 %v5002, %v5001
        %v5168 = vpack.c.b16 %v5004, %v5003
        %v5169 = vpack.c.b16 %v5006, %v5005
        %v5170 = vpack.c.b16 %v5008, %v5007
        %v5171 = vpack.c.b16 %v5010, %v5009
        %v5172 = vpack.c.b16 %v5012, %v5011
        %v5173 = vpack.c.b16 %v5014, %v5013
        %v5174 = vpack.c.b16 %v5016, %v5015
        %v5175 = vpack.c.b16 %v5018, %v5017
        %v5176 = vpack.c.b16 %v5020, %v5019
        %v5177 = vpack.c.b16 %v5022, %v5021
        %v5178 = vpack.c.b16 %v5024, %v5023
        %v5179 = vpack.c.b16 %v5026, %v5025
        %v5180 = vpack.c.b16 %v5028, %v5027
        %v5181 = vpack.c.b16 %v5030, %v5029
        %v5182 = vpack.c.b16 %v5032, %v5031
        %v5183 = vpack.c.b16 %v5034, %v5033
        %v5184 = vpack.c.b16 %v5036, %v5035
        %v5185 = vpack.c.b16 %v5038, %v5037
        %v5186 = vpack.c.b16 %v5040, %v5039
        %v5187 = vpack.c.b16 %v5042, %v5041
        %v5188 = vpack.c.b16 %v5044, %v5043
        %v5189 = vpack.c.b16 %v5046, %v5045
        %v5190 = vpack.c.b16 %v5048, %v5047
        %v5191 = vpack.c.b16 %v5050, %v5049
        %v5192 = vpack.c.b16 %v5052, %v5051
        %v5193 = vpack.c.b16 %v5054, %v5053
        %v5194 = vpack.c.b16 %v5056, %v5055
        %v5195 = vpack.c.b16 %v5058, %v5057
        %v5196 = vpack.c.b16 %v5060, %v5059
        %v5197 = vpack.c.b16 %v5062, %v5061
        %v5198 = vpack.c.b16 %v5064, %v5063
        %v5199 = vpack.c.b16 %v5066, %v5065
        %v5200 = vpack.c.b16 %v5068, %v5067
        %v5201 = vpack.c.b16 %v5070, %v5069
        %v5202 = vpack.c.b16 %v5072, %v5071
        %v5203 = vpack.c.b16 %v5074, %v5073
        %v5204 = vpack.c.b16 %v5076, %v5075
        %5333 = vmatprep.subr.bf16.mxu0 0
        %5334 = vmatpush1.bf16.msra.mxu0 %v5077
        %5335 = vmatprep.subr.bf16.mxu0 0
        %5336 = vmatpush1.bf16.msra.mxu0 %v5078
        %5337 = vmatprep.subr.bf16.mxu0 0
        %5338 = vmatpush1.bf16.msra.mxu0 %v5079
        %5339 = vmatprep.subr.bf16.mxu0 0
        %5340 = vmatpush1.bf16.msra.mxu0 %v5080
        %5341 = vmatprep.subr.bf16.mxu0 0
        %5342 = vmatpush1.bf16.msra.mxu0 %v5081
        %5343 = vmatprep.subr.bf16.mxu0 0
        %5344 = vmatpush1.bf16.msra.mxu0 %v5082
        %5345 = vmatprep.subr.bf16.mxu0 0
        %5346 = vmatpush1.bf16.msra.mxu0 %v5083
        %5347 = vmatprep.subr.bf16.mxu0 0
        %5348 = vmatpush1.bf16.msra.mxu0 %v5084
        %5349 = vmatprep.subr.bf16.mxu0 0
        %5350 = vmatpush1.bf16.msra.mxu0 %v5085
        %5351 = vmatprep.subr.bf16.mxu0 0
        %5352 = vmatpush1.bf16.msra.mxu0 %v5086
        %5353 = vmatprep.subr.bf16.mxu0 0
        %5354 = vmatpush1.bf16.msra.mxu0 %v5087
        %5355 = vmatprep.subr.bf16.mxu0 0
        %5356 = vmatpush1.bf16.msra.mxu0 %v5088
        %5357 = vmatprep.subr.bf16.mxu0 0
        %5358 = vmatpush1.bf16.msra.mxu0 %v5089
        %5359 = vmatprep.subr.bf16.mxu0 0
        %5360 = vmatpush1.bf16.msra.mxu0 %v5090
        %5361 = vmatprep.subr.bf16.mxu0 0
        %5362 = vmatpush1.bf16.msra.mxu0 %v5091
        %5363 = vmatprep.subr.bf16.mxu0 0
        %5364 = vmatpush1.bf16.msra.mxu0 %v5092
        %5365 = vmatprep.mubr.bf16.mxu0 %v4287
        %5366 = vmatmul.mubr.bf16.gmra.mrb[0].mxu0 %v4286
        %v5367 = vpop.f32.mrb[0].mxu0
        %v5368 = vadd.f32 %v4563, %v5367
        %v5369 = vpop.f32.mrb[0].mxu0
        %v5370 = vpop.f32.mrb[0].mxu0
        %v5371 = vpop.f32.mrb[0].mxu0
        %5372 = vdwg.mxu0
        %5373 = vmatprep.subr.bf16.mxu0 0
        %5374 = vmatpush1.bf16.msra.mxu0 %v5093
        %5375 = vmatprep.subr.bf16.mxu0 0
        %5376 = vmatpush1.bf16.msra.mxu0 %v5094
        %5377 = vmatprep.subr.bf16.mxu0 0
        %5378 = vmatpush1.bf16.msra.mxu0 %v5095
        %5379 = vmatprep.subr.bf16.mxu0 0
        %5380 = vmatpush1.bf16.msra.mxu0 %v5096
        %5381 = vmatprep.subr.bf16.mxu0 0
        %5382 = vmatpush1.bf16.msra.mxu0 %v5097
        %5383 = vmatprep.subr.bf16.mxu0 0
        %5384 = vmatpush1.bf16.msra.mxu0 %v5098
        %5385 = vmatprep.subr.bf16.mxu0 0
        %5386 = vmatpush1.bf16.msra.mxu0 %v5099
        %5387 = vmatprep.subr.bf16.mxu0 0
        %5388 = vmatpush1.bf16.msra.mxu0 %v5100
        %5389 = vmatprep.subr.bf16.mxu0 0
        %5390 = vmatpush1.bf16.msra.mxu0 %v5101
        %5391 = vmatprep.subr.bf16.mxu0 0
        %5392 = vmatpush1.bf16.msra.mxu0 %v5102
        %5393 = vmatprep.subr.bf16.mxu0 0
        %5394 = vmatpush1.bf16.msra.mxu0 %v5103
        %5395 = vmatprep.subr.bf16.mxu0 0
        %5396 = vmatpush1.bf16.msra.mxu0 %v5104
        %5397 = vmatprep.subr.bf16.mxu0 0
        %5398 = vmatpush1.bf16.msra.mxu0 %v5105
        %5399 = vmatprep.subr.bf16.mxu0 0
        %5400 = vmatpush1.bf16.msra.mxu0 %v5106
        %5401 = vmatprep.subr.bf16.mxu0 0
        %5402 = vmatpush1.bf16.msra.mxu0 %v5107
        %5403 = vmatprep.subr.bf16.mxu0 0
        %5404 = vmatpush1.bf16.msra.mxu0 %v5108
        %5405 = vmatprep.mubr.bf16.mxu0 %v4289
        %5406 = vmatmul.mubr.bf16.gmra.mrb[0].mxu0 %v4288
        %v5407 = vpop.f32.mrb[0].mxu0
        %v5408 = vadd.f32 %v5368, %v5407
        %v5409 = vpop.f32.mrb[0].mxu0
        %v5410 = vpop.f32.mrb[0].mxu0
        %v5411 = vpop.f32.mrb[0].mxu0
        %5412 = vdwg.mxu0
        %5413 = vmatprep.subr.bf16.mxu0 0
        %5414 = vmatpush1.bf16.msra.mxu0 %v5109
        %5415 = vmatprep.subr.bf16.mxu0 0
        %5416 = vmatpush1.bf16.msra.mxu0 %v5110
        %5417 = vmatprep.subr.bf16.mxu0 0
        %5418 = vmatpush1.bf16.msra.mxu0 %v5111
        %5419 = vmatprep.subr.bf16.mxu0 0
        %5420 = vmatpush1.bf16.msra.mxu0 %v5112
        %5421 = vmatprep.subr.bf16.mxu0 0
        %5422 = vmatpush1.bf16.msra.mxu0 %v5113
        %5423 = vmatprep.subr.bf16.mxu0 0
        %5424 = vmatpush1.bf16.msra.mxu0 %v5114
        %5425 = vmatprep.subr.bf16.mxu0 0
        %5426 = vmatpush1.bf16.msra.mxu0 %v5115
        %5427 = vmatprep.subr.bf16.mxu0 0
        %5428 = vmatpush1.bf16.msra.mxu0 %v5116
        %5429 = vmatprep.subr.bf16.mxu0 0
        %5430 = vmatpush1.bf16.msra.mxu0 %v5117
        %5431 = vmatprep.subr.bf16.mxu0 0
        %5432 = vmatpush1.bf16.msra.mxu0 %v5118
        %5433 = vmatprep.subr.bf16.mxu0 0
        %5434 = vmatpush1.bf16.msra.mxu0 %v5119
        %5435 = vmatprep.subr.bf16.mxu0 0
        %5436 = vmatpush1.bf16.msra.mxu0 %v5120
        %5437 = vmatprep.subr.bf16.mxu0 0
        %5438 = vmatpush1.bf16.msra.mxu0 %v5121
        %5439 = vmatprep.subr.bf16.mxu0 0
        %5440 = vmatpush1.bf16.msra.mxu0 %v5122
        %5441 = vmatprep.subr.bf16.mxu0 0
        %5442 = vmatpush1.bf16.msra.mxu0 %v5123
        %5443 = vmatprep.subr.bf16.mxu0 0
        %5444 = vmatpush1.bf16.msra.mxu0 %v5124
        %5445 = vmatprep.mubr.bf16.mxu0 %v4291
        %5446 = vmatmul.mubr.bf16.gmra.mrb[0].mxu0 %v4290
        %v5447 = vpop.f32.mrb[0].mxu0
        %v5448 = vadd.f32 %v5408, %v5447
        %v5449 = vpop.f32.mrb[0].mxu0
        %v5450 = vpop.f32.mrb[0].mxu0
        %v5451 = vpop.f32.mrb[0].mxu0
        %5452 = vdwg.mxu0
        %5453 = vmatprep.subr.bf16.mxu0 0
        %5454 = vmatpush1.bf16.msra.mxu0 %v5125
        %5455 = vmatprep.subr.bf16.mxu0 0
        %5456 = vmatpush1.bf16.msra.mxu0 %v5126
        %5457 = vmatprep.subr.bf16.mxu0 0
        %5458 = vmatpush1.bf16.msra.mxu0 %v5127
        %5459 = vmatprep.subr.bf16.mxu0 0
        %5460 = vmatpush1.bf16.msra.mxu0 %v5128
        %5461 = vmatprep.subr.bf16.mxu0 0
        %5462 = vmatpush1.bf16.msra.mxu0 %v5129
        %5463 = vmatprep.subr.bf16.mxu0 0
        %5464 = vmatpush1.bf16.msra.mxu0 %v5130
        %5465 = vmatprep.subr.bf16.mxu0 0
        %5466 = vmatpush1.bf16.msra.mxu0 %v5131
        %5467 = vmatprep.subr.bf16.mxu0 0
        %5468 = vmatpush1.bf16.msra.mxu0 %v5132
        %5469 = vmatprep.subr.bf16.mxu0 0
        %5470 = vmatpush1.bf16.msra.mxu0 %v5133
        %5471 = vmatprep.subr.bf16.mxu0 0
        %5472 = vmatpush1.bf16.msra.mxu0 %v5134
        %5473 = vmatprep.subr.bf16.mxu0 0
        %5474 = vmatpush1.bf16.msra.mxu0 %v5135
        %5475 = vmatprep.subr.bf16.mxu0 0
        %5476 = vmatpush1.bf16.msra.mxu0 %v5136
        %5477 = vmatprep.subr.bf16.mxu0 0
        %5478 = vmatpush1.bf16.msra.mxu0 %v5137
        %5479 = vmatprep.subr.bf16.mxu0 0
        %5480 = vmatpush1.bf16.msra.mxu0 %v5138
        %5481 = vmatprep.subr.bf16.mxu0 0
        %5482 = vmatpush1.bf16.msra.mxu0 %v5139
        %5483 = vmatprep.subr.bf16.mxu0 0
        %5484 = vmatpush1.bf16.msra.mxu0 %v5140
        %5485 = vmatprep.mubr.bf16.mxu0 %v4293
        %5486 = vmatmul.mubr.bf16.gmra.mrb[0].mxu0 %v4292
        %v5487 = vpop.f32.mrb[0].mxu0
        %v5488 = vadd.f32 %v5448, %v5487
        %v5489 = vpop.f32.mrb[0].mxu0
        %v5490 = vpop.f32.mrb[0].mxu0
        %v5491 = vpop.f32.mrb[0].mxu0
        %5492 = vdwg.mxu0
        %5493 = vmatprep.subr.bf16.mxu0 0
        %5494 = vmatpush1.bf16.msra.mxu0 %v5141
        %5495 = vmatprep.subr.bf16.mxu0 0
        %5496 = vmatpush1.bf16.msra.mxu0 %v5142
        %5497 = vmatprep.subr.bf16.mxu0 0
        %5498 = vmatpush1.bf16.msra.mxu0 %v5143
        %5499 = vmatprep.subr.bf16.mxu0 0
        %5500 = vmatpush1.bf16.msra.mxu0 %v5144
        %5501 = vmatprep.subr.bf16.mxu0 0
        %5502 = vmatpush1.bf16.msra.mxu0 %v5145
        %5503 = vmatprep.subr.bf16.mxu0 0
        %5504 = vmatpush1.bf16.msra.mxu0 %v5146
        %5505 = vmatprep.subr.bf16.mxu0 0
        %5506 = vmatpush1.bf16.msra.mxu0 %v5147
        %5507 = vmatprep.subr.bf16.mxu0 0
        %5508 = vmatpush1.bf16.msra.mxu0 %v5148
        %5509 = vmatprep.subr.bf16.mxu0 0
        %5510 = vmatpush1.bf16.msra.mxu0 %v5149
        %5511 = vmatprep.subr.bf16.mxu0 0
        %5512 = vmatpush1.bf16.msra.mxu0 %v5150
        %5513 = vmatprep.subr.bf16.mxu0 0
        %5514 = vmatpush1.bf16.msra.mxu0 %v5151
        %5515 = vmatprep.subr.bf16.mxu0 0
        %5516 = vmatpush1.bf16.msra.mxu0 %v5152
        %5517 = vmatprep.subr.bf16.mxu0 0
        %5518 = vmatpush1.bf16.msra.mxu0 %v5153
        %5519 = vmatprep.subr.bf16.mxu0 0
        %5520 = vmatpush1.bf16.msra.mxu0 %v5154
        %5521 = vmatprep.subr.bf16.mxu0 0
        %5522 = vmatpush1.bf16.msra.mxu0 %v5155
        %5523 = vmatprep.subr.bf16.mxu0 0
        %5524 = vmatpush1.bf16.msra.mxu0 %v5156
        %5525 = vmatprep.mubr.bf16.mxu0 %v4295
        %5526 = vmatmul.mubr.bf16.gmra.mrb[0].mxu0 %v4294
        %v5527 = vpop.f32.mrb[0].mxu0
        %v5528 = vadd.f32 %v5488, %v5527
        %v5529 = vpop.f32.mrb[0].mxu0
        %v5530 = vpop.f32.mrb[0].mxu0
        %v5531 = vpop.f32.mrb[0].mxu0
        %5532 = vdwg.mxu0
        %5533 = vmatprep.subr.bf16.mxu0 0
        %5534 = vmatpush1.bf16.msra.mxu0 %v5157
        %5535 = vmatprep.subr.bf16.mxu0 0
        %5536 = vmatpush1.bf16.msra.mxu0 %v5158
        %5537 = vmatprep.subr.bf16.mxu0 0
        %5538 = vmatpush1.bf16.msra.mxu0 %v5159
        %5539 = vmatprep.subr.bf16.mxu0 0
        %5540 = vmatpush1.bf16.msra.mxu0 %v5160
        %5541 = vmatprep.subr.bf16.mxu0 0
        %5542 = vmatpush1.bf16.msra.mxu0 %v5161
        %5543 = vmatprep.subr.bf16.mxu0 0
        %5544 = vmatpush1.bf16.msra.mxu0 %v5162
        %5545 = vmatprep.subr.bf16.mxu0 0
        %5546 = vmatpush1.bf16.msra.mxu0 %v5163
        %5547 = vmatprep.subr.bf16.mxu0 0
        %5548 = vmatpush1.bf16.msra.mxu0 %v5164
        %5549 = vmatprep.subr.bf16.mxu0 0
        %5550 = vmatpush1.bf16.msra.mxu0 %v5165
        %5551 = vmatprep.subr.bf16.mxu0 0
        %5552 = vmatpush1.bf16.msra.mxu0 %v5166
        %5553 = vmatprep.subr.bf16.mxu0 0
        %5554 = vmatpush1.bf16.msra.mxu0 %v5167
        %5555 = vmatprep.subr.bf16.mxu0 0
        %5556 = vmatpush1.bf16.msra.mxu0 %v5168
        %5557 = vmatprep.subr.bf16.mxu0 0
        %5558 = vmatpush1.bf16.msra.mxu0 %v5169
        %5559 = vmatprep.subr.bf16.mxu0 0
        %5560 = vmatpush1.bf16.msra.mxu0 %v5170
        %5561 = vmatprep.subr.bf16.mxu0 0
        %5562 = vmatpush1.bf16.msra.mxu0 %v5171
        %5563 = vmatprep.subr.bf16.mxu0 0
        %5564 = vmatpush1.bf16.msra.mxu0 %v5172
        %5565 = vmatprep.mubr.bf16.mxu0 %v4297
        %5566 = vmatmul.mubr.bf16.gmra.mrb[0].mxu0 %v4296
        %v5567 = vpop.f32.mrb[0].mxu0
        %v5568 = vadd.f32 %v5528, %v5567
        %v5569 = vpop.f32.mrb[0].mxu0
        %v5570 = vpop.f32.mrb[0].mxu0
        %v5571 = vpop.f32.mrb[0].mxu0
        %5572 = vdwg.mxu0
        %5573 = vmatprep.subr.bf16.mxu0 0
        %5574 = vmatpush1.bf16.msra.mxu0 %v5173
        %5575 = vmatprep.subr.bf16.mxu0 0
        %5576 = vmatpush1.bf16.msra.mxu0 %v5174
        %5577 = vmatprep.subr.bf16.mxu0 0
        %5578 = vmatpush1.bf16.msra.mxu0 %v5175
        %5579 = vmatprep.subr.bf16.mxu0 0
        %5580 = vmatpush1.bf16.msra.mxu0 %v5176
        %5581 = vmatprep.subr.bf16.mxu0 0
        %5582 = vmatpush1.bf16.msra.mxu0 %v5177
        %5583 = vmatprep.subr.bf16.mxu0 0
        %5584 = vmatpush1.bf16.msra.mxu0 %v5178
        %5585 = vmatprep.subr.bf16.mxu0 0
        %5586 = vmatpush1.bf16.msra.mxu0 %v5179
        %5587 = vmatprep.subr.bf16.mxu0 0
        %5588 = vmatpush1.bf16.msra.mxu0 %v5180
        %5589 = vmatprep.subr.bf16.mxu0 0
        %5590 = vmatpush1.bf16.msra.mxu0 %v5181
        %5591 = vmatprep.subr.bf16.mxu0 0
        %5592 = vmatpush1.bf16.msra.mxu0 %v5182
        %5593 = vmatprep.subr.bf16.mxu0 0
        %5594 = vmatpush1.bf16.msra.mxu0 %v5183
        %5595 = vmatprep.subr.bf16.mxu0 0
        %5596 = vmatpush1.bf16.msra.mxu0 %v5184
        %5597 = vmatprep.subr.bf16.mxu0 0
        %5598 = vmatpush1.bf16.msra.mxu0 %v5185
        %5599 = vmatprep.subr.bf16.mxu0 0
        %5600 = vmatpush1.bf16.msra.mxu0 %v5186
        %5601 = vmatprep.subr.bf16.mxu0 0
        %5602 = vmatpush1.bf16.msra.mxu0 %v5187
        %5603 = vmatprep.subr.bf16.mxu0 0
        %5604 = vmatpush1.bf16.msra.mxu0 %v5188
        %5605 = vmatprep.mubr.bf16.mxu0 %v4299
        %5606 = vmatmul.mubr.bf16.gmra.mrb[0].mxu0 %v4298
        %v5607 = vpop.f32.mrb[0].mxu0
        %v5608 = vadd.f32 %v5568, %v5607
        %v5609 = vpop.f32.mrb[0].mxu0
        %v5610 = vpop.f32.mrb[0].mxu0
        %v5611 = vpop.f32.mrb[0].mxu0
        %5612 = vdwg.mxu0
        %5613 = vmatprep.subr.bf16.mxu0 0
        %5614 = vmatpush1.bf16.msra.mxu0 %v5189
        %5615 = vmatprep.subr.bf16.mxu0 0
        %5616 = vmatpush1.bf16.msra.mxu0 %v5190
        %5617 = vmatprep.subr.bf16.mxu0 0
        %5618 = vmatpush1.bf16.msra.mxu0 %v5191
        %5619 = vmatprep.subr.bf16.mxu0 0
        %5620 = vmatpush1.bf16.msra.mxu0 %v5192
        %5621 = vmatprep.subr.bf16.mxu0 0
        %5622 = vmatpush1.bf16.msra.mxu0 %v5193
        %5623 = vmatprep.subr.bf16.mxu0 0
        %5624 = vmatpush1.bf16.msra.mxu0 %v5194
        %5625 = vmatprep.subr.bf16.mxu0 0
        %5626 = vmatpush1.bf16.msra.mxu0 %v5195
        %5627 = vmatprep.subr.bf16.mxu0 0
        %5628 = vmatpush1.bf16.msra.mxu0 %v5196
        %5629 = vmatprep.subr.bf16.mxu0 0
        %5630 = vmatpush1.bf16.msra.mxu0 %v5197
        %5631 = vmatprep.subr.bf16.mxu0 0
        %5632 = vmatpush1.bf16.msra.mxu0 %v5198
        %5633 = vmatprep.subr.bf16.mxu0 0
        %5634 = vmatpush1.bf16.msra.mxu0 %v5199
        %5635 = vmatprep.subr.bf16.mxu0 0
        %5636 = vmatpush1.bf16.msra.mxu0 %v5200
        %5637 = vmatprep.subr.bf16.mxu0 0
        %5638 = vmatpush1.bf16.msra.mxu0 %v5201
        %5639 = vmatprep.subr.bf16.mxu0 0
        %5640 = vmatpush1.bf16.msra.mxu0 %v5202
        %5641 = vmatprep.subr.bf16.mxu0 0
        %5642 = vmatpush1.bf16.msra.mxu0 %v5203
        %5643 = vmatprep.subr.bf16.mxu0 0
        %5644 = vmatpush1.bf16.msra.mxu0 %v5204
        %5645 = vmatprep.mubr.bf16.mxu0 %v4301
        %5646 = vmatmul.mubr.bf16.gmra.mrb[0].mxu0 %v4300
        %v5647 = vpop.f32.mrb[0].mxu0
        %v5648 = vadd.f32 %v5608, %v5647
        %v5649 = vpop.f32.mrb[0].mxu0
        %v5650 = vpop.f32.mrb[0].mxu0
        %v5651 = vpop.f32.mrb[0].mxu0
        %5652 = vdwg.mxu0
        %v5653 = vadd.f32 %v3088, %v5648
        %v5654 = vld [vmem:[%s1182] sm:$0x1]
        %v5655 = vld [vmem:[%s1190] sm:$0x1]
        %5656 = vadd.xlane.f32.xlu0 %v5653
        %v5657 = vpop.xlane.xlu0 %5656
        %v5658 = vmul.f32 %v5657, %v2206
        %v5659 = vsub.f32 %v5653, %v5658
        %v5660 = vmul.f32 %v5659, %v5659
        %5661 = vadd.xlane.f32.xlu0 %v5660
        %v5662 = vpop.xlane.xlu0 %5661
        %v5663 = vmul.f32 %v5662, %v2206
        %v5664 = vadd.f32 %v5663, 1e-05
        %v5665 = vrsqrt.pop %v5664
        %v5666 = vmul.f32 %v5659, %v5665
        %v5668 = vlaneseq
        %v5669 = vshrl.u32 %v5668, 7
        %v5670 = vsub.s32 0, %v5669
        %v5671 = vrot.slane %v5654, %v5670
        %v5673 = vmul.f32 %v5666, %v5671
        %v5675 = vlaneseq
        %v5676 = vshrl.u32 %v5675, 7
        %v5677 = vsub.s32 0, %v5676
        %v5678 = vrot.slane %v5655, %v5677
        %v5680 = vadd.f32 %v5673, %v5678
        %5681 = vst [vmem:[#allocation2] sm:$0xff] %v5680
        %p5682 = scmp.eq.s32.totalorder %s63, 1
        // Predicated region
        $region193: #{transformer_classifier_forward.1} parent=111 // pred_check
          %p5683 = pneg %p5682
        $region194: #{transformer_classifier_forward.1} parent=111 // pred_check_branch
          %5685 = sbr.rel (%p5683) target = $region196
        $region195: #{transformer_classifier_forward.1} parent=111 // pred_region
          %v5686 = vld [vmem:[#allocation31] sm:$0xff]
          %v5687 = vld [vmem:[#allocation31 + $0x8] sm:$0xff]
          %v5688 = vld [vmem:[#allocation31 + $0x10] sm:$0xff]
          %v5689 = vld [vmem:[#allocation31 + $0x18] sm:$0xff]
          %v5690 = vld [vmem:[#allocation31 + $0x20] sm:$0xff]
          %v5691 = vld [vmem:[#allocation31 + $0x28] sm:$0xff]
          %v5692 = vld [vmem:[#allocation31 + $0x30] sm:$0xff]
          %v5693 = vld [vmem:[#allocation31 + $0x38] sm:$0xff]
          %v5694 = vld [vmem:[#allocation31 + $0x40] sm:$0xff]
          %v5695 = vld [vmem:[#allocation31 + $0x48] sm:$0xff]
          %v5696 = vld [vmem:[#allocation31 + $0x50] sm:$0xff]
          %v5697 = vld [vmem:[#allocation31 + $0x58] sm:$0xff]
          %v5698 = vld [vmem:[#allocation31 + $0x60] sm:$0xff]
          %v5699 = vld [vmem:[#allocation31 + $0x68] sm:$0xff]
          %v5700 = vld [vmem:[#allocation31 + $0x70] sm:$0xff]
          %v5701 = vld [vmem:[#allocation31 + $0x78] sm:$0xff]
          %v5702 = vld [vmem:[#allocation33] sm:$0x1]
          %v5704 = vlaneseq
          %v5705 = vshrl.u32 %v5704, 7
          %v5706 = vsub.s32 0, %v5705
          %v5707 = vrot.slane %v5702, %v5706
          %5709 = vmatprep.subr.mxu0 0.0
          %5710 = vmatpush1.msra.mxu0 %v5686
          %5711 = vmatprep.subr.mxu0 0.0
          %5712 = vmatpush1.msra.mxu0 %v5687
          %5713 = vmatprep.subr.mxu0 0.0
          %5714 = vmatpush1.msra.mxu0 %v5688
          %5715 = vmatprep.subr.mxu0 0.0
          %5716 = vmatpush1.msra.mxu0 %v5689
          %5717 = vmatprep.subr.mxu0 0.0
          %5718 = vmatpush1.msra.mxu0 %v5690
          %5719 = vmatprep.subr.mxu0 0.0
          %5720 = vmatpush1.msra.mxu0 %v5691
          %5721 = vmatprep.subr.mxu0 0.0
          %5722 = vmatpush1.msra.mxu0 %v5692
          %5723 = vmatprep.subr.mxu0 0.0
          %5724 = vmatpush1.msra.mxu0 %v5693
          %5725 = vmatprep.subr.mxu0 0.0
          %5726 = vmatpush1.msra.mxu0 %v5694
          %5727 = vmatprep.subr.mxu0 0.0
          %5728 = vmatpush1.msra.mxu0 %v5695
          %5729 = vmatprep.subr.mxu0 0.0
          %5730 = vmatpush1.msra.mxu0 %v5696
          %5731 = vmatprep.subr.mxu0 0.0
          %5732 = vmatpush1.msra.mxu0 %v5697
          %5733 = vmatprep.subr.mxu0 0.0
          %5734 = vmatpush1.msra.mxu0 %v5698
          %5735 = vmatprep.subr.mxu0 0.0
          %5736 = vmatpush1.msra.mxu0 %v5699
          %5737 = vmatprep.subr.mxu0 0.0
          %5738 = vmatpush1.msra.mxu0 %v5700
          %5739 = vmatprep.subr.mxu0 0.0
          %5740 = vmatpush1.msra.mxu0 %v5701
          %5741 = vmatprep.subr.mxu0 0.0
          %5742 = vmatpush1.msra.mxu0 0.0
          %5743 = vmatprep.subr.mxu0 0.0
          %5744 = vmatpush1.msra.mxu0 0.0
          %5745 = vmatprep.subr.mxu0 0.0
          %5746 = vmatpush1.msra.mxu0 0.0
          %5747 = vmatprep.subr.mxu0 0.0
          %5748 = vmatpush1.msra.mxu0 0.0
          %5749 = vmatprep.subr.mxu0 0.0
          %5750 = vmatpush1.msra.mxu0 0.0
          %5751 = vmatprep.subr.mxu0 0.0
          %5752 = vmatpush1.msra.mxu0 0.0
          %5753 = vmatprep.subr.mxu0 0.0
          %5754 = vmatpush1.msra.mxu0 0.0
          %5755 = vmatprep.subr.mxu0 0.0
          %5756 = vmatpush1.msra.mxu0 0.0
          %5757 = vmatprep.subr.mxu0 0.0
          %5758 = vmatpush1.msra.mxu0 0.0
          %5759 = vmatprep.subr.mxu0 0.0
          %5760 = vmatpush1.msra.mxu0 0.0
          %5761 = vmatprep.subr.mxu0 0.0
          %5762 = vmatpush1.msra.mxu0 0.0
          %5763 = vmatprep.subr.mxu0 0.0
          %5764 = vmatpush1.msra.mxu0 0.0
          %5765 = vmatprep.subr.mxu0 0.0
          %5766 = vmatpush1.msra.mxu0 0.0
          %5767 = vmatprep.subr.mxu0 0.0
          %5768 = vmatpush1.msra.mxu0 0.0
          %5769 = vmatprep.subr.mxu0 0.0
          %5770 = vmatpush1.msra.mxu0 0.0
          %5771 = vmatprep.subr.mxu0 0.0
          %5772 = vmatpush1.msra.mxu0 0.0
          %5773 = vmatprep.mubr.f32.mxu0 0.0
          %5774 = vmatmul.mubr.f32.gmra.mrb[0].mxu0 %v5680
          %v5775 = vpop.f32.mrb[0].mxu0
          %v5776 = vadd.f32 %v5707, %v5775
          %v5777 = vpop.f32.mrb[0].mxu0
          %5778 = vdwg.mxu0
          %5779 = vmax.xlane.f32.xlu0 %v5776
          %v5780 = vpop.xlane.xlu0 %5779
          %v5781 = vsub.f32 %v5776, %v5780
          %v5782 = vmul.f32 %v5781, 1.442695
          %v5783 = vpow.pop %v5782
          %5784 = vadd.xlane.f32.xlu0 %v5783
          %v5785 = vpop.xlane.xlu0 %5784
          %v5786 = vrcp.pop %v5785
          %v5787 = vmul.f32 %v5783, %v5786
          %5788 = vst [vmem:[#allocation34] sm:$0xff] %v5787
        $region196: #{transformer_classifier_forward.1} parent=111 // pred_fallthru
          _
        // Predicated region
        $region197: #{transformer_classifier_forward.1} parent=111 // pred_check
          %p5789 = pneg %p659
        $region198: #{transformer_classifier_forward.1} parent=111 // pred_check_branch
          %5791 = sbr.rel (%p5789) target = $region200
        $region199: #{transformer_classifier_forward.1} parent=111 // pred_region
          %s5793 = ssub.s32 128, 128
          %5794 = vsyncadd [#allocation6], %s5793
          %s5796 = sshll.u32 [#allocation34], 4
          %s5797 = int_to_ptr.vmem [resolvable:$true] %s5796
          %5799 = dma.vmem_to_hbm [thread:$0]  %s5797, 128, %s23, [#allocation6]
        $region200: #{transformer_classifier_forward.1} parent=111 // pred_fallthru
          _
        // Predicated region
        $region201: #{transformer_classifier_forward.1} parent=111 // pred_check
          %p5800 = pneg %p659
        $region202: #{transformer_classifier_forward.1} parent=111 // pred_check_branch
          %5802 = sbr.rel (%p5800) target = $region204
        $region203: #{transformer_classifier_forward.1} parent=111 // pred_region
          %5803 = dma.done [#allocation6], 128
        $region204: #{transformer_classifier_forward.1} parent=111 // pred_fallthru
          _
      $region112: #{transformer_classifier_forward.1} parent=5 // pred_fallthru
        _
      %p5804 = scmp.le.s32.totalorder 2, %s58
      // Predicated region
      $region205: #{transformer_classifier_forward.1} parent=5 // pred_check
        %p5805 = pneg %p5804
      $region206: #{transformer_classifier_forward.1} parent=5 // pred_check_branch
        %5807 = sbr.rel (%p5805) target = $region208
      $region207: #{transformer_classifier_forward.1} parent=5 // pred_region
        %s5808 = ssub.s32 %s58, 2
      $region208: #{transformer_classifier_forward.1} parent=5 // pred_fallthru
        _
    $region6: #{transformer_classifier_forward.1} parent=1 // loop_footer
      %s62 = sadd.s32 1, %s58
    $region7: #{transformer_classifier_forward.1} parent=1 // loop_footer_branch
      %57 = sbr.rel target = $region3
    $region8: #{transformer_classifier_forward.1} parent=1 // loop_exit
      _
    %5809 = vsyncpa [#allocation5], 1
    %s5810 = scalar_lea.sflag [#allocation5], 1
    %5811 = vsyncpa %s5810, 1
    %5812 = vsyncpa [#allocation8], 1
    %s5813 = scalar_lea.sflag [#allocation8], 1
    %5814 = vsyncpa %s5813, 1
    %5815 = vsyncpa [#allocation11], 1
    %s5816 = scalar_lea.sflag [#allocation11], 1
    %5817 = vsyncpa %s5816, 1
    %5818 = vsyncpa [#allocation14], 1
    %s5819 = scalar_lea.sflag [#allocation14], 1
    %5820 = vsyncpa %s5819, 1
    %5821 = vsyncpa [#allocation17], 1
    %s5822 = scalar_lea.sflag [#allocation17], 1
    %5823 = vsyncpa %s5822, 1
    %5824 = vsyncpa [#allocation20], 1
    %s5825 = scalar_lea.sflag [#allocation20], 1
    %5826 = vsyncpa %s5825, 1
    %5827 = vsyncpa [#allocation23], 1
    %s5828 = scalar_lea.sflag [#allocation23], 1
    %5829 = vsyncpa %s5828, 1
    %5830 = vsyncpa [#allocation26], 1
    %s5831 = scalar_lea.sflag [#allocation26], 1
    %5832 = vsyncpa %s5831, 1
    %5833 = vsyncpa [#allocation29], 1
    %s5834 = scalar_lea.sflag [#allocation29], 1
    %5835 = vsyncpa %s5834, 1
    %5836 = vsyncpa [#allocation32], 1
    %5837 = vsyncpa [#allocation6], 1
    %s5838 = scalar_lea.sflag [#allocation6], 1
    %5839 = vsyncpa %s5838, 1

</llo_original>
